<compile_context>
chip_gen: v7x
topology: tpu7x:2x2x1
jax: 0.10.0
libtpu: 0.0.40
codegen_flags: <defaults>
</compile_context>

<pallas_src>
import functools

import jax
import jax.numpy as jnp
from jax import lax
from jax.experimental import pallas as pl
from jax.experimental.pallas import tpu as pltpu


# Packed parameter-table layout: rows = channel index, columns = parameter.
_COL_IN_B, _COL_IN_G, _COL_IN_BE = 0, 1, 2
_COL_C0_B, _COL_C0_G, _COL_C0_BE = 3, 4, 5
_COL_C1_B, _COL_C1_G, _COL_C1_BE = 6, 7, 8
_COL_SE_B2 = 9
_COL_DN_B, _COL_DN_G, _COL_DN_BE = 10, 11, 12
_COL_SE_B1 = 13
_COL_ALPHA = 14            # rows 0..4 = PReLU alphas [input, conv0, conv1, SE, down]
_PT_ROWS, _PT_COLS = 16, 16


# ----------------------------------------------------------------------------
# Fused EncoderBlock kernel (one grid step == one batch sample)
# ----------------------------------------------------------------------------

def _encoder_block_kernel(
        x_ref, ptab_ref, idx_ref,
        w_in_ref, w_c0_ref, w_c1_ref, w_se1_ref, w_se2_ref, w_dn_ref,
        xres_ref, xdown_ref,
        *, C, Cin, Cr, C2, D, H, W, num_groups, eps, k_pad):
    S = D * H * W
    D2, H2, W2 = D // 2, H // 2, W // 2
    S2 = D2 * H2 * W2

    ptab = ptab_ref[...]                                   # (16, 16) packed params
    colv = lambda j, n: ptab[0:n, j:j + 1]                 # (n, 1) per-channel vec
    alpha = lambda r: ptab[r:r + 1, _COL_ALPHA:_COL_ALPHA + 1]   # (1, 1) PReLU alpha

    di = idx_ref[0:1, :]                                   # (1, S) z coord of pos
    hi = idx_ref[1:2, :]                                   # (1, S) y coord
    wi = idx_ref[2:3, :]                                   # (1, S) x coord
    base = idx_ref[3:4, 0:S2]                              # (1, S2) stride-2 corner

    def group_mask(ch):
        # (ch, ch) f32: 1.0 where two channels share a GroupNorm group.
        gs = ch // num_groups                              # power of two (asserted)
        ci = lax.broadcasted_iota(jnp.int32, (ch, ch), 0) & jnp.int32(-gs)
        cj = lax.broadcasted_iota(jnp.int32, (ch, ch), 1) & jnp.int32(-gs)
        return jnp.where(ci == cj, 1.0, 0.0)

    pm, pm2 = group_mask(C), group_mask(C2)

    def gn_prelu(y, g_col, be_col, a11, pm_):
        # GroupNorm(num_groups) over (channels-in-group x spatial) + PReLU.
        ch, sp = y.shape
        inv_n = 1.0 / float((ch // num_groups) * sp)
        csum = jnp.sum(y, axis=1, keepdims=True)           # (ch, 1)
        csq = jnp.sum(y * y, axis=1, keepdims=True)        # (ch, 1)
        # One tiny MXU dot computes both group stats (sum, sumsq) together.
        k_idx = lax.broadcasted_iota(jnp.int32, (ch, 2), 1)
        stats = jnp.dot(pm_, jnp.where(k_idx == 0, csum, csq),
                        preferred_element_type=jnp.float32)      # (ch, 2)
        mean = stats[:, 0:1] * inv_n
        var = jnp.maximum(stats[:, 1:2] * inv_n - mean * mean, 0.0)   # clamped
        z = (y - mean) * lax.rsqrt(var + eps) * g_col + be_col
        return jnp.where(z >= 0, z, a11 * z)

    def pull(v, delta):
        # y[:, s] = v[:, (s + delta) % S]  -- lane rotation on the XLU.
        d = delta % S
        return v if d == 0 else pltpu.roll(v, shift=S - d, axis=1)

    def conv3x3x3(h_in, w_ref):
        # "Same" 3x3x3 conv as ONE MXU dot: 27 rolled + boundary-masked copies
        # of the VMEM-resident activation stacked into a (k_pad, S) operand.
        pieces = []
        for oz in (-1, 0, 1):
            for oy in (-1, 0, 1):
                for ox in (-1, 0, 1):
                    xs = pull(h_in, oz * H * W + oy * W + ox)
                    conds = []
                    if oz == -1: conds.append(di >= 1)
                    if oz == 1:  conds.append(di <= D - 2)
                    if oy == -1: conds.append(hi >= 1)
                    if oy == 1:  conds.append(hi <= H - 2)
                    if ox == -1: conds.append(wi >= 1)
                    if ox == 1:  conds.append(wi <= W - 2)
                    if conds:
                        m = conds[0]
                        for c in conds[1:]:
                            m = jnp.logical_and(m, c)
                        xs = xs * jnp.where(m, 1.0, 0.0)   # (1, S) validity mask
                    pieces.append(xs)
        if k_pad > 27 * C:                                  # zero-pad K to 256
            pieces.append(jnp.zeros((k_pad - 27 * C, S), jnp.float32))
        stacked = jnp.concatenate(pieces, axis=0)           # (k_pad, S)
        return jnp.dot(w_ref[...], stacked, preferred_element_type=jnp.float32)

    x = x_ref[0]                                            # (Cin, S)

    # conv_input: Conv3d(1x1x1) + GroupNorm + PReLU      (params['input'] True)
    y = (jnp.dot(w_in_ref[...], x, preferred_element_type=jnp.float32)
         + colv(_COL_IN_B, C))
    skip = gn_prelu(y, colv(_COL_IN_G, C), colv(_COL_IN_BE, C), alpha(0), pm)

    # Block: conv0 + conv1 (create_layer_2=False -> conv2 skipped, per the
    # module's try/except).
    h = conv3x3x3(skip, w_c0_ref) + colv(_COL_C0_B, C)
    h = gn_prelu(h, colv(_COL_C0_G, C), colv(_COL_C0_BE, C), alpha(1), pm)
    h = conv3x3x3(h, w_c1_ref) + colv(_COL_C1_B, C)
    h = gn_prelu(h, colv(_COL_C1_G, C), colv(_COL_C1_BE, C), alpha(2), pm)

    # SE block (GAP -> 1x1 conv -> PReLU -> 1x1 conv -> sigmoid) fused with the
    # outer EncoderBlock residual add.  nn.PReLU() default => single alpha.
    pooled = jnp.sum(h, axis=1, keepdims=True) * (1.0 / S)          # (C, 1)
    s1 = (jnp.dot(w_se1_ref[...], pooled, preferred_element_type=jnp.float32)
          + colv(_COL_SE_B1, Cr))
    s1 = jnp.where(s1 >= 0, s1, alpha(3) * s1)
    s2 = (jnp.dot(w_se2_ref[...], s1, preferred_element_type=jnp.float32)
          + colv(_COL_SE_B2, C))
    x_res = h * jax.nn.sigmoid(s2) + skip
    xres_ref[0] = x_res

    # down_block: Conv3d(2x2x2, stride 2) + GroupNorm + PReLU.
    # One stacked (C2, 8C) x (8C, S) dot on the VMEM-resident x_res, then an
    # iota-built one-hot selection matmul performs the stride-2 gather.
    pieces = [pull(x_res, oz * H * W + oy * W + ox)
              for oz in (0, 1) for oy in (0, 1) for ox in (0, 1)]
    m_full = jnp.dot(w_dn_ref[...], jnp.concatenate(pieces, axis=0),
                     preferred_element_type=jnp.float32)             # (C2, S)
    rows = lax.broadcasted_iota(jnp.int32, (S, S2), 0)
    sel = jnp.where(rows == base, 1.0, 0.0)                           # (S, S2)
    # TODO(synk): for large D*H*W replace this O(S*S2) one-hot selection with a
    # strided space-to-depth gather and tile the spatial axis (two-pass
    # GroupNorm stats) so per-sample blocks stay under v7x's 64 MiB VMEM.
    d_out = (jnp.dot(m_full, sel, preferred_element_type=jnp.float32)
             + colv(_COL_DN_B, C2))
    xdown_ref[0] = gn_prelu(d_out, colv(_COL_DN_G, C2), colv(_COL_DN_BE, C2),
                            alpha(4), pm2)


# ----------------------------------------------------------------------------
# Wrapper: host-side layout plumbing (packed tables, stacked-tap weights) +
# one pallas_call.
# ----------------------------------------------------------------------------

def encoder_block_forward(x, p, num_groups=4, eps=1e-5):
    """x: (N, Cin, D, H, W) float32 (PyTorch NCDHW). Returns (x_res, x_down)."""
    N, Cin, D, H, W = x.shape
    S = D * H * W
    C = p['in_w'].shape[0]
    Cr = p['se_w1'].shape[0]
    C2 = p['dn_w'].shape[0]
    D2, H2, W2 = D // 2, H // 2, W // 2
    S2 = D2 * H2 * W2
    k27 = 27 * C
    k_pad = ((k27 + 127) // 128) * 128           # pad contraction for v5e's MXU

    gs1, gs2 = C // num_groups, C2 // num_groups
    assert gs1 > 0 and (gs1 & (gs1 - 1)) == 0, "group size must be a power of 2"
    assert gs2 > 0 and (gs2 & (gs2 - 1)) == 0, "group size must be a power of 2"
    assert C <= _PT_ROWS and C2 <= _PT_ROWS and Cr <= _PT_ROWS

    f32 = jnp.float32

    # Packed per-channel parameter table (one tiny DMA instead of ~20).
    ptab = jnp.zeros((_PT_ROWS, _PT_COLS), f32)
    cols = [(_COL_IN_B, p['in_b']), (_COL_IN_G, p['in_gamma']),
            (_COL_IN_BE, p['in_beta']),
            (_COL_C0_B, p['c0_b']), (_COL_C0_G, p['c0_gamma']),
            (_COL_C0_BE, p['c0_beta']),
            (_COL_C1_B, p['c1_b']), (_COL_C1_G, p['c1_gamma']),
            (_COL_C1_BE, p['c1_beta']),
            (_COL_SE_B2, p['se_b2']),
            (_COL_DN_B, p['dn_b']), (_COL_DN_G, p['dn_gamma']),
            (_COL_DN_BE, p['dn_beta']),
            (_COL_SE_B1, p['se_b1'])]
    for j, v in cols:
        v = v.astype(f32).reshape(-1)
        ptab = ptab.at[0:v.shape[0], j].set(v)
    alphas = jnp.stack([p['in_alpha'], p['c0_alpha'], p['c1_alpha'],
                        p['se_alpha'], p['dn_alpha']]).astype(f32)
    ptab = ptab.at[0:5, _COL_ALPHA].set(alphas)

    # Small coordinate table: (z, y, x) of each flattened position plus the
    # flat source index of each stride-2 output cell.  Boundary masks and the
    # one-hot selection matrix are rebuilt in-kernel from iota compares, so no
    # S^2-sized data ever touches HBM.
    s = jnp.arange(S, dtype=jnp.int32)
    di, hi, wi = s // (H * W), (s // W) % H, s % W
    s2 = jnp.arange(S2, dtype=jnp.int32)
    d2, h2, w2 = s2 // (H2 * W2), (s2 // W2) % H2, s2 % W2
    base = 2 * d2 * (H * W) + 2 * h2 * W + 2 * w2
    base_row = jnp.full((S,), -1, jnp.int32).at[0:S2].set(base)
    idx = jnp.stack([di, hi, wi, base_row], axis=0)         # (4, S) int32

    # Conv weights flattened to "stacked tap" matrices (Cout, taps*Cin).
    def flat_taps(w):   # (O, I, kd, kh, kw) -> (O, kd*kh*kw*I)
        return jnp.transpose(w, (0, 2, 3, 4, 1)).reshape(w.shape[0], -1).astype(f32)

    w_c0 = jnp.pad(flat_taps(p['c0_w']), ((0, 0), (0, k_pad - k27)))
    w_c1 = jnp.pad(flat_taps(p['c1_w']), ((0, 0), (0, k_pad - k27)))
    w_dn = flat_taps(p['dn_w'])                              # (C2, 8*C)
    w_in = p['in_w'].reshape(C, Cin).astype(f32)
    w_se1 = p['se_w1'].reshape(Cr, C).astype(f32)
    w_se2 = p['se_w2'].reshape(C, Cr).astype(f32)

    inputs = [x.reshape(N, Cin, S).astype(f32),
              ptab, idx, w_in, w_c0, w_c1, w_se1, w_se2, w_dn]

    def const_spec(a):
        nd = a.ndim
        return pl.BlockSpec(a.shape, lambda i, nd=nd: (0,) * nd)

    in_specs = ([pl.BlockSpec((1, Cin, S), lambda i: (i, 0, 0))] +
                [const_spec(a) for a in inputs[1:]])
    out_specs = (pl.BlockSpec((1, C, S), lambda i: (i, 0, 0)),
                 pl.BlockSpec((1, C2, S2), lambda i: (i, 0, 0)))

    kernel = functools.partial(_encoder_block_kernel, C=C, Cin=Cin, Cr=Cr,
                               C2=C2, D=D, H=H, W=W, num_groups=num_groups,
                               eps=eps, k_pad=k_pad)
    x_res, x_down = pl.pallas_call(
        kernel,
        out_shape=(jax.ShapeDtypeStruct((N, C, S), f32),
                   jax.ShapeDtypeStruct((N, C2, S2), f32)),
        grid=(N,),
        in_specs=in_specs,
        out_specs=out_specs,
        # One sample per grid step keeps per-sample GroupNorm stats trivial and
        # lets the batch split across TensorCores on multi-TC parts (switch to
        # pltpu.CORE_PARALLEL if xprof shows a core idle on v7x).
        compiler_params=pltpu.CompilerParams(
            dimension_semantics=("parallel",)),
    )(*inputs)
    return (x_res.reshape(N, C, D, H, W),
            x_down.reshape(N, C2, D2, H2, W2))


# ----------------------------------------------------------------------------
# Pure-JAX/XLA reference (independent formulation, for correctness check)
# ----------------------------------------------------------------------------

def ref_forward(x, p, num_groups=4, eps=1e-5):
    def conv(v, w, b, stride, padding):
        dn = lax.conv_dimension_numbers(v.shape, w.shape,
                                        ('NCDHW', 'OIDHW', 'NCDHW'))
        y = lax.conv_general_dilated(v, w, (stride,) * 3, padding,
                                     dimension_numbers=dn)
        return y + b.reshape(1, -1, 1, 1, 1)

    def gn_prelu(v, gamma, beta, alpha):
        n, c, d, h, w = v.shape
        vr = v.reshape(n, num_groups, c // num_groups, d, h, w)
        mean = vr.mean(axis=(2, 3, 4, 5), keepdims=True)
        var = ((vr - mean) ** 2).mean(axis=(2, 3, 4, 5), keepdims=True)
        y = ((vr - mean) / jnp.sqrt(var + eps)).reshape(n, c, d, h, w)
        y = y * gamma.reshape(1, c, 1, 1, 1) + beta.reshape(1, c, 1, 1, 1)
        return jnp.where(y >= 0, y, alpha * y)

    x = gn_prelu(conv(x, p['in_w'], p['in_b'], 1, 'VALID'),
                 p['in_gamma'], p['in_beta'], p['in_alpha'])
    skip = x
    h = gn_prelu(conv(x, p['c0_w'], p['c0_b'], 1, [(1, 1)] * 3),
                 p['c0_gamma'], p['c0_beta'], p['c0_alpha'])
    h = gn_prelu(conv(h, p['c1_w'], p['c1_b'], 1, [(1, 1)] * 3),
                 p['c1_gamma'], p['c1_beta'], p['c1_alpha'])
    pooled = h.mean(axis=(2, 3, 4), keepdims=True)
    s1 = conv(pooled, p['se_w1'], p['se_b1'], 1, 'VALID')
    s1 = jnp.where(s1 >= 0, s1, p['se_alpha'] * s1)
    s2 = conv(s1, p['se_w2'], p['se_b2'], 1, 'VALID')
    x_res = h * jax.nn.sigmoid(s2) + skip
    x_down = gn_prelu(conv(x_res, p['dn_w'], p['dn_b'], 2, 'VALID'),
                      p['dn_gamma'], p['dn_beta'], p['dn_alpha'])
    return x_res, x_down


# ----------------------------------------------------------------------------
# Main
# ----------------------------------------------------------------------------

if __name__ == "__main__":
    key = jax.random.PRNGKey(0)
    keys = jax.random.split(key, 32)

    N, Cin, C, DHW = 2, 4, 8, 8          # batch=2, in_ch=4, out_ch=8, spatial=8^3
    C2 = 2 * C

    def nrm(k, shape, scale):
        return scale * jax.random.normal(k, shape, dtype=jnp.float32)

    params = dict(
        # conv_input: Conv3d(4->8, 1x1x1) + GN(4,8) + PReLU
        in_w=nrm(keys[0], (C, Cin, 1, 1, 1), 0.3),
        in_b=nrm(keys[1], (C,), 0.05),
        in_gamma=1.0 + nrm(keys[2], (C,), 0.05),
        in_beta=nrm(keys[3], (C,), 0.05),
        in_alpha=jnp.array(0.25, jnp.float32),
        # Block.conv0: Conv3d(8->8, 3x3x3, pad 1) + GN(4,8) + PReLU
        c0_w=nrm(keys[4], (C, C, 3, 3, 3), 0.1),
        c0_b=nrm(keys[5], (C,), 0.05),
        c0_gamma=1.0 + nrm(keys[6], (C,), 0.05),
        c0_beta=nrm(keys[7], (C,), 0.05),
        c0_alpha=jnp.array(0.25, jnp.float32),
        # Block.conv1: Conv3d(8->8, 3x3x3, pad 1) + GN(4,8) + PReLU
        c1_w=nrm(keys[8], (C, C, 3, 3, 3), 0.1),
        c1_b=nrm(keys[9], (C,), 0.05),
        c1_gamma=1.0 + nrm(keys[10], (C,), 0.05),
        c1_beta=nrm(keys[11], (C,), 0.05),
        c1_alpha=jnp.array(0.25, jnp.float32),
        # SE block (r=2): Conv3d(8->4,1), PReLU, Conv3d(4->8,1), Sigmoid
        se_w1=nrm(keys[12], (C // 2, C, 1, 1, 1), 0.3),
        se_b1=nrm(keys[13], (C // 2,), 0.05),
        se_alpha=jnp.array(0.25, jnp.float32),
        se_w2=nrm(keys[14], (C, C // 2, 1, 1, 1), 0.3),
        se_b2=nrm(keys[15], (C,), 0.05),
        # down_block: Conv3d(8->16, 2x2x2, stride 2) + GN(4,16) + PReLU
        dn_w=nrm(keys[16], (C2, C, 2, 2, 2), 0.1),
        dn_b=nrm(keys[17], (C2,), 0.05),
        dn_gamma=1.0 + nrm(keys[18], (C2,), 0.05),
        dn_beta=nrm(keys[19], (C2,), 0.05),
        dn_alpha=jnp.array(0.25, jnp.float32),
    )

    # Input in PyTorch NCDHW convention (used directly, no transpose needed).
    x = jax.random.normal(keys[20], (N, Cin, DHW, DHW, DHW), dtype=jnp.float32)

    fwd = jax.jit(encoder_block_forward)
    x_res, x_down = fwd(x, params)
    jax.block_until_ready((x_res, x_down))

    # Correctness check vs the XLA reference.
    r_res, r_down = jax.jit(ref_forward)(x, params)
    err_res = float(jnp.max(jnp.abs(x_res - r_res)))
    err_down = float(jnp.max(jnp.abs(x_down - r_down)))
    assert x_res.shape == (N, C, DHW, DHW, DHW)
    assert x_down.shape == (N, C2, DHW // 2, DHW // 2, DHW // 2)
    assert err_res < 1e-3 and err_down < 1e-3, (err_res, err_down)

    print("KERNEL_OK")
</pallas_src>

<mosaic_0001>
module attributes {stable_mosaic.version = 11 : i64} {
  func.func @_encoder_block_kernel(%arg0: i32, %arg1: memref<1x4x512xf32, #tpu.memory_space<vmem>>, %arg2: memref<16x16xf32, #tpu.memory_space<vmem>>, %arg3: memref<4x512xi32, #tpu.memory_space<vmem>>, %arg4: memref<8x4xf32, #tpu.memory_space<vmem>>, %arg5: memref<8x256xf32, #tpu.memory_space<vmem>>, %arg6: memref<8x256xf32, #tpu.memory_space<vmem>>, %arg7: memref<4x8xf32, #tpu.memory_space<vmem>>, %arg8: memref<8x4xf32, #tpu.memory_space<vmem>>, %arg9: memref<16x64xf32, #tpu.memory_space<vmem>>, %arg10: memref<1x8x512xf32, #tpu.memory_space<vmem>>, %arg11: memref<1x16x64xf32, #tpu.memory_space<vmem>>) attributes {dimension_semantics = [#tpu.dimension_semantics<parallel>], iteration_bounds = array<i64: 2>, scalar_prefetch = 0 : i64, scratch_operands = 0 : i64, tpu.core_type = #tpu.core_type<tc>, window_params = [{transform_indices = @transform_0, window_bounds = array<i64: 1, 4, 512>}, {pipeline_mode = #tpu.pipeline_mode<synchronous>, transform_indices = @transform_1, window_bounds = array<i64: 16, 16>}, {pipeline_mode = #tpu.pipeline_mode<synchronous>, transform_indices = @transform_2, window_bounds = array<i64: 4, 512>}, {pipeline_mode = #tpu.pipeline_mode<synchronous>, transform_indices = @transform_3, window_bounds = array<i64: 8, 4>}, {pipeline_mode = #tpu.pipeline_mode<synchronous>, transform_indices = @transform_4, window_bounds = array<i64: 8, 256>}, {pipeline_mode = #tpu.pipeline_mode<synchronous>, transform_indices = @transform_5, window_bounds = array<i64: 8, 256>}, {pipeline_mode = #tpu.pipeline_mode<synchronous>, transform_indices = @transform_6, window_bounds = array<i64: 4, 8>}, {pipeline_mode = #tpu.pipeline_mode<synchronous>, transform_indices = @transform_7, window_bounds = array<i64: 8, 4>}, {pipeline_mode = #tpu.pipeline_mode<synchronous>, transform_indices = @transform_8, window_bounds = array<i64: 16, 64>}, {transform_indices = @transform_9, window_bounds = array<i64: 1, 8, 512>}, {transform_indices = @transform_10, window_bounds = array<i64: 1, 16, 64>}]} {
    %c0 = arith.constant 0 : index
    %c0_0 = arith.constant 0 : index
    %0 = vector.load %arg2[%c0, %c0_0] : memref<16x16xf32, #tpu.memory_space<vmem>>, vector<16x16xf32>
    %c0_1 = arith.constant 0 : index
    %c0_2 = arith.constant 0 : index
    %1 = vector.load %arg3[%c0_1, %c0_2] : memref<4x512xi32, #tpu.memory_space<vmem>>, vector<1x512xi32>
    %c1 = arith.constant 1 : index
    %c0_3 = arith.constant 0 : index
    %2 = vector.load %arg3[%c1, %c0_3] : memref<4x512xi32, #tpu.memory_space<vmem>>, vector<1x512xi32>
    %c2 = arith.constant 2 : index
    %c0_4 = arith.constant 0 : index
    %3 = vector.load %arg3[%c2, %c0_4] : memref<4x512xi32, #tpu.memory_space<vmem>>, vector<1x512xi32>
    %c3 = arith.constant 3 : index
    %c0_5 = arith.constant 0 : index
    %4 = vector.load %arg3[%c3, %c0_5] : memref<4x512xi32, #tpu.memory_space<vmem>>, vector<1x64xi32>
    %5 = tpu.iota {dimensions = array<i32: 0>} : vector<8x8xi32>
    %c-2_i32 = arith.constant -2 : i32
    %6 = vector.broadcast %c-2_i32 : i32 to vector<8x8xi32>
    %7 = arith.andi %5, %6 : vector<8x8xi32>
    %8 = tpu.iota {dimensions = array<i32: 1>} : vector<8x8xi32>
    %c-2_i32_6 = arith.constant -2 : i32
    %9 = vector.broadcast %c-2_i32_6 : i32 to vector<8x8xi32>
    %10 = arith.andi %8, %9 : vector<8x8xi32>
    %11 = arith.cmpi eq, %7, %10 : vector<8x8xi32>
    %cst = arith.constant 1.000000e+00 : f32
    %cst_7 = arith.constant 0.000000e+00 : f32
    %12 = vector.broadcast %cst : f32 to vector<8x8xf32>
    %13 = vector.broadcast %cst_7 : f32 to vector<8x8xf32>
    %14 = arith.select %11, %12, %13 : vector<8x8xi1>, vector<8x8xf32>
    %15 = tpu.iota {dimensions = array<i32: 0>} : vector<16x16xi32>
    %c-4_i32 = arith.constant -4 : i32
    %16 = vector.broadcast %c-4_i32 : i32 to vector<16x16xi32>
    %17 = arith.andi %15, %16 : vector<16x16xi32>
    %18 = tpu.iota {dimensions = array<i32: 1>} : vector<16x16xi32>
    %c-4_i32_8 = arith.constant -4 : i32
    %19 = vector.broadcast %c-4_i32_8 : i32 to vector<16x16xi32>
    %20 = arith.andi %18, %19 : vector<16x16xi32>
    %21 = arith.cmpi eq, %17, %20 : vector<16x16xi32>
    %cst_9 = arith.constant 1.000000e+00 : f32
    %cst_10 = arith.constant 0.000000e+00 : f32
    %22 = vector.broadcast %cst_9 : f32 to vector<16x16xf32>
    %23 = vector.broadcast %cst_10 : f32 to vector<16x16xf32>
    %24 = arith.select %21, %22, %23 : vector<16x16xi1>, vector<16x16xf32>
    %c0_11 = arith.constant 0 : index
    %c0_12 = arith.constant 0 : index
    %c0_13 = arith.constant 0 : index
    %25 = vector.load %arg1[%c0_11, %c0_12, %c0_13] : memref<1x4x512xf32, #tpu.memory_space<vmem>>, vector<1x4x512xf32>
    %26 = vector.shape_cast %25 : vector<1x4x512xf32> to vector<4x512xf32>
    %c0_14 = arith.constant 0 : index
    %c0_15 = arith.constant 0 : index
    %27 = vector.load %arg4[%c0_14, %c0_15] : memref<8x4xf32, #tpu.memory_space<vmem>>, vector<8x4xf32>
    %cst_16 = arith.constant dense<0.000000e+00> : vector<8x512xf32>
    %28 = tpu.matmul %27, %26, %cst_16 {dimension_numbers = #tpu.dot_dimension_numbers<[1], [0], [0], [1], [0, 0, 1, 1], [], []>} : vector<8x4xf32>, vector<4x512xf32>, vector<8x512xf32> -> vector<8x512xf32>
    %29 = vector.extract_strided_slice %0 {offsets = [0, 0], sizes = [8, 1], strides = [1, 1]} : vector<16x16xf32> to vector<8x1xf32>
    %30 = vector.broadcast %29 : vector<8x1xf32> to vector<8x512xf32>
    %31 = arith.addf %28, %30 : vector<8x512xf32>
    %32 = vector.extract_strided_slice %0 {offsets = [0, 1], sizes = [8, 1], strides = [1, 1]} : vector<16x16xf32> to vector<8x1xf32>
    %33 = vector.extract_strided_slice %0 {offsets = [0, 2], sizes = [8, 1], strides = [1, 1]} : vector<16x16xf32> to vector<8x1xf32>
    %34 = vector.extract_strided_slice %0 {offsets = [0, 14], sizes = [1, 1], strides = [1, 1]} : vector<16x16xf32> to vector<1x1xf32>
    %cst_17 = arith.constant dense<0.000000e+00> : vector<8xf32>
    %35 = vector.multi_reduction <add>, %31, %cst_17 [1] : vector<8x512xf32> to vector<8xf32>
    %36 = vector.shape_cast %35 : vector<8xf32> to vector<8x1xf32>
    %37 = arith.mulf %31, %31 : vector<8x512xf32>
    %cst_18 = arith.constant dense<0.000000e+00> : vector<8xf32>
    %38 = vector.multi_reduction <add>, %37, %cst_18 [1] : vector<8x512xf32> to vector<8xf32>
    %39 = vector.shape_cast %38 : vector<8xf32> to vector<8x1xf32>
    %40 = tpu.iota {dimensions = array<i32: 1>} : vector<8x2xi32>
    %c0_i32 = arith.constant 0 : i32
    %41 = vector.broadcast %c0_i32 : i32 to vector<8x2xi32>
    %42 = arith.cmpi eq, %40, %41 : vector<8x2xi32>
    %43 = vector.shape_cast %36 : vector<8x1xf32> to vector<8x1xf32>
    %44 = vector.broadcast %43 : vector<8x1xf32> to vector<8x2xf32>
    %45 = vector.shape_cast %39 : vector<8x1xf32> to vector<8x1xf32>
    %46 = vector.broadcast %45 : vector<8x1xf32> to vector<8x2xf32>
    %47 = arith.select %42, %44, %46 : vector<8x2xi1>, vector<8x2xf32>
    %cst_19 = arith.constant dense<0.000000e+00> : vector<8x2xf32>
    %48 = tpu.matmul %14, %47, %cst_19 {dimension_numbers = #tpu.dot_dimension_numbers<[1], [0], [0], [1], [0, 0, 1, 1], [], []>} : vector<8x8xf32>, vector<8x2xf32>, vector<8x2xf32> -> vector<8x2xf32>
    %49 = vector.extract_strided_slice %48 {offsets = [0, 0], sizes = [8, 1], strides = [1, 1]} : vector<8x2xf32> to vector<8x1xf32>
    %cst_20 = arith.constant 9.765625E-4 : f32
    %50 = vector.broadcast %cst_20 : f32 to vector<8x1xf32>
    %51 = arith.mulf %49, %50 : vector<8x1xf32>
    %52 = vector.extract_strided_slice %48 {offsets = [0, 1], sizes = [8, 1], strides = [1, 1]} : vector<8x2xf32> to vector<8x1xf32>
    %cst_21 = arith.constant 9.765625E-4 : f32
    %53 = vector.broadcast %cst_21 : f32 to vector<8x1xf32>
    %54 = arith.mulf %52, %53 : vector<8x1xf32>
    %55 = arith.mulf %51, %51 : vector<8x1xf32>
    %56 = arith.subf %54, %55 : vector<8x1xf32>
    %cst_22 = arith.constant 0.000000e+00 : f32
    %57 = vector.broadcast %cst_22 : f32 to vector<8x1xf32>
    %58 = arith.maximumf %56, %57 : vector<8x1xf32>
    %59 = vector.broadcast %51 : vector<8x1xf32> to vector<8x512xf32>
    %60 = arith.subf %31, %59 : vector<8x512xf32>
    %cst_23 = arith.constant 9.99999974E-6 : f32
    %61 = vector.broadcast %cst_23 : f32 to vector<8x1xf32>
    %62 = arith.addf %58, %61 : vector<8x1xf32>
    %63 = math.rsqrt %62 : vector<8x1xf32>
    %64 = vector.broadcast %63 : vector<8x1xf32> to vector<8x512xf32>
    %65 = arith.mulf %60, %64 : vector<8x512xf32>
    %66 = vector.broadcast %32 : vector<8x1xf32> to vector<8x512xf32>
    %67 = arith.mulf %65, %66 : vector<8x512xf32>
    %68 = vector.broadcast %33 : vector<8x1xf32> to vector<8x512xf32>
    %69 = arith.addf %67, %68 : vector<8x512xf32>
    %cst_24 = arith.constant 0.000000e+00 : f32
    %70 = vector.broadcast %cst_24 : f32 to vector<8x512xf32>
    %71 = arith.cmpf oge, %69, %70 : vector<8x512xf32>
    %72 = vector.broadcast %34 : vector<1x1xf32> to vector<8x512xf32>
    %73 = arith.mulf %72, %69 : vector<8x512xf32>
    %74 = arith.select %71, %69, %73 : vector<8x512xi1>, vector<8x512xf32>
    %c73_i32 = arith.constant 73 : i32
    %75 = tpu.dynamic_rotate %74 by %c73_i32 dim 1 : vector<8x512xf32>, i32 -> vector<8x512xf32>
    %c1_i32 = arith.constant 1 : i32
    %76 = vector.broadcast %c1_i32 : i32 to vector<1x512xi32>
    %77 = arith.cmpi sge, %1, %76 : vector<1x512xi32>
    %c1_i32_25 = arith.constant 1 : i32
    %78 = vector.broadcast %c1_i32_25 : i32 to vector<1x512xi32>
    %79 = arith.cmpi sge, %2, %78 : vector<1x512xi32>
    %c1_i32_26 = arith.constant 1 : i32
    %80 = vector.broadcast %c1_i32_26 : i32 to vector<1x512xi32>
    %81 = arith.cmpi sge, %3, %80 : vector<1x512xi32>
    %82 = arith.andi %77, %79 : vector<1x512xi1>
    %83 = arith.andi %82, %81 : vector<1x512xi1>
    %cst_27 = arith.constant 1.000000e+00 : f32
    %cst_28 = arith.constant 0.000000e+00 : f32
    %84 = vector.broadcast %cst_27 : f32 to vector<1x512xf32>
    %85 = vector.broadcast %cst_28 : f32 to vector<1x512xf32>
    %86 = arith.select %83, %84, %85 : vector<1x512xi1>, vector<1x512xf32>
    %87 = vector.broadcast %86 : vector<1x512xf32> to vector<8x512xf32>
    %88 = arith.mulf %75, %87 : vector<8x512xf32>
    %c72_i32 = arith.constant 72 : i32
    %89 = tpu.dynamic_rotate %74 by %c72_i32 dim 1 : vector<8x512xf32>, i32 -> vector<8x512xf32>
    %c1_i32_29 = arith.constant 1 : i32
    %90 = vector.broadcast %c1_i32_29 : i32 to vector<1x512xi32>
    %91 = arith.cmpi sge, %1, %90 : vector<1x512xi32>
    %c1_i32_30 = arith.constant 1 : i32
    %92 = vector.broadcast %c1_i32_30 : i32 to vector<1x512xi32>
    %93 = arith.cmpi sge, %2, %92 : vector<1x512xi32>
    %94 = arith.andi %91, %93 : vector<1x512xi1>
    %cst_31 = arith.constant 1.000000e+00 : f32
    %cst_32 = arith.constant 0.000000e+00 : f32
    %95 = vector.broadcast %cst_31 : f32 to vector<1x512xf32>
    %96 = vector.broadcast %cst_32 : f32 to vector<1x512xf32>
    %97 = arith.select %94, %95, %96 : vector<1x512xi1>, vector<1x512xf32>
    %98 = vector.broadcast %97 : vector<1x512xf32> to vector<8x512xf32>
    %99 = arith.mulf %89, %98 : vector<8x512xf32>
    %c71_i32 = arith.constant 71 : i32
    %100 = tpu.dynamic_rotate %74 by %c71_i32 dim 1 : vector<8x512xf32>, i32 -> vector<8x512xf32>
    %c1_i32_33 = arith.constant 1 : i32
    %101 = vector.broadcast %c1_i32_33 : i32 to vector<1x512xi32>
    %102 = arith.cmpi sge, %1, %101 : vector<1x512xi32>
    %c1_i32_34 = arith.constant 1 : i32
    %103 = vector.broadcast %c1_i32_34 : i32 to vector<1x512xi32>
    %104 = arith.cmpi sge, %2, %103 : vector<1x512xi32>
    %c6_i32 = arith.constant 6 : i32
    %105 = vector.broadcast %c6_i32 : i32 to vector<1x512xi32>
    %106 = arith.cmpi sle, %3, %105 : vector<1x512xi32>
    %107 = arith.andi %102, %104 : vector<1x512xi1>
    %108 = arith.andi %107, %106 : vector<1x512xi1>
    %cst_35 = arith.constant 1.000000e+00 : f32
    %cst_36 = arith.constant 0.000000e+00 : f32
    %109 = vector.broadcast %cst_35 : f32 to vector<1x512xf32>
    %110 = vector.broadcast %cst_36 : f32 to vector<1x512xf32>
    %111 = arith.select %108, %109, %110 : vector<1x512xi1>, vector<1x512xf32>
    %112 = vector.broadcast %111 : vector<1x512xf32> to vector<8x512xf32>
    %113 = arith.mulf %100, %112 : vector<8x512xf32>
    %c65_i32 = arith.constant 65 : i32
    %114 = tpu.dynamic_rotate %74 by %c65_i32 dim 1 : vector<8x512xf32>, i32 -> vector<8x512xf32>
    %c1_i32_37 = arith.constant 1 : i32
    %115 = vector.broadcast %c1_i32_37 : i32 to vector<1x512xi32>
    %116 = arith.cmpi sge, %1, %115 : vector<1x512xi32>
    %c1_i32_38 = arith.constant 1 : i32
    %117 = vector.broadcast %c1_i32_38 : i32 to vector<1x512xi32>
    %118 = arith.cmpi sge, %3, %117 : vector<1x512xi32>
    %119 = arith.andi %116, %118 : vector<1x512xi1>
    %cst_39 = arith.constant 1.000000e+00 : f32
    %cst_40 = arith.constant 0.000000e+00 : f32
    %120 = vector.broadcast %cst_39 : f32 to vector<1x512xf32>
    %121 = vector.broadcast %cst_40 : f32 to vector<1x512xf32>
    %122 = arith.select %119, %120, %121 : vector<1x512xi1>, vector<1x512xf32>
    %123 = vector.broadcast %122 : vector<1x512xf32> to vector<8x512xf32>
    %124 = arith.mulf %114, %123 : vector<8x512xf32>
    %c64_i32 = arith.constant 64 : i32
    %125 = tpu.dynamic_rotate %74 by %c64_i32 dim 1 : vector<8x512xf32>, i32 -> vector<8x512xf32>
    %c1_i32_41 = arith.constant 1 : i32
    %126 = vector.broadcast %c1_i32_41 : i32 to vector<1x512xi32>
    %127 = arith.cmpi sge, %1, %126 : vector<1x512xi32>
    %cst_42 = arith.constant 1.000000e+00 : f32
    %cst_43 = arith.constant 0.000000e+00 : f32
    %128 = vector.broadcast %cst_42 : f32 to vector<1x512xf32>
    %129 = vector.broadcast %cst_43 : f32 to vector<1x512xf32>
    %130 = arith.select %127, %128, %129 : vector<1x512xi1>, vector<1x512xf32>
    %131 = vector.broadcast %130 : vector<1x512xf32> to vector<8x512xf32>
    %132 = arith.mulf %125, %131 : vector<8x512xf32>
    %c63_i32 = arith.constant 63 : i32
    %133 = tpu.dynamic_rotate %74 by %c63_i32 dim 1 : vector<8x512xf32>, i32 -> vector<8x512xf32>
    %c1_i32_44 = arith.constant 1 : i32
    %134 = vector.broadcast %c1_i32_44 : i32 to vector<1x512xi32>
    %135 = arith.cmpi sge, %1, %134 : vector<1x512xi32>
    %c6_i32_45 = arith.constant 6 : i32
    %136 = vector.broadcast %c6_i32_45 : i32 to vector<1x512xi32>
    %137 = arith.cmpi sle, %3, %136 : vector<1x512xi32>
    %138 = arith.andi %135, %137 : vector<1x512xi1>
    %cst_46 = arith.constant 1.000000e+00 : f32
    %cst_47 = arith.constant 0.000000e+00 : f32
    %139 = vector.broadcast %cst_46 : f32 to vector<1x512xf32>
    %140 = vector.broadcast %cst_47 : f32 to vector<1x512xf32>
    %141 = arith.select %138, %139, %140 : vector<1x512xi1>, vector<1x512xf32>
    %142 = vector.broadcast %141 : vector<1x512xf32> to vector<8x512xf32>
    %143 = arith.mulf %133, %142 : vector<8x512xf32>
    %c57_i32 = arith.constant 57 : i32
    %144 = tpu.dynamic_rotate %74 by %c57_i32 dim 1 : vector<8x512xf32>, i32 -> vector<8x512xf32>
    %c1_i32_48 = arith.constant 1 : i32
    %145 = vector.broadcast %c1_i32_48 : i32 to vector<1x512xi32>
    %146 = arith.cmpi sge, %1, %145 : vector<1x512xi32>
    %c6_i32_49 = arith.constant 6 : i32
    %147 = vector.broadcast %c6_i32_49 : i32 to vector<1x512xi32>
    %148 = arith.cmpi sle, %2, %147 : vector<1x512xi32>
    %c1_i32_50 = arith.constant 1 : i32
    %149 = vector.broadcast %c1_i32_50 : i32 to vector<1x512xi32>
    %150 = arith.cmpi sge, %3, %149 : vector<1x512xi32>
    %151 = arith.andi %146, %148 : vector<1x512xi1>
    %152 = arith.andi %151, %150 : vector<1x512xi1>
    %cst_51 = arith.constant 1.000000e+00 : f32
    %cst_52 = arith.constant 0.000000e+00 : f32
    %153 = vector.broadcast %cst_51 : f32 to vector<1x512xf32>
    %154 = vector.broadcast %cst_52 : f32 to vector<1x512xf32>
    %155 = arith.select %152, %153, %154 : vector<1x512xi1>, vector<1x512xf32>
    %156 = vector.broadcast %155 : vector<1x512xf32> to vector<8x512xf32>
    %157 = arith.mulf %144, %156 : vector<8x512xf32>
    %c56_i32 = arith.constant 56 : i32
    %158 = tpu.dynamic_rotate %74 by %c56_i32 dim 1 : vector<8x512xf32>, i32 -> vector<8x512xf32>
    %c1_i32_53 = arith.constant 1 : i32
    %159 = vector.broadcast %c1_i32_53 : i32 to vector<1x512xi32>
    %160 = arith.cmpi sge, %1, %159 : vector<1x512xi32>
    %c6_i32_54 = arith.constant 6 : i32
    %161 = vector.broadcast %c6_i32_54 : i32 to vector<1x512xi32>
    %162 = arith.cmpi sle, %2, %161 : vector<1x512xi32>
    %163 = arith.andi %160, %162 : vector<1x512xi1>
    %cst_55 = arith.constant 1.000000e+00 : f32
    %cst_56 = arith.constant 0.000000e+00 : f32
    %164 = vector.broadcast %cst_55 : f32 to vector<1x512xf32>
    %165 = vector.broadcast %cst_56 : f32 to vector<1x512xf32>
    %166 = arith.select %163, %164, %165 : vector<1x512xi1>, vector<1x512xf32>
    %167 = vector.broadcast %166 : vector<1x512xf32> to vector<8x512xf32>
    %168 = arith.mulf %158, %167 : vector<8x512xf32>
    %c55_i32 = arith.constant 55 : i32
    %169 = tpu.dynamic_rotate %74 by %c55_i32 dim 1 : vector<8x512xf32>, i32 -> vector<8x512xf32>
    %c1_i32_57 = arith.constant 1 : i32
    %170 = vector.broadcast %c1_i32_57 : i32 to vector<1x512xi32>
    %171 = arith.cmpi sge, %1, %170 : vector<1x512xi32>
    %c6_i32_58 = arith.constant 6 : i32
    %172 = vector.broadcast %c6_i32_58 : i32 to vector<1x512xi32>
    %173 = arith.cmpi sle, %2, %172 : vector<1x512xi32>
    %c6_i32_59 = arith.constant 6 : i32
    %174 = vector.broadcast %c6_i32_59 : i32 to vector<1x512xi32>
    %175 = arith.cmpi sle, %3, %174 : vector<1x512xi32>
    %176 = arith.andi %171, %173 : vector<1x512xi1>
    %177 = arith.andi %176, %175 : vector<1x512xi1>
    %cst_60 = arith.constant 1.000000e+00 : f32
    %cst_61 = arith.constant 0.000000e+00 : f32
    %178 = vector.broadcast %cst_60 : f32 to vector<1x512xf32>
    %179 = vector.broadcast %cst_61 : f32 to vector<1x512xf32>
    %180 = arith.select %177, %178, %179 : vector<1x512xi1>, vector<1x512xf32>
    %181 = vector.broadcast %180 : vector<1x512xf32> to vector<8x512xf32>
    %182 = arith.mulf %169, %181 : vector<8x512xf32>
    %c9_i32 = arith.constant 9 : i32
    %183 = tpu.dynamic_rotate %74 by %c9_i32 dim 1 : vector<8x512xf32>, i32 -> vector<8x512xf32>
    %c1_i32_62 = arith.constant 1 : i32
    %184 = vector.broadcast %c1_i32_62 : i32 to vector<1x512xi32>
    %185 = arith.cmpi sge, %2, %184 : vector<1x512xi32>
    %c1_i32_63 = arith.constant 1 : i32
    %186 = vector.broadcast %c1_i32_63 : i32 to vector<1x512xi32>
    %187 = arith.cmpi sge, %3, %186 : vector<1x512xi32>
    %188 = arith.andi %185, %187 : vector<1x512xi1>
    %cst_64 = arith.constant 1.000000e+00 : f32
    %cst_65 = arith.constant 0.000000e+00 : f32
    %189 = vector.broadcast %cst_64 : f32 to vector<1x512xf32>
    %190 = vector.broadcast %cst_65 : f32 to vector<1x512xf32>
    %191 = arith.select %188, %189, %190 : vector<1x512xi1>, vector<1x512xf32>
    %192 = vector.broadcast %191 : vector<1x512xf32> to vector<8x512xf32>
    %193 = arith.mulf %183, %192 : vector<8x512xf32>
    %c8_i32 = arith.constant 8 : i32
    %194 = tpu.dynamic_rotate %74 by %c8_i32 dim 1 : vector<8x512xf32>, i32 -> vector<8x512xf32>
    %c1_i32_66 = arith.constant 1 : i32
    %195 = vector.broadcast %c1_i32_66 : i32 to vector<1x512xi32>
    %196 = arith.cmpi sge, %2, %195 : vector<1x512xi32>
    %cst_67 = arith.constant 1.000000e+00 : f32
    %cst_68 = arith.constant 0.000000e+00 : f32
    %197 = vector.broadcast %cst_67 : f32 to vector<1x512xf32>
    %198 = vector.broadcast %cst_68 : f32 to vector<1x512xf32>
    %199 = arith.select %196, %197, %198 : vector<1x512xi1>, vector<1x512xf32>
    %200 = vector.broadcast %199 : vector<1x512xf32> to vector<8x512xf32>
    %201 = arith.mulf %194, %200 : vector<8x512xf32>
    %c7_i32 = arith.constant 7 : i32
    %202 = tpu.dynamic_rotate %74 by %c7_i32 dim 1 : vector<8x512xf32>, i32 -> vector<8x512xf32>
    %c1_i32_69 = arith.constant 1 : i32
    %203 = vector.broadcast %c1_i32_69 : i32 to vector<1x512xi32>
    %204 = arith.cmpi sge, %2, %203 : vector<1x512xi32>
    %c6_i32_70 = arith.constant 6 : i32
    %205 = vector.broadcast %c6_i32_70 : i32 to vector<1x512xi32>
    %206 = arith.cmpi sle, %3, %205 : vector<1x512xi32>
    %207 = arith.andi %204, %206 : vector<1x512xi1>
    %cst_71 = arith.constant 1.000000e+00 : f32
    %cst_72 = arith.constant 0.000000e+00 : f32
    %208 = vector.broadcast %cst_71 : f32 to vector<1x512xf32>
    %209 = vector.broadcast %cst_72 : f32 to vector<1x512xf32>
    %210 = arith.select %207, %208, %209 : vector<1x512xi1>, vector<1x512xf32>
    %211 = vector.broadcast %210 : vector<1x512xf32> to vector<8x512xf32>
    %212 = arith.mulf %202, %211 : vector<8x512xf32>
    %c1_i32_73 = arith.constant 1 : i32
    %213 = tpu.dynamic_rotate %74 by %c1_i32_73 dim 1 : vector<8x512xf32>, i32 -> vector<8x512xf32>
    %c1_i32_74 = arith.constant 1 : i32
    %214 = vector.broadcast %c1_i32_74 : i32 to vector<1x512xi32>
    %215 = arith.cmpi sge, %3, %214 : vector<1x512xi32>
    %cst_75 = arith.constant 1.000000e+00 : f32
    %cst_76 = arith.constant 0.000000e+00 : f32
    %216 = vector.broadcast %cst_75 : f32 to vector<1x512xf32>
    %217 = vector.broadcast %cst_76 : f32 to vector<1x512xf32>
    %218 = arith.select %215, %216, %217 : vector<1x512xi1>, vector<1x512xf32>
    %219 = vector.broadcast %218 : vector<1x512xf32> to vector<8x512xf32>
    %220 = arith.mulf %213, %219 : vector<8x512xf32>
    %c511_i32 = arith.constant 511 : i32
    %221 = tpu.dynamic_rotate %74 by %c511_i32 dim 1 : vector<8x512xf32>, i32 -> vector<8x512xf32>
    %c6_i32_77 = arith.constant 6 : i32
    %222 = vector.broadcast %c6_i32_77 : i32 to vector<1x512xi32>
    %223 = arith.cmpi sle, %3, %222 : vector<1x512xi32>
    %cst_78 = arith.constant 1.000000e+00 : f32
    %cst_79 = arith.constant 0.000000e+00 : f32
    %224 = vector.broadcast %cst_78 : f32 to vector<1x512xf32>
    %225 = vector.broadcast %cst_79 : f32 to vector<1x512xf32>
    %226 = arith.select %223, %224, %225 : vector<1x512xi1>, vector<1x512xf32>
    %227 = vector.broadcast %226 : vector<1x512xf32> to vector<8x512xf32>
    %228 = arith.mulf %221, %227 : vector<8x512xf32>
    %c505_i32 = arith.constant 505 : i32
    %229 = tpu.dynamic_rotate %74 by %c505_i32 dim 1 : vector<8x512xf32>, i32 -> vector<8x512xf32>
    %c6_i32_80 = arith.constant 6 : i32
    %230 = vector.broadcast %c6_i32_80 : i32 to vector<1x512xi32>
    %231 = arith.cmpi sle, %2, %230 : vector<1x512xi32>
    %c1_i32_81 = arith.constant 1 : i32
    %232 = vector.broadcast %c1_i32_81 : i32 to vector<1x512xi32>
    %233 = arith.cmpi sge, %3, %232 : vector<1x512xi32>
    %234 = arith.andi %231, %233 : vector<1x512xi1>
    %cst_82 = arith.constant 1.000000e+00 : f32
    %cst_83 = arith.constant 0.000000e+00 : f32
    %235 = vector.broadcast %cst_82 : f32 to vector<1x512xf32>
    %236 = vector.broadcast %cst_83 : f32 to vector<1x512xf32>
    %237 = arith.select %234, %235, %236 : vector<1x512xi1>, vector<1x512xf32>
    %238 = vector.broadcast %237 : vector<1x512xf32> to vector<8x512xf32>
    %239 = arith.mulf %229, %238 : vector<8x512xf32>
    %c504_i32 = arith.constant 504 : i32
    %240 = tpu.dynamic_rotate %74 by %c504_i32 dim 1 : vector<8x512xf32>, i32 -> vector<8x512xf32>
    %c6_i32_84 = arith.constant 6 : i32
    %241 = vector.broadcast %c6_i32_84 : i32 to vector<1x512xi32>
    %242 = arith.cmpi sle, %2, %241 : vector<1x512xi32>
    %cst_85 = arith.constant 1.000000e+00 : f32
    %cst_86 = arith.constant 0.000000e+00 : f32
    %243 = vector.broadcast %cst_85 : f32 to vector<1x512xf32>
    %244 = vector.broadcast %cst_86 : f32 to vector<1x512xf32>
    %245 = arith.select %242, %243, %244 : vector<1x512xi1>, vector<1x512xf32>
    %246 = vector.broadcast %245 : vector<1x512xf32> to vector<8x512xf32>
    %247 = arith.mulf %240, %246 : vector<8x512xf32>
    %c503_i32 = arith.constant 503 : i32
    %248 = tpu.dynamic_rotate %74 by %c503_i32 dim 1 : vector<8x512xf32>, i32 -> vector<8x512xf32>
    %c6_i32_87 = arith.constant 6 : i32
    %249 = vector.broadcast %c6_i32_87 : i32 to vector<1x512xi32>
    %250 = arith.cmpi sle, %2, %249 : vector<1x512xi32>
    %c6_i32_88 = arith.constant 6 : i32
    %251 = vector.broadcast %c6_i32_88 : i32 to vector<1x512xi32>
    %252 = arith.cmpi sle, %3, %251 : vector<1x512xi32>
    %253 = arith.andi %250, %252 : vector<1x512xi1>
    %cst_89 = arith.constant 1.000000e+00 : f32
    %cst_90 = arith.constant 0.000000e+00 : f32
    %254 = vector.broadcast %cst_89 : f32 to vector<1x512xf32>
    %255 = vector.broadcast %cst_90 : f32 to vector<1x512xf32>
    %256 = arith.select %253, %254, %255 : vector<1x512xi1>, vector<1x512xf32>
    %257 = vector.broadcast %256 : vector<1x512xf32> to vector<8x512xf32>
    %258 = arith.mulf %248, %257 : vector<8x512xf32>
    %c457_i32 = arith.constant 457 : i32
    %259 = tpu.dynamic_rotate %74 by %c457_i32 dim 1 : vector<8x512xf32>, i32 -> vector<8x512xf32>
    %c6_i32_91 = arith.constant 6 : i32
    %260 = vector.broadcast %c6_i32_91 : i32 to vector<1x512xi32>
    %261 = arith.cmpi sle, %1, %260 : vector<1x512xi32>
    %c1_i32_92 = arith.constant 1 : i32
    %262 = vector.broadcast %c1_i32_92 : i32 to vector<1x512xi32>
    %263 = arith.cmpi sge, %2, %262 : vector<1x512xi32>
    %c1_i32_93 = arith.constant 1 : i32
    %264 = vector.broadcast %c1_i32_93 : i32 to vector<1x512xi32>
    %265 = arith.cmpi sge, %3, %264 : vector<1x512xi32>
    %266 = arith.andi %261, %263 : vector<1x512xi1>
    %267 = arith.andi %266, %265 : vector<1x512xi1>
    %cst_94 = arith.constant 1.000000e+00 : f32
    %cst_95 = arith.constant 0.000000e+00 : f32
    %268 = vector.broadcast %cst_94 : f32 to vector<1x512xf32>
    %269 = vector.broadcast %cst_95 : f32 to vector<1x512xf32>
    %270 = arith.select %267, %268, %269 : vector<1x512xi1>, vector<1x512xf32>
    %271 = vector.broadcast %270 : vector<1x512xf32> to vector<8x512xf32>
    %272 = arith.mulf %259, %271 : vector<8x512xf32>
    %c456_i32 = arith.constant 456 : i32
    %273 = tpu.dynamic_rotate %74 by %c456_i32 dim 1 : vector<8x512xf32>, i32 -> vector<8x512xf32>
    %c6_i32_96 = arith.constant 6 : i32
    %274 = vector.broadcast %c6_i32_96 : i32 to vector<1x512xi32>
    %275 = arith.cmpi sle, %1, %274 : vector<1x512xi32>
    %c1_i32_97 = arith.constant 1 : i32
    %276 = vector.broadcast %c1_i32_97 : i32 to vector<1x512xi32>
    %277 = arith.cmpi sge, %2, %276 : vector<1x512xi32>
    %278 = arith.andi %275, %277 : vector<1x512xi1>
    %cst_98 = arith.constant 1.000000e+00 : f32
    %cst_99 = arith.constant 0.000000e+00 : f32
    %279 = vector.broadcast %cst_98 : f32 to vector<1x512xf32>
    %280 = vector.broadcast %cst_99 : f32 to vector<1x512xf32>
    %281 = arith.select %278, %279, %280 : vector<1x512xi1>, vector<1x512xf32>
    %282 = vector.broadcast %281 : vector<1x512xf32> to vector<8x512xf32>
    %283 = arith.mulf %273, %282 : vector<8x512xf32>
    %c455_i32 = arith.constant 455 : i32
    %284 = tpu.dynamic_rotate %74 by %c455_i32 dim 1 : vector<8x512xf32>, i32 -> vector<8x512xf32>
    %c6_i32_100 = arith.constant 6 : i32
    %285 = vector.broadcast %c6_i32_100 : i32 to vector<1x512xi32>
    %286 = arith.cmpi sle, %1, %285 : vector<1x512xi32>
    %c1_i32_101 = arith.constant 1 : i32
    %287 = vector.broadcast %c1_i32_101 : i32 to vector<1x512xi32>
    %288 = arith.cmpi sge, %2, %287 : vector<1x512xi32>
    %c6_i32_102 = arith.constant 6 : i32
    %289 = vector.broadcast %c6_i32_102 : i32 to vector<1x512xi32>
    %290 = arith.cmpi sle, %3, %289 : vector<1x512xi32>
    %291 = arith.andi %286, %288 : vector<1x512xi1>
    %292 = arith.andi %291, %290 : vector<1x512xi1>
    %cst_103 = arith.constant 1.000000e+00 : f32
    %cst_104 = arith.constant 0.000000e+00 : f32
    %293 = vector.broadcast %cst_103 : f32 to vector<1x512xf32>
    %294 = vector.broadcast %cst_104 : f32 to vector<1x512xf32>
    %295 = arith.select %292, %293, %294 : vector<1x512xi1>, vector<1x512xf32>
    %296 = vector.broadcast %295 : vector<1x512xf32> to vector<8x512xf32>
    %297 = arith.mulf %284, %296 : vector<8x512xf32>
    %c449_i32 = arith.constant 449 : i32
    %298 = tpu.dynamic_rotate %74 by %c449_i32 dim 1 : vector<8x512xf32>, i32 -> vector<8x512xf32>
    %c6_i32_105 = arith.constant 6 : i32
    %299 = vector.broadcast %c6_i32_105 : i32 to vector<1x512xi32>
    %300 = arith.cmpi sle, %1, %299 : vector<1x512xi32>
    %c1_i32_106 = arith.constant 1 : i32
    %301 = vector.broadcast %c1_i32_106 : i32 to vector<1x512xi32>
    %302 = arith.cmpi sge, %3, %301 : vector<1x512xi32>
    %303 = arith.andi %300, %302 : vector<1x512xi1>
    %cst_107 = arith.constant 1.000000e+00 : f32
    %cst_108 = arith.constant 0.000000e+00 : f32
    %304 = vector.broadcast %cst_107 : f32 to vector<1x512xf32>
    %305 = vector.broadcast %cst_108 : f32 to vector<1x512xf32>
    %306 = arith.select %303, %304, %305 : vector<1x512xi1>, vector<1x512xf32>
    %307 = vector.broadcast %306 : vector<1x512xf32> to vector<8x512xf32>
    %308 = arith.mulf %298, %307 : vector<8x512xf32>
    %c448_i32 = arith.constant 448 : i32
    %309 = tpu.dynamic_rotate %74 by %c448_i32 dim 1 : vector<8x512xf32>, i32 -> vector<8x512xf32>
    %c6_i32_109 = arith.constant 6 : i32
    %310 = vector.broadcast %c6_i32_109 : i32 to vector<1x512xi32>
    %311 = arith.cmpi sle, %1, %310 : vector<1x512xi32>
    %cst_110 = arith.constant 1.000000e+00 : f32
    %cst_111 = arith.constant 0.000000e+00 : f32
    %312 = vector.broadcast %cst_110 : f32 to vector<1x512xf32>
    %313 = vector.broadcast %cst_111 : f32 to vector<1x512xf32>
    %314 = arith.select %311, %312, %313 : vector<1x512xi1>, vector<1x512xf32>
    %315 = vector.broadcast %314 : vector<1x512xf32> to vector<8x512xf32>
    %316 = arith.mulf %309, %315 : vector<8x512xf32>
    %c447_i32 = arith.constant 447 : i32
    %317 = tpu.dynamic_rotate %74 by %c447_i32 dim 1 : vector<8x512xf32>, i32 -> vector<8x512xf32>
    %c6_i32_112 = arith.constant 6 : i32
    %318 = vector.broadcast %c6_i32_112 : i32 to vector<1x512xi32>
    %319 = arith.cmpi sle, %1, %318 : vector<1x512xi32>
    %c6_i32_113 = arith.constant 6 : i32
    %320 = vector.broadcast %c6_i32_113 : i32 to vector<1x512xi32>
    %321 = arith.cmpi sle, %3, %320 : vector<1x512xi32>
    %322 = arith.andi %319, %321 : vector<1x512xi1>
    %cst_114 = arith.constant 1.000000e+00 : f32
    %cst_115 = arith.constant 0.000000e+00 : f32
    %323 = vector.broadcast %cst_114 : f32 to vector<1x512xf32>
    %324 = vector.broadcast %cst_115 : f32 to vector<1x512xf32>
    %325 = arith.select %322, %323, %324 : vector<1x512xi1>, vector<1x512xf32>
    %326 = vector.broadcast %325 : vector<1x512xf32> to vector<8x512xf32>
    %327 = arith.mulf %317, %326 : vector<8x512xf32>
    %c441_i32 = arith.constant 441 : i32
    %328 = tpu.dynamic_rotate %74 by %c441_i32 dim 1 : vector<8x512xf32>, i32 -> vector<8x512xf32>
    %c6_i32_116 = arith.constant 6 : i32
    %329 = vector.broadcast %c6_i32_116 : i32 to vector<1x512xi32>
    %330 = arith.cmpi sle, %1, %329 : vector<1x512xi32>
    %c6_i32_117 = arith.constant 6 : i32
    %331 = vector.broadcast %c6_i32_117 : i32 to vector<1x512xi32>
    %332 = arith.cmpi sle, %2, %331 : vector<1x512xi32>
    %c1_i32_118 = arith.constant 1 : i32
    %333 = vector.broadcast %c1_i32_118 : i32 to vector<1x512xi32>
    %334 = arith.cmpi sge, %3, %333 : vector<1x512xi32>
    %335 = arith.andi %330, %332 : vector<1x512xi1>
    %336 = arith.andi %335, %334 : vector<1x512xi1>
    %cst_119 = arith.constant 1.000000e+00 : f32
    %cst_120 = arith.constant 0.000000e+00 : f32
    %337 = vector.broadcast %cst_119 : f32 to vector<1x512xf32>
    %338 = vector.broadcast %cst_120 : f32 to vector<1x512xf32>
    %339 = arith.select %336, %337, %338 : vector<1x512xi1>, vector<1x512xf32>
    %340 = vector.broadcast %339 : vector<1x512xf32> to vector<8x512xf32>
    %341 = arith.mulf %328, %340 : vector<8x512xf32>
    %c440_i32 = arith.constant 440 : i32
    %342 = tpu.dynamic_rotate %74 by %c440_i32 dim 1 : vector<8x512xf32>, i32 -> vector<8x512xf32>
    %c6_i32_121 = arith.constant 6 : i32
    %343 = vector.broadcast %c6_i32_121 : i32 to vector<1x512xi32>
    %344 = arith.cmpi sle, %1, %343 : vector<1x512xi32>
    %c6_i32_122 = arith.constant 6 : i32
    %345 = vector.broadcast %c6_i32_122 : i32 to vector<1x512xi32>
    %346 = arith.cmpi sle, %2, %345 : vector<1x512xi32>
    %347 = arith.andi %344, %346 : vector<1x512xi1>
    %cst_123 = arith.constant 1.000000e+00 : f32
    %cst_124 = arith.constant 0.000000e+00 : f32
    %348 = vector.broadcast %cst_123 : f32 to vector<1x512xf32>
    %349 = vector.broadcast %cst_124 : f32 to vector<1x512xf32>
    %350 = arith.select %347, %348, %349 : vector<1x512xi1>, vector<1x512xf32>
    %351 = vector.broadcast %350 : vector<1x512xf32> to vector<8x512xf32>
    %352 = arith.mulf %342, %351 : vector<8x512xf32>
    %c439_i32 = arith.constant 439 : i32
    %353 = tpu.dynamic_rotate %74 by %c439_i32 dim 1 : vector<8x512xf32>, i32 -> vector<8x512xf32>
    %c6_i32_125 = arith.constant 6 : i32
    %354 = vector.broadcast %c6_i32_125 : i32 to vector<1x512xi32>
    %355 = arith.cmpi sle, %1, %354 : vector<1x512xi32>
    %c6_i32_126 = arith.constant 6 : i32
    %356 = vector.broadcast %c6_i32_126 : i32 to vector<1x512xi32>
    %357 = arith.cmpi sle, %2, %356 : vector<1x512xi32>
    %c6_i32_127 = arith.constant 6 : i32
    %358 = vector.broadcast %c6_i32_127 : i32 to vector<1x512xi32>
    %359 = arith.cmpi sle, %3, %358 : vector<1x512xi32>
    %360 = arith.andi %355, %357 : vector<1x512xi1>
    %361 = arith.andi %360, %359 : vector<1x512xi1>
    %cst_128 = arith.constant 1.000000e+00 : f32
    %cst_129 = arith.constant 0.000000e+00 : f32
    %362 = vector.broadcast %cst_128 : f32 to vector<1x512xf32>
    %363 = vector.broadcast %cst_129 : f32 to vector<1x512xf32>
    %364 = arith.select %361, %362, %363 : vector<1x512xi1>, vector<1x512xf32>
    %365 = vector.broadcast %364 : vector<1x512xf32> to vector<8x512xf32>
    %366 = arith.mulf %353, %365 : vector<8x512xf32>
    %cst_130 = arith.constant 0.000000e+00 : f32
    %367 = vector.broadcast %cst_130 : f32 to vector<40x512xf32>
    %368 = tpu.concatenate %88, %99, %113, %124, %132, %143, %157, %168, %182, %193, %201, %212, %220, %74, %228, %239 in 0 : vector<8x512xf32>, vector<8x512xf32>, vector<8x512xf32>, vector<8x512xf32>, vector<8x512xf32>, vector<8x512xf32>, vector<8x512xf32>, vector<8x512xf32>, vector<8x512xf32>, vector<8x512xf32>, vector<8x512xf32>, vector<8x512xf32>, vector<8x512xf32>, vector<8x512xf32>, vector<8x512xf32>, vector<8x512xf32> -> vector<128x512xf32>
    %369 = tpu.concatenate %247, %258, %272, %283, %297, %308, %316, %327, %341, %352, %366, %367 in 0 : vector<8x512xf32>, vector<8x512xf32>, vector<8x512xf32>, vector<8x512xf32>, vector<8x512xf32>, vector<8x512xf32>, vector<8x512xf32>, vector<8x512xf32>, vector<8x512xf32>, vector<8x512xf32>, vector<8x512xf32>, vector<40x512xf32> -> vector<128x512xf32>
    %370 = tpu.concatenate %368, %369 in 0 : vector<128x512xf32>, vector<128x512xf32> -> vector<256x512xf32>
    %c0_131 = arith.constant 0 : index
    %c0_132 = arith.constant 0 : index
    %371 = vector.load %arg5[%c0_131, %c0_132] : memref<8x256xf32, #tpu.memory_space<vmem>>, vector<8x256xf32>
    %cst_133 = arith.constant dense<0.000000e+00> : vector<8x512xf32>
    %372 = tpu.matmul %371, %370, %cst_133 {dimension_numbers = #tpu.dot_dimension_numbers<[1], [0], [0], [1], [0, 0, 1, 1], [], []>} : vector<8x256xf32>, vector<256x512xf32>, vector<8x512xf32> -> vector<8x512xf32>
    %373 = vector.extract_strided_slice %0 {offsets = [0, 3], sizes = [8, 1], strides = [1, 1]} : vector<16x16xf32> to vector<8x1xf32>
    %374 = vector.broadcast %373 : vector<8x1xf32> to vector<8x512xf32>
    %375 = arith.addf %372, %374 : vector<8x512xf32>
    %376 = vector.extract_strided_slice %0 {offsets = [0, 4], sizes = [8, 1], strides = [1, 1]} : vector<16x16xf32> to vector<8x1xf32>
    %377 = vector.extract_strided_slice %0 {offsets = [0, 5], sizes = [8, 1], strides = [1, 1]} : vector<16x16xf32> to vector<8x1xf32>
    %378 = vector.extract_strided_slice %0 {offsets = [1, 14], sizes = [1, 1], strides = [1, 1]} : vector<16x16xf32> to vector<1x1xf32>
    %cst_134 = arith.constant dense<0.000000e+00> : vector<8xf32>
    %379 = vector.multi_reduction <add>, %375, %cst_134 [1] : vector<8x512xf32> to vector<8xf32>
    %380 = vector.shape_cast %379 : vector<8xf32> to vector<8x1xf32>
    %381 = arith.mulf %375, %375 : vector<8x512xf32>
    %cst_135 = arith.constant dense<0.000000e+00> : vector<8xf32>
    %382 = vector.multi_reduction <add>, %381, %cst_135 [1] : vector<8x512xf32> to vector<8xf32>
    %383 = vector.shape_cast %382 : vector<8xf32> to vector<8x1xf32>
    %384 = tpu.iota {dimensions = array<i32: 1>} : vector<8x2xi32>
    %c0_i32_136 = arith.constant 0 : i32
    %385 = vector.broadcast %c0_i32_136 : i32 to vector<8x2xi32>
    %386 = arith.cmpi eq, %384, %385 : vector<8x2xi32>
    %387 = vector.shape_cast %380 : vector<8x1xf32> to vector<8x1xf32>
    %388 = vector.broadcast %387 : vector<8x1xf32> to vector<8x2xf32>
    %389 = vector.shape_cast %383 : vector<8x1xf32> to vector<8x1xf32>
    %390 = vector.broadcast %389 : vector<8x1xf32> to vector<8x2xf32>
    %391 = arith.select %386, %388, %390 : vector<8x2xi1>, vector<8x2xf32>
    %cst_137 = arith.constant dense<0.000000e+00> : vector<8x2xf32>
    %392 = tpu.matmul %14, %391, %cst_137 {dimension_numbers = #tpu.dot_dimension_numbers<[1], [0], [0], [1], [0, 0, 1, 1], [], []>} : vector<8x8xf32>, vector<8x2xf32>, vector<8x2xf32> -> vector<8x2xf32>
    %393 = vector.extract_strided_slice %392 {offsets = [0, 0], sizes = [8, 1], strides = [1, 1]} : vector<8x2xf32> to vector<8x1xf32>
    %cst_138 = arith.constant 9.765625E-4 : f32
    %394 = vector.broadcast %cst_138 : f32 to vector<8x1xf32>
    %395 = arith.mulf %393, %394 : vector<8x1xf32>
    %396 = vector.extract_strided_slice %392 {offsets = [0, 1], sizes = [8, 1], strides = [1, 1]} : vector<8x2xf32> to vector<8x1xf32>
    %cst_139 = arith.constant 9.765625E-4 : f32
    %397 = vector.broadcast %cst_139 : f32 to vector<8x1xf32>
    %398 = arith.mulf %396, %397 : vector<8x1xf32>
    %399 = arith.mulf %395, %395 : vector<8x1xf32>
    %400 = arith.subf %398, %399 : vector<8x1xf32>
    %cst_140 = arith.constant 0.000000e+00 : f32
    %401 = vector.broadcast %cst_140 : f32 to vector<8x1xf32>
    %402 = arith.maximumf %400, %401 : vector<8x1xf32>
    %403 = vector.broadcast %395 : vector<8x1xf32> to vector<8x512xf32>
    %404 = arith.subf %375, %403 : vector<8x512xf32>
    %cst_141 = arith.constant 9.99999974E-6 : f32
    %405 = vector.broadcast %cst_141 : f32 to vector<8x1xf32>
    %406 = arith.addf %402, %405 : vector<8x1xf32>
    %407 = math.rsqrt %406 : vector<8x1xf32>
    %408 = vector.broadcast %407 : vector<8x1xf32> to vector<8x512xf32>
    %409 = arith.mulf %404, %408 : vector<8x512xf32>
    %410 = vector.broadcast %376 : vector<8x1xf32> to vector<8x512xf32>
    %411 = arith.mulf %409, %410 : vector<8x512xf32>
    %412 = vector.broadcast %377 : vector<8x1xf32> to vector<8x512xf32>
    %413 = arith.addf %411, %412 : vector<8x512xf32>
    %cst_142 = arith.constant 0.000000e+00 : f32
    %414 = vector.broadcast %cst_142 : f32 to vector<8x512xf32>
    %415 = arith.cmpf oge, %413, %414 : vector<8x512xf32>
    %416 = vector.broadcast %378 : vector<1x1xf32> to vector<8x512xf32>
    %417 = arith.mulf %416, %413 : vector<8x512xf32>
    %418 = arith.select %415, %413, %417 : vector<8x512xi1>, vector<8x512xf32>
    %c73_i32_143 = arith.constant 73 : i32
    %419 = tpu.dynamic_rotate %418 by %c73_i32_143 dim 1 : vector<8x512xf32>, i32 -> vector<8x512xf32>
    %c1_i32_144 = arith.constant 1 : i32
    %420 = vector.broadcast %c1_i32_144 : i32 to vector<1x512xi32>
    %421 = arith.cmpi sge, %1, %420 : vector<1x512xi32>
    %c1_i32_145 = arith.constant 1 : i32
    %422 = vector.broadcast %c1_i32_145 : i32 to vector<1x512xi32>
    %423 = arith.cmpi sge, %2, %422 : vector<1x512xi32>
    %c1_i32_146 = arith.constant 1 : i32
    %424 = vector.broadcast %c1_i32_146 : i32 to vector<1x512xi32>
    %425 = arith.cmpi sge, %3, %424 : vector<1x512xi32>
    %426 = arith.andi %421, %423 : vector<1x512xi1>
    %427 = arith.andi %426, %425 : vector<1x512xi1>
    %cst_147 = arith.constant 1.000000e+00 : f32
    %cst_148 = arith.constant 0.000000e+00 : f32
    %428 = vector.broadcast %cst_147 : f32 to vector<1x512xf32>
    %429 = vector.broadcast %cst_148 : f32 to vector<1x512xf32>
    %430 = arith.select %427, %428, %429 : vector<1x512xi1>, vector<1x512xf32>
    %431 = vector.broadcast %430 : vector<1x512xf32> to vector<8x512xf32>
    %432 = arith.mulf %419, %431 : vector<8x512xf32>
    %c72_i32_149 = arith.constant 72 : i32
    %433 = tpu.dynamic_rotate %418 by %c72_i32_149 dim 1 : vector<8x512xf32>, i32 -> vector<8x512xf32>
    %c1_i32_150 = arith.constant 1 : i32
    %434 = vector.broadcast %c1_i32_150 : i32 to vector<1x512xi32>
    %435 = arith.cmpi sge, %1, %434 : vector<1x512xi32>
    %c1_i32_151 = arith.constant 1 : i32
    %436 = vector.broadcast %c1_i32_151 : i32 to vector<1x512xi32>
    %437 = arith.cmpi sge, %2, %436 : vector<1x512xi32>
    %438 = arith.andi %435, %437 : vector<1x512xi1>
    %cst_152 = arith.constant 1.000000e+00 : f32
    %cst_153 = arith.constant 0.000000e+00 : f32
    %439 = vector.broadcast %cst_152 : f32 to vector<1x512xf32>
    %440 = vector.broadcast %cst_153 : f32 to vector<1x512xf32>
    %441 = arith.select %438, %439, %440 : vector<1x512xi1>, vector<1x512xf32>
    %442 = vector.broadcast %441 : vector<1x512xf32> to vector<8x512xf32>
    %443 = arith.mulf %433, %442 : vector<8x512xf32>
    %c71_i32_154 = arith.constant 71 : i32
    %444 = tpu.dynamic_rotate %418 by %c71_i32_154 dim 1 : vector<8x512xf32>, i32 -> vector<8x512xf32>
    %c1_i32_155 = arith.constant 1 : i32
    %445 = vector.broadcast %c1_i32_155 : i32 to vector<1x512xi32>
    %446 = arith.cmpi sge, %1, %445 : vector<1x512xi32>
    %c1_i32_156 = arith.constant 1 : i32
    %447 = vector.broadcast %c1_i32_156 : i32 to vector<1x512xi32>
    %448 = arith.cmpi sge, %2, %447 : vector<1x512xi32>
    %c6_i32_157 = arith.constant 6 : i32
    %449 = vector.broadcast %c6_i32_157 : i32 to vector<1x512xi32>
    %450 = arith.cmpi sle, %3, %449 : vector<1x512xi32>
    %451 = arith.andi %446, %448 : vector<1x512xi1>
    %452 = arith.andi %451, %450 : vector<1x512xi1>
    %cst_158 = arith.constant 1.000000e+00 : f32
    %cst_159 = arith.constant 0.000000e+00 : f32
    %453 = vector.broadcast %cst_158 : f32 to vector<1x512xf32>
    %454 = vector.broadcast %cst_159 : f32 to vector<1x512xf32>
    %455 = arith.select %452, %453, %454 : vector<1x512xi1>, vector<1x512xf32>
    %456 = vector.broadcast %455 : vector<1x512xf32> to vector<8x512xf32>
    %457 = arith.mulf %444, %456 : vector<8x512xf32>
    %c65_i32_160 = arith.constant 65 : i32
    %458 = tpu.dynamic_rotate %418 by %c65_i32_160 dim 1 : vector<8x512xf32>, i32 -> vector<8x512xf32>
    %c1_i32_161 = arith.constant 1 : i32
    %459 = vector.broadcast %c1_i32_161 : i32 to vector<1x512xi32>
    %460 = arith.cmpi sge, %1, %459 : vector<1x512xi32>
    %c1_i32_162 = arith.constant 1 : i32
    %461 = vector.broadcast %c1_i32_162 : i32 to vector<1x512xi32>
    %462 = arith.cmpi sge, %3, %461 : vector<1x512xi32>
    %463 = arith.andi %460, %462 : vector<1x512xi1>
    %cst_163 = arith.constant 1.000000e+00 : f32
    %cst_164 = arith.constant 0.000000e+00 : f32
    %464 = vector.broadcast %cst_163 : f32 to vector<1x512xf32>
    %465 = vector.broadcast %cst_164 : f32 to vector<1x512xf32>
    %466 = arith.select %463, %464, %465 : vector<1x512xi1>, vector<1x512xf32>
    %467 = vector.broadcast %466 : vector<1x512xf32> to vector<8x512xf32>
    %468 = arith.mulf %458, %467 : vector<8x512xf32>
    %c64_i32_165 = arith.constant 64 : i32
    %469 = tpu.dynamic_rotate %418 by %c64_i32_165 dim 1 : vector<8x512xf32>, i32 -> vector<8x512xf32>
    %c1_i32_166 = arith.constant 1 : i32
    %470 = vector.broadcast %c1_i32_166 : i32 to vector<1x512xi32>
    %471 = arith.cmpi sge, %1, %470 : vector<1x512xi32>
    %cst_167 = arith.constant 1.000000e+00 : f32
    %cst_168 = arith.constant 0.000000e+00 : f32
    %472 = vector.broadcast %cst_167 : f32 to vector<1x512xf32>
    %473 = vector.broadcast %cst_168 : f32 to vector<1x512xf32>
    %474 = arith.select %471, %472, %473 : vector<1x512xi1>, vector<1x512xf32>
    %475 = vector.broadcast %474 : vector<1x512xf32> to vector<8x512xf32>
    %476 = arith.mulf %469, %475 : vector<8x512xf32>
    %c63_i32_169 = arith.constant 63 : i32
    %477 = tpu.dynamic_rotate %418 by %c63_i32_169 dim 1 : vector<8x512xf32>, i32 -> vector<8x512xf32>
    %c1_i32_170 = arith.constant 1 : i32
    %478 = vector.broadcast %c1_i32_170 : i32 to vector<1x512xi32>
    %479 = arith.cmpi sge, %1, %478 : vector<1x512xi32>
    %c6_i32_171 = arith.constant 6 : i32
    %480 = vector.broadcast %c6_i32_171 : i32 to vector<1x512xi32>
    %481 = arith.cmpi sle, %3, %480 : vector<1x512xi32>
    %482 = arith.andi %479, %481 : vector<1x512xi1>
    %cst_172 = arith.constant 1.000000e+00 : f32
    %cst_173 = arith.constant 0.000000e+00 : f32
    %483 = vector.broadcast %cst_172 : f32 to vector<1x512xf32>
    %484 = vector.broadcast %cst_173 : f32 to vector<1x512xf32>
    %485 = arith.select %482, %483, %484 : vector<1x512xi1>, vector<1x512xf32>
    %486 = vector.broadcast %485 : vector<1x512xf32> to vector<8x512xf32>
    %487 = arith.mulf %477, %486 : vector<8x512xf32>
    %c57_i32_174 = arith.constant 57 : i32
    %488 = tpu.dynamic_rotate %418 by %c57_i32_174 dim 1 : vector<8x512xf32>, i32 -> vector<8x512xf32>
    %c1_i32_175 = arith.constant 1 : i32
    %489 = vector.broadcast %c1_i32_175 : i32 to vector<1x512xi32>
    %490 = arith.cmpi sge, %1, %489 : vector<1x512xi32>
    %c6_i32_176 = arith.constant 6 : i32
    %491 = vector.broadcast %c6_i32_176 : i32 to vector<1x512xi32>
    %492 = arith.cmpi sle, %2, %491 : vector<1x512xi32>
    %c1_i32_177 = arith.constant 1 : i32
    %493 = vector.broadcast %c1_i32_177 : i32 to vector<1x512xi32>
    %494 = arith.cmpi sge, %3, %493 : vector<1x512xi32>
    %495 = arith.andi %490, %492 : vector<1x512xi1>
    %496 = arith.andi %495, %494 : vector<1x512xi1>
    %cst_178 = arith.constant 1.000000e+00 : f32
    %cst_179 = arith.constant 0.000000e+00 : f32
    %497 = vector.broadcast %cst_178 : f32 to vector<1x512xf32>
    %498 = vector.broadcast %cst_179 : f32 to vector<1x512xf32>
    %499 = arith.select %496, %497, %498 : vector<1x512xi1>, vector<1x512xf32>
    %500 = vector.broadcast %499 : vector<1x512xf32> to vector<8x512xf32>
    %501 = arith.mulf %488, %500 : vector<8x512xf32>
    %c56_i32_180 = arith.constant 56 : i32
    %502 = tpu.dynamic_rotate %418 by %c56_i32_180 dim 1 : vector<8x512xf32>, i32 -> vector<8x512xf32>
    %c1_i32_181 = arith.constant 1 : i32
    %503 = vector.broadcast %c1_i32_181 : i32 to vector<1x512xi32>
    %504 = arith.cmpi sge, %1, %503 : vector<1x512xi32>
    %c6_i32_182 = arith.constant 6 : i32
    %505 = vector.broadcast %c6_i32_182 : i32 to vector<1x512xi32>
    %506 = arith.cmpi sle, %2, %505 : vector<1x512xi32>
    %507 = arith.andi %504, %506 : vector<1x512xi1>
    %cst_183 = arith.constant 1.000000e+00 : f32
    %cst_184 = arith.constant 0.000000e+00 : f32
    %508 = vector.broadcast %cst_183 : f32 to vector<1x512xf32>
    %509 = vector.broadcast %cst_184 : f32 to vector<1x512xf32>
    %510 = arith.select %507, %508, %509 : vector<1x512xi1>, vector<1x512xf32>
    %511 = vector.broadcast %510 : vector<1x512xf32> to vector<8x512xf32>
    %512 = arith.mulf %502, %511 : vector<8x512xf32>
    %c55_i32_185 = arith.constant 55 : i32
    %513 = tpu.dynamic_rotate %418 by %c55_i32_185 dim 1 : vector<8x512xf32>, i32 -> vector<8x512xf32>
    %c1_i32_186 = arith.constant 1 : i32
    %514 = vector.broadcast %c1_i32_186 : i32 to vector<1x512xi32>
    %515 = arith.cmpi sge, %1, %514 : vector<1x512xi32>
    %c6_i32_187 = arith.constant 6 : i32
    %516 = vector.broadcast %c6_i32_187 : i32 to vector<1x512xi32>
    %517 = arith.cmpi sle, %2, %516 : vector<1x512xi32>
    %c6_i32_188 = arith.constant 6 : i32
    %518 = vector.broadcast %c6_i32_188 : i32 to vector<1x512xi32>
    %519 = arith.cmpi sle, %3, %518 : vector<1x512xi32>
    %520 = arith.andi %515, %517 : vector<1x512xi1>
    %521 = arith.andi %520, %519 : vector<1x512xi1>
    %cst_189 = arith.constant 1.000000e+00 : f32
    %cst_190 = arith.constant 0.000000e+00 : f32
    %522 = vector.broadcast %cst_189 : f32 to vector<1x512xf32>
    %523 = vector.broadcast %cst_190 : f32 to vector<1x512xf32>
    %524 = arith.select %521, %522, %523 : vector<1x512xi1>, vector<1x512xf32>
    %525 = vector.broadcast %524 : vector<1x512xf32> to vector<8x512xf32>
    %526 = arith.mulf %513, %525 : vector<8x512xf32>
    %c9_i32_191 = arith.constant 9 : i32
    %527 = tpu.dynamic_rotate %418 by %c9_i32_191 dim 1 : vector<8x512xf32>, i32 -> vector<8x512xf32>
    %c1_i32_192 = arith.constant 1 : i32
    %528 = vector.broadcast %c1_i32_192 : i32 to vector<1x512xi32>
    %529 = arith.cmpi sge, %2, %528 : vector<1x512xi32>
    %c1_i32_193 = arith.constant 1 : i32
    %530 = vector.broadcast %c1_i32_193 : i32 to vector<1x512xi32>
    %531 = arith.cmpi sge, %3, %530 : vector<1x512xi32>
    %532 = arith.andi %529, %531 : vector<1x512xi1>
    %cst_194 = arith.constant 1.000000e+00 : f32
    %cst_195 = arith.constant 0.000000e+00 : f32
    %533 = vector.broadcast %cst_194 : f32 to vector<1x512xf32>
    %534 = vector.broadcast %cst_195 : f32 to vector<1x512xf32>
    %535 = arith.select %532, %533, %534 : vector<1x512xi1>, vector<1x512xf32>
    %536 = vector.broadcast %535 : vector<1x512xf32> to vector<8x512xf32>
    %537 = arith.mulf %527, %536 : vector<8x512xf32>
    %c8_i32_196 = arith.constant 8 : i32
    %538 = tpu.dynamic_rotate %418 by %c8_i32_196 dim 1 : vector<8x512xf32>, i32 -> vector<8x512xf32>
    %c1_i32_197 = arith.constant 1 : i32
    %539 = vector.broadcast %c1_i32_197 : i32 to vector<1x512xi32>
    %540 = arith.cmpi sge, %2, %539 : vector<1x512xi32>
    %cst_198 = arith.constant 1.000000e+00 : f32
    %cst_199 = arith.constant 0.000000e+00 : f32
    %541 = vector.broadcast %cst_198 : f32 to vector<1x512xf32>
    %542 = vector.broadcast %cst_199 : f32 to vector<1x512xf32>
    %543 = arith.select %540, %541, %542 : vector<1x512xi1>, vector<1x512xf32>
    %544 = vector.broadcast %543 : vector<1x512xf32> to vector<8x512xf32>
    %545 = arith.mulf %538, %544 : vector<8x512xf32>
    %c7_i32_200 = arith.constant 7 : i32
    %546 = tpu.dynamic_rotate %418 by %c7_i32_200 dim 1 : vector<8x512xf32>, i32 -> vector<8x512xf32>
    %c1_i32_201 = arith.constant 1 : i32
    %547 = vector.broadcast %c1_i32_201 : i32 to vector<1x512xi32>
    %548 = arith.cmpi sge, %2, %547 : vector<1x512xi32>
    %c6_i32_202 = arith.constant 6 : i32
    %549 = vector.broadcast %c6_i32_202 : i32 to vector<1x512xi32>
    %550 = arith.cmpi sle, %3, %549 : vector<1x512xi32>
    %551 = arith.andi %548, %550 : vector<1x512xi1>
    %cst_203 = arith.constant 1.000000e+00 : f32
    %cst_204 = arith.constant 0.000000e+00 : f32
    %552 = vector.broadcast %cst_203 : f32 to vector<1x512xf32>
    %553 = vector.broadcast %cst_204 : f32 to vector<1x512xf32>
    %554 = arith.select %551, %552, %553 : vector<1x512xi1>, vector<1x512xf32>
    %555 = vector.broadcast %554 : vector<1x512xf32> to vector<8x512xf32>
    %556 = arith.mulf %546, %555 : vector<8x512xf32>
    %c1_i32_205 = arith.constant 1 : i32
    %557 = tpu.dynamic_rotate %418 by %c1_i32_205 dim 1 : vector<8x512xf32>, i32 -> vector<8x512xf32>
    %c1_i32_206 = arith.constant 1 : i32
    %558 = vector.broadcast %c1_i32_206 : i32 to vector<1x512xi32>
    %559 = arith.cmpi sge, %3, %558 : vector<1x512xi32>
    %cst_207 = arith.constant 1.000000e+00 : f32
    %cst_208 = arith.constant 0.000000e+00 : f32
    %560 = vector.broadcast %cst_207 : f32 to vector<1x512xf32>
    %561 = vector.broadcast %cst_208 : f32 to vector<1x512xf32>
    %562 = arith.select %559, %560, %561 : vector<1x512xi1>, vector<1x512xf32>
    %563 = vector.broadcast %562 : vector<1x512xf32> to vector<8x512xf32>
    %564 = arith.mulf %557, %563 : vector<8x512xf32>
    %c511_i32_209 = arith.constant 511 : i32
    %565 = tpu.dynamic_rotate %418 by %c511_i32_209 dim 1 : vector<8x512xf32>, i32 -> vector<8x512xf32>
    %c6_i32_210 = arith.constant 6 : i32
    %566 = vector.broadcast %c6_i32_210 : i32 to vector<1x512xi32>
    %567 = arith.cmpi sle, %3, %566 : vector<1x512xi32>
    %cst_211 = arith.constant 1.000000e+00 : f32
    %cst_212 = arith.constant 0.000000e+00 : f32
    %568 = vector.broadcast %cst_211 : f32 to vector<1x512xf32>
    %569 = vector.broadcast %cst_212 : f32 to vector<1x512xf32>
    %570 = arith.select %567, %568, %569 : vector<1x512xi1>, vector<1x512xf32>
    %571 = vector.broadcast %570 : vector<1x512xf32> to vector<8x512xf32>
    %572 = arith.mulf %565, %571 : vector<8x512xf32>
    %c505_i32_213 = arith.constant 505 : i32
    %573 = tpu.dynamic_rotate %418 by %c505_i32_213 dim 1 : vector<8x512xf32>, i32 -> vector<8x512xf32>
    %c6_i32_214 = arith.constant 6 : i32
    %574 = vector.broadcast %c6_i32_214 : i32 to vector<1x512xi32>
    %575 = arith.cmpi sle, %2, %574 : vector<1x512xi32>
    %c1_i32_215 = arith.constant 1 : i32
    %576 = vector.broadcast %c1_i32_215 : i32 to vector<1x512xi32>
    %577 = arith.cmpi sge, %3, %576 : vector<1x512xi32>
    %578 = arith.andi %575, %577 : vector<1x512xi1>
    %cst_216 = arith.constant 1.000000e+00 : f32
    %cst_217 = arith.constant 0.000000e+00 : f32
    %579 = vector.broadcast %cst_216 : f32 to vector<1x512xf32>
    %580 = vector.broadcast %cst_217 : f32 to vector<1x512xf32>
    %581 = arith.select %578, %579, %580 : vector<1x512xi1>, vector<1x512xf32>
    %582 = vector.broadcast %581 : vector<1x512xf32> to vector<8x512xf32>
    %583 = arith.mulf %573, %582 : vector<8x512xf32>
    %c504_i32_218 = arith.constant 504 : i32
    %584 = tpu.dynamic_rotate %418 by %c504_i32_218 dim 1 : vector<8x512xf32>, i32 -> vector<8x512xf32>
    %c6_i32_219 = arith.constant 6 : i32
    %585 = vector.broadcast %c6_i32_219 : i32 to vector<1x512xi32>
    %586 = arith.cmpi sle, %2, %585 : vector<1x512xi32>
    %cst_220 = arith.constant 1.000000e+00 : f32
    %cst_221 = arith.constant 0.000000e+00 : f32
    %587 = vector.broadcast %cst_220 : f32 to vector<1x512xf32>
    %588 = vector.broadcast %cst_221 : f32 to vector<1x512xf32>
    %589 = arith.select %586, %587, %588 : vector<1x512xi1>, vector<1x512xf32>
    %590 = vector.broadcast %589 : vector<1x512xf32> to vector<8x512xf32>
    %591 = arith.mulf %584, %590 : vector<8x512xf32>
    %c503_i32_222 = arith.constant 503 : i32
    %592 = tpu.dynamic_rotate %418 by %c503_i32_222 dim 1 : vector<8x512xf32>, i32 -> vector<8x512xf32>
    %c6_i32_223 = arith.constant 6 : i32
    %593 = vector.broadcast %c6_i32_223 : i32 to vector<1x512xi32>
    %594 = arith.cmpi sle, %2, %593 : vector<1x512xi32>
    %c6_i32_224 = arith.constant 6 : i32
    %595 = vector.broadcast %c6_i32_224 : i32 to vector<1x512xi32>
    %596 = arith.cmpi sle, %3, %595 : vector<1x512xi32>
    %597 = arith.andi %594, %596 : vector<1x512xi1>
    %cst_225 = arith.constant 1.000000e+00 : f32
    %cst_226 = arith.constant 0.000000e+00 : f32
    %598 = vector.broadcast %cst_225 : f32 to vector<1x512xf32>
    %599 = vector.broadcast %cst_226 : f32 to vector<1x512xf32>
    %600 = arith.select %597, %598, %599 : vector<1x512xi1>, vector<1x512xf32>
    %601 = vector.broadcast %600 : vector<1x512xf32> to vector<8x512xf32>
    %602 = arith.mulf %592, %601 : vector<8x512xf32>
    %c457_i32_227 = arith.constant 457 : i32
    %603 = tpu.dynamic_rotate %418 by %c457_i32_227 dim 1 : vector<8x512xf32>, i32 -> vector<8x512xf32>
    %c6_i32_228 = arith.constant 6 : i32
    %604 = vector.broadcast %c6_i32_228 : i32 to vector<1x512xi32>
    %605 = arith.cmpi sle, %1, %604 : vector<1x512xi32>
    %c1_i32_229 = arith.constant 1 : i32
    %606 = vector.broadcast %c1_i32_229 : i32 to vector<1x512xi32>
    %607 = arith.cmpi sge, %2, %606 : vector<1x512xi32>
    %c1_i32_230 = arith.constant 1 : i32
    %608 = vector.broadcast %c1_i32_230 : i32 to vector<1x512xi32>
    %609 = arith.cmpi sge, %3, %608 : vector<1x512xi32>
    %610 = arith.andi %605, %607 : vector<1x512xi1>
    %611 = arith.andi %610, %609 : vector<1x512xi1>
    %cst_231 = arith.constant 1.000000e+00 : f32
    %cst_232 = arith.constant 0.000000e+00 : f32
    %612 = vector.broadcast %cst_231 : f32 to vector<1x512xf32>
    %613 = vector.broadcast %cst_232 : f32 to vector<1x512xf32>
    %614 = arith.select %611, %612, %613 : vector<1x512xi1>, vector<1x512xf32>
    %615 = vector.broadcast %614 : vector<1x512xf32> to vector<8x512xf32>
    %616 = arith.mulf %603, %615 : vector<8x512xf32>
    %c456_i32_233 = arith.constant 456 : i32
    %617 = tpu.dynamic_rotate %418 by %c456_i32_233 dim 1 : vector<8x512xf32>, i32 -> vector<8x512xf32>
    %c6_i32_234 = arith.constant 6 : i32
    %618 = vector.broadcast %c6_i32_234 : i32 to vector<1x512xi32>
    %619 = arith.cmpi sle, %1, %618 : vector<1x512xi32>
    %c1_i32_235 = arith.constant 1 : i32
    %620 = vector.broadcast %c1_i32_235 : i32 to vector<1x512xi32>
    %621 = arith.cmpi sge, %2, %620 : vector<1x512xi32>
    %622 = arith.andi %619, %621 : vector<1x512xi1>
    %cst_236 = arith.constant 1.000000e+00 : f32
    %cst_237 = arith.constant 0.000000e+00 : f32
    %623 = vector.broadcast %cst_236 : f32 to vector<1x512xf32>
    %624 = vector.broadcast %cst_237 : f32 to vector<1x512xf32>
    %625 = arith.select %622, %623, %624 : vector<1x512xi1>, vector<1x512xf32>
    %626 = vector.broadcast %625 : vector<1x512xf32> to vector<8x512xf32>
    %627 = arith.mulf %617, %626 : vector<8x512xf32>
    %c455_i32_238 = arith.constant 455 : i32
    %628 = tpu.dynamic_rotate %418 by %c455_i32_238 dim 1 : vector<8x512xf32>, i32 -> vector<8x512xf32>
    %c6_i32_239 = arith.constant 6 : i32
    %629 = vector.broadcast %c6_i32_239 : i32 to vector<1x512xi32>
    %630 = arith.cmpi sle, %1, %629 : vector<1x512xi32>
    %c1_i32_240 = arith.constant 1 : i32
    %631 = vector.broadcast %c1_i32_240 : i32 to vector<1x512xi32>
    %632 = arith.cmpi sge, %2, %631 : vector<1x512xi32>
    %c6_i32_241 = arith.constant 6 : i32
    %633 = vector.broadcast %c6_i32_241 : i32 to vector<1x512xi32>
    %634 = arith.cmpi sle, %3, %633 : vector<1x512xi32>
    %635 = arith.andi %630, %632 : vector<1x512xi1>
    %636 = arith.andi %635, %634 : vector<1x512xi1>
    %cst_242 = arith.constant 1.000000e+00 : f32
    %cst_243 = arith.constant 0.000000e+00 : f32
    %637 = vector.broadcast %cst_242 : f32 to vector<1x512xf32>
    %638 = vector.broadcast %cst_243 : f32 to vector<1x512xf32>
    %639 = arith.select %636, %637, %638 : vector<1x512xi1>, vector<1x512xf32>
    %640 = vector.broadcast %639 : vector<1x512xf32> to vector<8x512xf32>
    %641 = arith.mulf %628, %640 : vector<8x512xf32>
    %c449_i32_244 = arith.constant 449 : i32
    %642 = tpu.dynamic_rotate %418 by %c449_i32_244 dim 1 : vector<8x512xf32>, i32 -> vector<8x512xf32>
    %c6_i32_245 = arith.constant 6 : i32
    %643 = vector.broadcast %c6_i32_245 : i32 to vector<1x512xi32>
    %644 = arith.cmpi sle, %1, %643 : vector<1x512xi32>
    %c1_i32_246 = arith.constant 1 : i32
    %645 = vector.broadcast %c1_i32_246 : i32 to vector<1x512xi32>
    %646 = arith.cmpi sge, %3, %645 : vector<1x512xi32>
    %647 = arith.andi %644, %646 : vector<1x512xi1>
    %cst_247 = arith.constant 1.000000e+00 : f32
    %cst_248 = arith.constant 0.000000e+00 : f32
    %648 = vector.broadcast %cst_247 : f32 to vector<1x512xf32>
    %649 = vector.broadcast %cst_248 : f32 to vector<1x512xf32>
    %650 = arith.select %647, %648, %649 : vector<1x512xi1>, vector<1x512xf32>
    %651 = vector.broadcast %650 : vector<1x512xf32> to vector<8x512xf32>
    %652 = arith.mulf %642, %651 : vector<8x512xf32>
    %c448_i32_249 = arith.constant 448 : i32
    %653 = tpu.dynamic_rotate %418 by %c448_i32_249 dim 1 : vector<8x512xf32>, i32 -> vector<8x512xf32>
    %c6_i32_250 = arith.constant 6 : i32
    %654 = vector.broadcast %c6_i32_250 : i32 to vector<1x512xi32>
    %655 = arith.cmpi sle, %1, %654 : vector<1x512xi32>
    %cst_251 = arith.constant 1.000000e+00 : f32
    %cst_252 = arith.constant 0.000000e+00 : f32
    %656 = vector.broadcast %cst_251 : f32 to vector<1x512xf32>
    %657 = vector.broadcast %cst_252 : f32 to vector<1x512xf32>
    %658 = arith.select %655, %656, %657 : vector<1x512xi1>, vector<1x512xf32>
    %659 = vector.broadcast %658 : vector<1x512xf32> to vector<8x512xf32>
    %660 = arith.mulf %653, %659 : vector<8x512xf32>
    %c447_i32_253 = arith.constant 447 : i32
    %661 = tpu.dynamic_rotate %418 by %c447_i32_253 dim 1 : vector<8x512xf32>, i32 -> vector<8x512xf32>
    %c6_i32_254 = arith.constant 6 : i32
    %662 = vector.broadcast %c6_i32_254 : i32 to vector<1x512xi32>
    %663 = arith.cmpi sle, %1, %662 : vector<1x512xi32>
    %c6_i32_255 = arith.constant 6 : i32
    %664 = vector.broadcast %c6_i32_255 : i32 to vector<1x512xi32>
    %665 = arith.cmpi sle, %3, %664 : vector<1x512xi32>
    %666 = arith.andi %663, %665 : vector<1x512xi1>
    %cst_256 = arith.constant 1.000000e+00 : f32
    %cst_257 = arith.constant 0.000000e+00 : f32
    %667 = vector.broadcast %cst_256 : f32 to vector<1x512xf32>
    %668 = vector.broadcast %cst_257 : f32 to vector<1x512xf32>
    %669 = arith.select %666, %667, %668 : vector<1x512xi1>, vector<1x512xf32>
    %670 = vector.broadcast %669 : vector<1x512xf32> to vector<8x512xf32>
    %671 = arith.mulf %661, %670 : vector<8x512xf32>
    %c441_i32_258 = arith.constant 441 : i32
    %672 = tpu.dynamic_rotate %418 by %c441_i32_258 dim 1 : vector<8x512xf32>, i32 -> vector<8x512xf32>
    %c6_i32_259 = arith.constant 6 : i32
    %673 = vector.broadcast %c6_i32_259 : i32 to vector<1x512xi32>
    %674 = arith.cmpi sle, %1, %673 : vector<1x512xi32>
    %c6_i32_260 = arith.constant 6 : i32
    %675 = vector.broadcast %c6_i32_260 : i32 to vector<1x512xi32>
    %676 = arith.cmpi sle, %2, %675 : vector<1x512xi32>
    %c1_i32_261 = arith.constant 1 : i32
    %677 = vector.broadcast %c1_i32_261 : i32 to vector<1x512xi32>
    %678 = arith.cmpi sge, %3, %677 : vector<1x512xi32>
    %679 = arith.andi %674, %676 : vector<1x512xi1>
    %680 = arith.andi %679, %678 : vector<1x512xi1>
    %cst_262 = arith.constant 1.000000e+00 : f32
    %cst_263 = arith.constant 0.000000e+00 : f32
    %681 = vector.broadcast %cst_262 : f32 to vector<1x512xf32>
    %682 = vector.broadcast %cst_263 : f32 to vector<1x512xf32>
    %683 = arith.select %680, %681, %682 : vector<1x512xi1>, vector<1x512xf32>
    %684 = vector.broadcast %683 : vector<1x512xf32> to vector<8x512xf32>
    %685 = arith.mulf %672, %684 : vector<8x512xf32>
    %c440_i32_264 = arith.constant 440 : i32
    %686 = tpu.dynamic_rotate %418 by %c440_i32_264 dim 1 : vector<8x512xf32>, i32 -> vector<8x512xf32>
    %c6_i32_265 = arith.constant 6 : i32
    %687 = vector.broadcast %c6_i32_265 : i32 to vector<1x512xi32>
    %688 = arith.cmpi sle, %1, %687 : vector<1x512xi32>
    %c6_i32_266 = arith.constant 6 : i32
    %689 = vector.broadcast %c6_i32_266 : i32 to vector<1x512xi32>
    %690 = arith.cmpi sle, %2, %689 : vector<1x512xi32>
    %691 = arith.andi %688, %690 : vector<1x512xi1>
    %cst_267 = arith.constant 1.000000e+00 : f32
    %cst_268 = arith.constant 0.000000e+00 : f32
    %692 = vector.broadcast %cst_267 : f32 to vector<1x512xf32>
    %693 = vector.broadcast %cst_268 : f32 to vector<1x512xf32>
    %694 = arith.select %691, %692, %693 : vector<1x512xi1>, vector<1x512xf32>
    %695 = vector.broadcast %694 : vector<1x512xf32> to vector<8x512xf32>
    %696 = arith.mulf %686, %695 : vector<8x512xf32>
    %c439_i32_269 = arith.constant 439 : i32
    %697 = tpu.dynamic_rotate %418 by %c439_i32_269 dim 1 : vector<8x512xf32>, i32 -> vector<8x512xf32>
    %c6_i32_270 = arith.constant 6 : i32
    %698 = vector.broadcast %c6_i32_270 : i32 to vector<1x512xi32>
    %699 = arith.cmpi sle, %1, %698 : vector<1x512xi32>
    %c6_i32_271 = arith.constant 6 : i32
    %700 = vector.broadcast %c6_i32_271 : i32 to vector<1x512xi32>
    %701 = arith.cmpi sle, %2, %700 : vector<1x512xi32>
    %c6_i32_272 = arith.constant 6 : i32
    %702 = vector.broadcast %c6_i32_272 : i32 to vector<1x512xi32>
    %703 = arith.cmpi sle, %3, %702 : vector<1x512xi32>
    %704 = arith.andi %699, %701 : vector<1x512xi1>
    %705 = arith.andi %704, %703 : vector<1x512xi1>
    %cst_273 = arith.constant 1.000000e+00 : f32
    %cst_274 = arith.constant 0.000000e+00 : f32
    %706 = vector.broadcast %cst_273 : f32 to vector<1x512xf32>
    %707 = vector.broadcast %cst_274 : f32 to vector<1x512xf32>
    %708 = arith.select %705, %706, %707 : vector<1x512xi1>, vector<1x512xf32>
    %709 = vector.broadcast %708 : vector<1x512xf32> to vector<8x512xf32>
    %710 = arith.mulf %697, %709 : vector<8x512xf32>
    %cst_275 = arith.constant 0.000000e+00 : f32
    %711 = vector.broadcast %cst_275 : f32 to vector<40x512xf32>
    %712 = tpu.concatenate %432, %443, %457, %468, %476, %487, %501, %512, %526, %537, %545, %556, %564, %418, %572, %583 in 0 : vector<8x512xf32>, vector<8x512xf32>, vector<8x512xf32>, vector<8x512xf32>, vector<8x512xf32>, vector<8x512xf32>, vector<8x512xf32>, vector<8x512xf32>, vector<8x512xf32>, vector<8x512xf32>, vector<8x512xf32>, vector<8x512xf32>, vector<8x512xf32>, vector<8x512xf32>, vector<8x512xf32>, vector<8x512xf32> -> vector<128x512xf32>
    %713 = tpu.concatenate %591, %602, %616, %627, %641, %652, %660, %671, %685, %696, %710, %711 in 0 : vector<8x512xf32>, vector<8x512xf32>, vector<8x512xf32>, vector<8x512xf32>, vector<8x512xf32>, vector<8x512xf32>, vector<8x512xf32>, vector<8x512xf32>, vector<8x512xf32>, vector<8x512xf32>, vector<8x512xf32>, vector<40x512xf32> -> vector<128x512xf32>
    %714 = tpu.concatenate %712, %713 in 0 : vector<128x512xf32>, vector<128x512xf32> -> vector<256x512xf32>
    %c0_276 = arith.constant 0 : index
    %c0_277 = arith.constant 0 : index
    %715 = vector.load %arg6[%c0_276, %c0_277] : memref<8x256xf32, #tpu.memory_space<vmem>>, vector<8x256xf32>
    %cst_278 = arith.constant dense<0.000000e+00> : vector<8x512xf32>
    %716 = tpu.matmul %715, %714, %cst_278 {dimension_numbers = #tpu.dot_dimension_numbers<[1], [0], [0], [1], [0, 0, 1, 1], [], []>} : vector<8x256xf32>, vector<256x512xf32>, vector<8x512xf32> -> vector<8x512xf32>
    %717 = vector.extract_strided_slice %0 {offsets = [0, 6], sizes = [8, 1], strides = [1, 1]} : vector<16x16xf32> to vector<8x1xf32>
    %718 = vector.broadcast %717 : vector<8x1xf32> to vector<8x512xf32>
    %719 = arith.addf %716, %718 : vector<8x512xf32>
    %720 = vector.extract_strided_slice %0 {offsets = [0, 7], sizes = [8, 1], strides = [1, 1]} : vector<16x16xf32> to vector<8x1xf32>
    %721 = vector.extract_strided_slice %0 {offsets = [0, 8], sizes = [8, 1], strides = [1, 1]} : vector<16x16xf32> to vector<8x1xf32>
    %722 = vector.extract_strided_slice %0 {offsets = [2, 14], sizes = [1, 1], strides = [1, 1]} : vector<16x16xf32> to vector<1x1xf32>
    %cst_279 = arith.constant dense<0.000000e+00> : vector<8xf32>
    %723 = vector.multi_reduction <add>, %719, %cst_279 [1] : vector<8x512xf32> to vector<8xf32>
    %724 = vector.shape_cast %723 : vector<8xf32> to vector<8x1xf32>
    %725 = arith.mulf %719, %719 : vector<8x512xf32>
    %cst_280 = arith.constant dense<0.000000e+00> : vector<8xf32>
    %726 = vector.multi_reduction <add>, %725, %cst_280 [1] : vector<8x512xf32> to vector<8xf32>
    %727 = vector.shape_cast %726 : vector<8xf32> to vector<8x1xf32>
    %728 = tpu.iota {dimensions = array<i32: 1>} : vector<8x2xi32>
    %c0_i32_281 = arith.constant 0 : i32
    %729 = vector.broadcast %c0_i32_281 : i32 to vector<8x2xi32>
    %730 = arith.cmpi eq, %728, %729 : vector<8x2xi32>
    %731 = vector.shape_cast %724 : vector<8x1xf32> to vector<8x1xf32>
    %732 = vector.broadcast %731 : vector<8x1xf32> to vector<8x2xf32>
    %733 = vector.shape_cast %727 : vector<8x1xf32> to vector<8x1xf32>
    %734 = vector.broadcast %733 : vector<8x1xf32> to vector<8x2xf32>
    %735 = arith.select %730, %732, %734 : vector<8x2xi1>, vector<8x2xf32>
    %cst_282 = arith.constant dense<0.000000e+00> : vector<8x2xf32>
    %736 = tpu.matmul %14, %735, %cst_282 {dimension_numbers = #tpu.dot_dimension_numbers<[1], [0], [0], [1], [0, 0, 1, 1], [], []>} : vector<8x8xf32>, vector<8x2xf32>, vector<8x2xf32> -> vector<8x2xf32>
    %737 = vector.extract_strided_slice %736 {offsets = [0, 0], sizes = [8, 1], strides = [1, 1]} : vector<8x2xf32> to vector<8x1xf32>
    %cst_283 = arith.constant 9.765625E-4 : f32
    %738 = vector.broadcast %cst_283 : f32 to vector<8x1xf32>
    %739 = arith.mulf %737, %738 : vector<8x1xf32>
    %740 = vector.extract_strided_slice %736 {offsets = [0, 1], sizes = [8, 1], strides = [1, 1]} : vector<8x2xf32> to vector<8x1xf32>
    %cst_284 = arith.constant 9.765625E-4 : f32
    %741 = vector.broadcast %cst_284 : f32 to vector<8x1xf32>
    %742 = arith.mulf %740, %741 : vector<8x1xf32>
    %743 = arith.mulf %739, %739 : vector<8x1xf32>
    %744 = arith.subf %742, %743 : vector<8x1xf32>
    %cst_285 = arith.constant 0.000000e+00 : f32
    %745 = vector.broadcast %cst_285 : f32 to vector<8x1xf32>
    %746 = arith.maximumf %744, %745 : vector<8x1xf32>
    %747 = vector.broadcast %739 : vector<8x1xf32> to vector<8x512xf32>
    %748 = arith.subf %719, %747 : vector<8x512xf32>
    %cst_286 = arith.constant 9.99999974E-6 : f32
    %749 = vector.broadcast %cst_286 : f32 to vector<8x1xf32>
    %750 = arith.addf %746, %749 : vector<8x1xf32>
    %751 = math.rsqrt %750 : vector<8x1xf32>
    %752 = vector.broadcast %751 : vector<8x1xf32> to vector<8x512xf32>
    %753 = arith.mulf %748, %752 : vector<8x512xf32>
    %754 = vector.broadcast %720 : vector<8x1xf32> to vector<8x512xf32>
    %755 = arith.mulf %753, %754 : vector<8x512xf32>
    %756 = vector.broadcast %721 : vector<8x1xf32> to vector<8x512xf32>
    %757 = arith.addf %755, %756 : vector<8x512xf32>
    %cst_287 = arith.constant 0.000000e+00 : f32
    %758 = vector.broadcast %cst_287 : f32 to vector<8x512xf32>
    %759 = arith.cmpf oge, %757, %758 : vector<8x512xf32>
    %760 = vector.broadcast %722 : vector<1x1xf32> to vector<8x512xf32>
    %761 = arith.mulf %760, %757 : vector<8x512xf32>
    %762 = arith.select %759, %757, %761 : vector<8x512xi1>, vector<8x512xf32>
    %cst_288 = arith.constant dense<0.000000e+00> : vector<8xf32>
    %763 = vector.multi_reduction <add>, %762, %cst_288 [1] : vector<8x512xf32> to vector<8xf32>
    %764 = vector.shape_cast %763 : vector<8xf32> to vector<8x1xf32>
    %cst_289 = arith.constant 0.001953125 : f32
    %765 = vector.broadcast %cst_289 : f32 to vector<8x1xf32>
    %766 = arith.mulf %764, %765 : vector<8x1xf32>
    %c0_290 = arith.constant 0 : index
    %c0_291 = arith.constant 0 : index
    %767 = vector.load %arg7[%c0_290, %c0_291] : memref<4x8xf32, #tpu.memory_space<vmem>>, vector<4x8xf32>
    %cst_292 = arith.constant dense<0.000000e+00> : vector<4x1xf32>
    %768 = tpu.matmul %767, %766, %cst_292 {dimension_numbers = #tpu.dot_dimension_numbers<[1], [0], [0], [1], [0, 0, 1, 1], [], []>} : vector<4x8xf32>, vector<8x1xf32>, vector<4x1xf32> -> vector<4x1xf32>
    %769 = vector.extract_strided_slice %0 {offsets = [0, 13], sizes = [4, 1], strides = [1, 1]} : vector<16x16xf32> to vector<4x1xf32>
    %770 = arith.addf %768, %769 : vector<4x1xf32>
    %cst_293 = arith.constant 0.000000e+00 : f32
    %771 = vector.broadcast %cst_293 : f32 to vector<4x1xf32>
    %772 = arith.cmpf oge, %770, %771 : vector<4x1xf32>
    %773 = vector.extract_strided_slice %0 {offsets = [3, 14], sizes = [1, 1], strides = [1, 1]} : vector<16x16xf32> to vector<1x1xf32>
    %774 = vector.broadcast %773 : vector<1x1xf32> to vector<4x1xf32>
    %775 = arith.mulf %774, %770 : vector<4x1xf32>
    %776 = arith.select %772, %770, %775 : vector<4x1xi1>, vector<4x1xf32>
    %c0_294 = arith.constant 0 : index
    %c0_295 = arith.constant 0 : index
    %777 = vector.load %arg8[%c0_294, %c0_295] : memref<8x4xf32, #tpu.memory_space<vmem>>, vector<8x4xf32>
    %cst_296 = arith.constant dense<0.000000e+00> : vector<8x1xf32>
    %778 = tpu.matmul %777, %776, %cst_296 {dimension_numbers = #tpu.dot_dimension_numbers<[1], [0], [0], [1], [0, 0, 1, 1], [], []>} : vector<8x4xf32>, vector<4x1xf32>, vector<8x1xf32> -> vector<8x1xf32>
    %779 = vector.extract_strided_slice %0 {offsets = [0, 9], sizes = [8, 1], strides = [1, 1]} : vector<16x16xf32> to vector<8x1xf32>
    %780 = arith.addf %778, %779 : vector<8x1xf32>
    %781 = arith.negf %780 : vector<8x1xf32>
    %782 = math.exp %781 : vector<8x1xf32>
    %cst_297 = arith.constant 1.000000e+00 : f32
    %783 = vector.broadcast %cst_297 : f32 to vector<8x1xf32>
    %784 = arith.addf %783, %782 : vector<8x1xf32>
    %785 = arith.divf %783, %784 : vector<8x1xf32>
    %786 = vector.broadcast %785 : vector<8x1xf32> to vector<8x512xf32>
    %787 = arith.mulf %762, %786 : vector<8x512xf32>
    %788 = arith.addf %787, %74 : vector<8x512xf32>
    %c0_298 = arith.constant 0 : index
    %c0_299 = arith.constant 0 : index
    %c0_300 = arith.constant 0 : index
    %789 = vector.load %arg10[%c0_298, %c0_299, %c0_300] : memref<1x8x512xf32, #tpu.memory_space<vmem>>, vector<1x8x512xf32>
    %790 = vector.shape_cast %789 : vector<1x8x512xf32> to vector<8x512xf32>
    %791 = vector.shape_cast %788 : vector<8x512xf32> to vector<1x8x512xf32>
    tpu.vector_store %arg10[%c0_298, %c0_299, %c0_300], %791 {strides = array<i32>} : memref<1x8x512xf32, #tpu.memory_space<vmem>>, vector<1x8x512xf32>,
    %c511_i32_301 = arith.constant 511 : i32
    %792 = tpu.dynamic_rotate %788 by %c511_i32_301 dim 1 : vector<8x512xf32>, i32 -> vector<8x512xf32>
    %c504_i32_302 = arith.constant 504 : i32
    %793 = tpu.dynamic_rotate %788 by %c504_i32_302 dim 1 : vector<8x512xf32>, i32 -> vector<8x512xf32>
    %c503_i32_303 = arith.constant 503 : i32
    %794 = tpu.dynamic_rotate %788 by %c503_i32_303 dim 1 : vector<8x512xf32>, i32 -> vector<8x512xf32>
    %c448_i32_304 = arith.constant 448 : i32
    %795 = tpu.dynamic_rotate %788 by %c448_i32_304 dim 1 : vector<8x512xf32>, i32 -> vector<8x512xf32>
    %c447_i32_305 = arith.constant 447 : i32
    %796 = tpu.dynamic_rotate %788 by %c447_i32_305 dim 1 : vector<8x512xf32>, i32 -> vector<8x512xf32>
    %c440_i32_306 = arith.constant 440 : i32
    %797 = tpu.dynamic_rotate %788 by %c440_i32_306 dim 1 : vector<8x512xf32>, i32 -> vector<8x512xf32>
    %c439_i32_307 = arith.constant 439 : i32
    %798 = tpu.dynamic_rotate %788 by %c439_i32_307 dim 1 : vector<8x512xf32>, i32 -> vector<8x512xf32>
    %c0_308 = arith.constant 0 : index
    %c0_309 = arith.constant 0 : index
    %799 = vector.load %arg9[%c0_308, %c0_309] : memref<16x64xf32, #tpu.memory_space<vmem>>, vector<16x64xf32>
    %800 = tpu.concatenate %788, %792, %793, %794, %795, %796, %797, %798 in 0 : vector<8x512xf32>, vector<8x512xf32>, vector<8x512xf32>, vector<8x512xf32>, vector<8x512xf32>, vector<8x512xf32>, vector<8x512xf32>, vector<8x512xf32> -> vector<64x512xf32>
    %cst_310 = arith.constant dense<0.000000e+00> : vector<16x512xf32>
    %801 = tpu.matmul %799, %800, %cst_310 {dimension_numbers = #tpu.dot_dimension_numbers<[1], [0], [0], [1], [0, 0, 1, 1], [], []>} : vector<16x64xf32>, vector<64x512xf32>, vector<16x512xf32> -> vector<16x512xf32>
    %802 = tpu.iota {dimensions = array<i32: 0>} : vector<512x64xi32>
    %803 = vector.broadcast %4 : vector<1x64xi32> to vector<512x64xi32>
    %804 = arith.cmpi eq, %802, %803 : vector<512x64xi32>
    %cst_311 = arith.constant 1.000000e+00 : f32
    %cst_312 = arith.constant 0.000000e+00 : f32
    %805 = vector.broadcast %cst_311 : f32 to vector<512x64xf32>
    %806 = vector.broadcast %cst_312 : f32 to vector<512x64xf32>
    %807 = arith.select %804, %805, %806 : vector<512x64xi1>, vector<512x64xf32>
    %cst_313 = arith.constant dense<0.000000e+00> : vector<16x64xf32>
    %808 = tpu.matmul %801, %807, %cst_313 {dimension_numbers = #tpu.dot_dimension_numbers<[1], [0], [0], [1], [0, 0, 1, 1], [], []>} : vector<16x512xf32>, vector<512x64xf32>, vector<16x64xf32> -> vector<16x64xf32>
    %809 = vector.extract_strided_slice %0 {offsets = [0, 10], sizes = [16, 1], strides = [1, 1]} : vector<16x16xf32> to vector<16x1xf32>
    %810 = vector.broadcast %809 : vector<16x1xf32> to vector<16x64xf32>
    %811 = arith.addf %808, %810 : vector<16x64xf32>
    %812 = vector.extract_strided_slice %0 {offsets = [0, 11], sizes = [16, 1], strides = [1, 1]} : vector<16x16xf32> to vector<16x1xf32>
    %813 = vector.extract_strided_slice %0 {offsets = [0, 12], sizes = [16, 1], strides = [1, 1]} : vector<16x16xf32> to vector<16x1xf32>
    %814 = vector.extract_strided_slice %0 {offsets = [4, 14], sizes = [1, 1], strides = [1, 1]} : vector<16x16xf32> to vector<1x1xf32>
    %cst_314 = arith.constant dense<0.000000e+00> : vector<16xf32>
    %815 = vector.multi_reduction <add>, %811, %cst_314 [1] : vector<16x64xf32> to vector<16xf32>
    %816 = vector.shape_cast %815 : vector<16xf32> to vector<16x1xf32>
    %817 = arith.mulf %811, %811 : vector<16x64xf32>
    %cst_315 = arith.constant dense<0.000000e+00> : vector<16xf32>
    %818 = vector.multi_reduction <add>, %817, %cst_315 [1] : vector<16x64xf32> to vector<16xf32>
    %819 = vector.shape_cast %818 : vector<16xf32> to vector<16x1xf32>
    %820 = tpu.iota {dimensions = array<i32: 1>} : vector<16x2xi32>
    %c0_i32_316 = arith.constant 0 : i32
    %821 = vector.broadcast %c0_i32_316 : i32 to vector<16x2xi32>
    %822 = arith.cmpi eq, %820, %821 : vector<16x2xi32>
    %823 = vector.shape_cast %816 : vector<16x1xf32> to vector<16x1xf32>
    %824 = vector.broadcast %823 : vector<16x1xf32> to vector<16x2xf32>
    %825 = vector.shape_cast %819 : vector<16x1xf32> to vector<16x1xf32>
    %826 = vector.broadcast %825 : vector<16x1xf32> to vector<16x2xf32>
    %827 = arith.select %822, %824, %826 : vector<16x2xi1>, vector<16x2xf32>
    %cst_317 = arith.constant dense<0.000000e+00> : vector<16x2xf32>
    %828 = tpu.matmul %24, %827, %cst_317 {dimension_numbers = #tpu.dot_dimension_numbers<[1], [0], [0], [1], [0, 0, 1, 1], [], []>} : vector<16x16xf32>, vector<16x2xf32>, vector<16x2xf32> -> vector<16x2xf32>
    %829 = vector.extract_strided_slice %828 {offsets = [0, 0], sizes = [16, 1], strides = [1, 1]} : vector<16x2xf32> to vector<16x1xf32>
    %cst_318 = arith.constant 3.906250e-03 : f32
    %830 = vector.broadcast %cst_318 : f32 to vector<16x1xf32>
    %831 = arith.mulf %829, %830 : vector<16x1xf32>
    %832 = vector.extract_strided_slice %828 {offsets = [0, 1], sizes = [16, 1], strides = [1, 1]} : vector<16x2xf32> to vector<16x1xf32>
    %cst_319 = arith.constant 3.906250e-03 : f32
    %833 = vector.broadcast %cst_319 : f32 to vector<16x1xf32>
    %834 = arith.mulf %832, %833 : vector<16x1xf32>
    %835 = arith.mulf %831, %831 : vector<16x1xf32>
    %836 = arith.subf %834, %835 : vector<16x1xf32>
    %cst_320 = arith.constant 0.000000e+00 : f32
    %837 = vector.broadcast %cst_320 : f32 to vector<16x1xf32>
    %838 = arith.maximumf %836, %837 : vector<16x1xf32>
    %839 = vector.broadcast %831 : vector<16x1xf32> to vector<16x64xf32>
    %840 = arith.subf %811, %839 : vector<16x64xf32>
    %cst_321 = arith.constant 9.99999974E-6 : f32
    %841 = vector.broadcast %cst_321 : f32 to vector<16x1xf32>
    %842 = arith.addf %838, %841 : vector<16x1xf32>
    %843 = math.rsqrt %842 : vector<16x1xf32>
    %844 = vector.broadcast %843 : vector<16x1xf32> to vector<16x64xf32>
    %845 = arith.mulf %840, %844 : vector<16x64xf32>
    %846 = vector.broadcast %812 : vector<16x1xf32> to vector<16x64xf32>
    %847 = arith.mulf %845, %846 : vector<16x64xf32>
    %848 = vector.broadcast %813 : vector<16x1xf32> to vector<16x64xf32>
    %849 = arith.addf %847, %848 : vector<16x64xf32>
    %cst_322 = arith.constant 0.000000e+00 : f32
    %850 = vector.broadcast %cst_322 : f32 to vector<16x64xf32>
    %851 = arith.cmpf oge, %849, %850 : vector<16x64xf32>
    %852 = vector.broadcast %814 : vector<1x1xf32> to vector<16x64xf32>
    %853 = arith.mulf %852, %849 : vector<16x64xf32>
    %854 = arith.select %851, %849, %853 : vector<16x64xi1>, vector<16x64xf32>
    %c0_323 = arith.constant 0 : index
    %c0_324 = arith.constant 0 : index
    %c0_325 = arith.constant 0 : index
    %855 = vector.load %arg11[%c0_323, %c0_324, %c0_325] : memref<1x16x64xf32, #tpu.memory_space<vmem>>, vector<1x16x64xf32>
    %856 = vector.shape_cast %855 : vector<1x16x64xf32> to vector<16x64xf32>
    %857 = vector.shape_cast %854 : vector<16x64xf32> to vector<1x16x64xf32>
    tpu.vector_store %arg11[%c0_323, %c0_324, %c0_325], %857 {strides = array<i32>} : memref<1x16x64xf32, #tpu.memory_space<vmem>>, vector<1x16x64xf32>,
    return
  }
  func.func @transform_0(%arg0: i32) -> (i32, i32, i32) {
    %c0_i32 = arith.constant 0 : i32
    %c0_i32_0 = arith.constant 0 : i32
    %c0_i32_1 = arith.constant 0 : i32
    return %arg0, %c0_i32, %c0_i32_0 : i32, i32, i32
  }
  func.func @transform_1(%arg0: i32) -> (i32, i32) {
    %c0_i32 = arith.constant 0 : i32
    %c0_i32_0 = arith.constant 0 : i32
    %c0_i32_1 = arith.constant 0 : i32
    return %c0_i32, %c0_i32_0 : i32, i32
  }
  func.func @transform_2(%arg0: i32) -> (i32, i32) {
    %c0_i32 = arith.constant 0 : i32
    %c0_i32_0 = arith.constant 0 : i32
    %c0_i32_1 = arith.constant 0 : i32
    return %c0_i32, %c0_i32_0 : i32, i32
  }
  func.func @transform_3(%arg0: i32) -> (i32, i32) {
    %c0_i32 = arith.constant 0 : i32
    %c0_i32_0 = arith.constant 0 : i32
    %c0_i32_1 = arith.constant 0 : i32
    return %c0_i32, %c0_i32_0 : i32, i32
  }
  func.func @transform_4(%arg0: i32) -> (i32, i32) {
    %c0_i32 = arith.constant 0 : i32
    %c0_i32_0 = arith.constant 0 : i32
    %c0_i32_1 = arith.constant 0 : i32
    return %c0_i32, %c0_i32_0 : i32, i32
  }
  func.func @transform_5(%arg0: i32) -> (i32, i32) {
    %c0_i32 = arith.constant 0 : i32
    %c0_i32_0 = arith.constant 0 : i32
    %c0_i32_1 = arith.constant 0 : i32
    return %c0_i32, %c0_i32_0 : i32, i32
  }
  func.func @transform_6(%arg0: i32) -> (i32, i32) {
    %c0_i32 = arith.constant 0 : i32
    %c0_i32_0 = arith.constant 0 : i32
    %c0_i32_1 = arith.constant 0 : i32
    return %c0_i32, %c0_i32_0 : i32, i32
  }
  func.func @transform_7(%arg0: i32) -> (i32, i32) {
    %c0_i32 = arith.constant 0 : i32
    %c0_i32_0 = arith.constant 0 : i32
    %c0_i32_1 = arith.constant 0 : i32
    return %c0_i32, %c0_i32_0 : i32, i32
  }
  func.func @transform_8(%arg0: i32) -> (i32, i32) {
    %c0_i32 = arith.constant 0 : i32
    %c0_i32_0 = arith.constant 0 : i32
    %c0_i32_1 = arith.constant 0 : i32
    return %c0_i32, %c0_i32_0 : i32, i32
  }
  func.func @transform_9(%arg0: i32) -> (i32, i32, i32) {
    %c0_i32 = arith.constant 0 : i32
    %c0_i32_0 = arith.constant 0 : i32
    %c0_i32_1 = arith.constant 0 : i32
    return %arg0, %c0_i32, %c0_i32_0 : i32, i32, i32
  }
  func.func @transform_10(%arg0: i32) -> (i32, i32, i32) {
    %c0_i32 = arith.constant 0 : i32
    %c0_i32_0 = arith.constant 0 : i32
    %c0_i32_1 = arith.constant 0 : i32
    return %arg0, %c0_i32, %c0_i32_0 : i32, i32, i32
  }
}

</mosaic_0001>

<llo_original>
// kernel: encoder_block_forward.1
$region0: #{encoder_block_forward.1}
  #allocation0 [shape = 'u32[]', space=smem, size = 0x4, offset = 0x4, fixed_abs, tag = 'smem constant byte address 0x4 - core index']
  #allocation1 [shape = 'u32[144,128]{1,0:T(1,128)}', space=vmem, size = 0x12000, scoped, tag = 'internal scratch']
  %s0 = inlined_call_operand.vmem [shape: f32[2,4,512], index: 0, kind: input, shape index: {}]
  %s1 = inlined_call_operand.vmem [shape: f32[16,16], index: 1, kind: input, shape index: {}]
  %s2 = inlined_call_operand.vmem [shape: s32[4,512], index: 2, kind: input, shape index: {}]
  %s3 = inlined_call_operand.vmem [shape: f32[8,4], index: 3, kind: input, shape index: {}]
  %s4 = inlined_call_operand.vmem [shape: f32[8,256], index: 4, kind: input, shape index: {}]
  %s5 = inlined_call_operand.vmem [shape: f32[8,256], index: 5, kind: input, shape index: {}]
  %s6 = inlined_call_operand.vmem [shape: f32[4,8], index: 6, kind: input, shape index: {}]
  %s7 = inlined_call_operand.vmem [shape: f32[8,4], index: 7, kind: input, shape index: {}]
  %s8 = inlined_call_operand.vmem [shape: f32[16,64], index: 8, kind: input, shape index: {}]
  %s9 = inlined_call_operand.vmem [shape: f32[2,8,512], index: 9, kind: output, shape index: {0}]
  %s10 = inlined_call_operand.vmem [shape: f32[2,16,64], index: 10, kind: output, shape index: {1}]
  %11 = xla_tuple %s9, %s10
  %s12 = sld [smem:[#allocation0]]
  $region77: #{encoder_block_forward.1} parent=0
    _
  %s14 = ssub.s32 1, %s12
  %s15 = scalar_select 0, %s14, %s12
  loop: start=0, step=1, limit=4
  $region2: #{encoder_block_forward.1} parent=0 // loop_pre_header
    _
  $region3: #{encoder_block_forward.1} parent=0 // loop_header
    %s17 = sphi 0, %s21
    %p18 = scmp.ge.s32.totalorder %s17, 4
    %s27 = sphi 0, %s29
    %s30 = sphi 0, %s27
    %s31 = sphi 0, %s30
    %s47 = sphi 0, %s31
    %s51 = sphi 0, %s51
    %s53 = sphi 0, %s51
    %s54 = sphi 0, %s53
    %s68 = sphi 0, %s54
    %s72 = sphi 0, %s72
    %s74 = sphi 0, %s72
    %s75 = sphi 0, %s74
    %s89 = sphi 0, %s75
    %s93 = sphi 0, %s93
    %s95 = sphi 0, %s93
    %s96 = sphi 0, %s95
    %s110 = sphi 0, %s96
    %s114 = sphi 0, %s114
    %s116 = sphi 0, %s114
    %s117 = sphi 0, %s116
    %s131 = sphi 0, %s117
    %s135 = sphi 0, %s135
    %s137 = sphi 0, %s135
    %s138 = sphi 0, %s137
    %s152 = sphi 0, %s138
    %s156 = sphi 0, %s156
    %s158 = sphi 0, %s156
    %s159 = sphi 0, %s158
    %s173 = sphi 0, %s159
    %s177 = sphi 0, %s177
    %s179 = sphi 0, %s177
    %s180 = sphi 0, %s179
    %s194 = sphi 0, %s180
    %s198 = sphi 0, %s198
    %s200 = sphi 0, %s198
    %s201 = sphi 0, %s200
    %s215 = sphi 0, %s201
    %s221 = sphi 0, %s223
    %s224 = sphi 0, %s221
    %s225 = sphi 0, %s224
    %s241 = sphi 0, %s225
    %s247 = sphi 0, %s249
    %s250 = sphi 0, %s247
    %s251 = sphi 0, %s250
    %s267 = sphi 0, %s251
  $region4: #{encoder_block_forward.1} parent=0 // loop_header_branch
    %20 = sbr.rel (%p18) target = $region8
  $region5: #{encoder_block_forward.1} parent=0 // loop_body
    %s22 = ssub.s32 %s17, 1
    %s23 = ssub.s32 %s17, 2
    %s24 = sadd.s32 %s17, 1
    %s25 = ssub.s32 %s17, %s24
    %p26 = scmp.eq.s32.totalorder %s25, 0
    %s28 = sadd.s32 %s27, 1
    %s29 = scalar_select %p26, %s27, %s28
    %p32 = pneg %p26
    %p33 = scmp.eq.s32.totalorder %s17, 1
    %p34 = por %p32, %p33
    %p35 = scmp.ne.s32.totalorder %s27, %s30
    %p36 = scmp.eq.s32.totalorder %s17, 0
    %p37 = por %p35, %p36
    %p38 = scmp.ne.s32.totalorder %s27, %s30
    %p39 = scmp.eq.s32.totalorder %s22, 1
    %p40 = por %p38, %p39
    %p41 = scmp.ne.s32.totalorder %s30, %s31
    %p42 = scmp.eq.s32.totalorder %s22, 0
    %p43 = por %p41, %p42
    %p44 = scmp.ne.s32.totalorder %s30, %s31
    %p45 = scmp.eq.s32.totalorder %s23, 1
    %p46 = por %p44, %p45
    %p48 = scmp.ne.s32.totalorder %s31, %s47
    %p49 = scmp.eq.s32.totalorder %s23, 0
    %p50 = por %p48, %p49
    %s52 = sadd.s32 %s51, 1
    %p55 = scmp.eq.s32.totalorder %s17, 1
    %p56 = scmp.ne.s32.totalorder %s51, %s53
    %p57 = scmp.eq.s32.totalorder %s17, 0
    %p58 = por %p56, %p57
    %p59 = scmp.ne.s32.totalorder %s51, %s53
    %p60 = scmp.eq.s32.totalorder %s22, 1
    %p61 = por %p59, %p60
    %p62 = scmp.ne.s32.totalorder %s53, %s54
    %p63 = scmp.eq.s32.totalorder %s22, 0
    %p64 = por %p62, %p63
    %p65 = scmp.ne.s32.totalorder %s53, %s54
    %p66 = scmp.eq.s32.totalorder %s23, 1
    %p67 = por %p65, %p66
    %p69 = scmp.ne.s32.totalorder %s54, %s68
    %p70 = scmp.eq.s32.totalorder %s23, 0
    %p71 = por %p69, %p70
    %s73 = sadd.s32 %s72, 1
    %p76 = scmp.eq.s32.totalorder %s17, 1
    %p77 = scmp.ne.s32.totalorder %s72, %s74
    %p78 = scmp.eq.s32.totalorder %s17, 0
    %p79 = por %p77, %p78
    %p80 = scmp.ne.s32.totalorder %s72, %s74
    %p81 = scmp.eq.s32.totalorder %s22, 1
    %p82 = por %p80, %p81
    %p83 = scmp.ne.s32.totalorder %s74, %s75
    %p84 = scmp.eq.s32.totalorder %s22, 0
    %p85 = por %p83, %p84
    %p86 = scmp.ne.s32.totalorder %s74, %s75
    %p87 = scmp.eq.s32.totalorder %s23, 1
    %p88 = por %p86, %p87
    %p90 = scmp.ne.s32.totalorder %s75, %s89
    %p91 = scmp.eq.s32.totalorder %s23, 0
    %p92 = por %p90, %p91
    %s94 = sadd.s32 %s93, 1
    %p97 = scmp.eq.s32.totalorder %s17, 1
    %p98 = scmp.ne.s32.totalorder %s93, %s95
    %p99 = scmp.eq.s32.totalorder %s17, 0
    %p100 = por %p98, %p99
    %p101 = scmp.ne.s32.totalorder %s93, %s95
    %p102 = scmp.eq.s32.totalorder %s22, 1
    %p103 = por %p101, %p102
    %p104 = scmp.ne.s32.totalorder %s95, %s96
    %p105 = scmp.eq.s32.totalorder %s22, 0
    %p106 = por %p104, %p105
    %p107 = scmp.ne.s32.totalorder %s95, %s96
    %p108 = scmp.eq.s32.totalorder %s23, 1
    %p109 = por %p107, %p108
    %p111 = scmp.ne.s32.totalorder %s96, %s110
    %p112 = scmp.eq.s32.totalorder %s23, 0
    %p113 = por %p111, %p112
    %s115 = sadd.s32 %s114, 1
    %p118 = scmp.eq.s32.totalorder %s17, 1
    %p119 = scmp.ne.s32.totalorder %s114, %s116
    %p120 = scmp.eq.s32.totalorder %s17, 0
    %p121 = por %p119, %p120
    %p122 = scmp.ne.s32.totalorder %s114, %s116
    %p123 = scmp.eq.s32.totalorder %s22, 1
    %p124 = por %p122, %p123
    %p125 = scmp.ne.s32.totalorder %s116, %s117
    %p126 = scmp.eq.s32.totalorder %s22, 0
    %p127 = por %p125, %p126
    %p128 = scmp.ne.s32.totalorder %s116, %s117
    %p129 = scmp.eq.s32.totalorder %s23, 1
    %p130 = por %p128, %p129
    %p132 = scmp.ne.s32.totalorder %s117, %s131
    %p133 = scmp.eq.s32.totalorder %s23, 0
    %p134 = por %p132, %p133
    %s136 = sadd.s32 %s135, 1
    %p139 = scmp.eq.s32.totalorder %s17, 1
    %p140 = scmp.ne.s32.totalorder %s135, %s137
    %p141 = scmp.eq.s32.totalorder %s17, 0
    %p142 = por %p140, %p141
    %p143 = scmp.ne.s32.totalorder %s135, %s137
    %p144 = scmp.eq.s32.totalorder %s22, 1
    %p145 = por %p143, %p144
    %p146 = scmp.ne.s32.totalorder %s137, %s138
    %p147 = scmp.eq.s32.totalorder %s22, 0
    %p148 = por %p146, %p147
    %p149 = scmp.ne.s32.totalorder %s137, %s138
    %p150 = scmp.eq.s32.totalorder %s23, 1
    %p151 = por %p149, %p150
    %p153 = scmp.ne.s32.totalorder %s138, %s152
    %p154 = scmp.eq.s32.totalorder %s23, 0
    %p155 = por %p153, %p154
    %s157 = sadd.s32 %s156, 1
    %p160 = scmp.eq.s32.totalorder %s17, 1
    %p161 = scmp.ne.s32.totalorder %s156, %s158
    %p162 = scmp.eq.s32.totalorder %s17, 0
    %p163 = por %p161, %p162
    %p164 = scmp.ne.s32.totalorder %s156, %s158
    %p165 = scmp.eq.s32.totalorder %s22, 1
    %p166 = por %p164, %p165
    %p167 = scmp.ne.s32.totalorder %s158, %s159
    %p168 = scmp.eq.s32.totalorder %s22, 0
    %p169 = por %p167, %p168
    %p170 = scmp.ne.s32.totalorder %s158, %s159
    %p171 = scmp.eq.s32.totalorder %s23, 1
    %p172 = por %p170, %p171
    %p174 = scmp.ne.s32.totalorder %s159, %s173
    %p175 = scmp.eq.s32.totalorder %s23, 0
    %p176 = por %p174, %p175
    %s178 = sadd.s32 %s177, 1
    %p181 = scmp.eq.s32.totalorder %s17, 1
    %p182 = scmp.ne.s32.totalorder %s177, %s179
    %p183 = scmp.eq.s32.totalorder %s17, 0
    %p184 = por %p182, %p183
    %p185 = scmp.ne.s32.totalorder %s177, %s179
    %p186 = scmp.eq.s32.totalorder %s22, 1
    %p187 = por %p185, %p186
    %p188 = scmp.ne.s32.totalorder %s179, %s180
    %p189 = scmp.eq.s32.totalorder %s22, 0
    %p190 = por %p188, %p189
    %p191 = scmp.ne.s32.totalorder %s179, %s180
    %p192 = scmp.eq.s32.totalorder %s23, 1
    %p193 = por %p191, %p192
    %p195 = scmp.ne.s32.totalorder %s180, %s194
    %p196 = scmp.eq.s32.totalorder %s23, 0
    %p197 = por %p195, %p196
    %s199 = sadd.s32 %s198, 1
    %p202 = scmp.eq.s32.totalorder %s17, 1
    %p203 = scmp.ne.s32.totalorder %s198, %s200
    %p204 = scmp.eq.s32.totalorder %s17, 0
    %p205 = por %p203, %p204
    %p206 = scmp.ne.s32.totalorder %s198, %s200
    %p207 = scmp.eq.s32.totalorder %s22, 1
    %p208 = por %p206, %p207
    %p209 = scmp.ne.s32.totalorder %s200, %s201
    %p210 = scmp.eq.s32.totalorder %s22, 0
    %p211 = por %p209, %p210
    %p212 = scmp.ne.s32.totalorder %s200, %s201
    %p213 = scmp.eq.s32.totalorder %s23, 1
    %p214 = por %p212, %p213
    %p216 = scmp.ne.s32.totalorder %s201, %s215
    %p217 = scmp.eq.s32.totalorder %s23, 0
    %p218 = por %p216, %p217
    %s219 = ssub.s32 %s17, %s24
    %p220 = scmp.eq.s32.totalorder %s219, 0
    %s222 = sadd.s32 %s221, 1
    %s223 = scalar_select %p220, %s221, %s222
    %p226 = pneg %p220
    %p227 = scmp.eq.s32.totalorder %s17, 1
    %p228 = por %p226, %p227
    %p229 = scmp.ne.s32.totalorder %s221, %s224
    %p230 = scmp.eq.s32.totalorder %s17, 0
    %p231 = por %p229, %p230
    %p232 = scmp.ne.s32.totalorder %s221, %s224
    %p233 = scmp.eq.s32.totalorder %s22, 1
    %p234 = por %p232, %p233
    %p235 = scmp.ne.s32.totalorder %s224, %s225
    %p236 = scmp.eq.s32.totalorder %s22, 0
    %p237 = por %p235, %p236
    %p238 = scmp.ne.s32.totalorder %s224, %s225
    %p239 = scmp.eq.s32.totalorder %s23, 1
    %p240 = por %p238, %p239
    %p242 = scmp.ne.s32.totalorder %s225, %s241
    %p243 = scmp.eq.s32.totalorder %s23, 0
    %p244 = por %p242, %p243
    %s245 = ssub.s32 %s17, %s24
    %p246 = scmp.eq.s32.totalorder %s245, 0
    %s248 = sadd.s32 %s247, 1
    %s249 = scalar_select %p246, %s247, %s248
    %p252 = pneg %p246
    %p253 = scmp.eq.s32.totalorder %s17, 1
    %p254 = por %p252, %p253
    %p255 = scmp.ne.s32.totalorder %s247, %s250
    %p256 = scmp.eq.s32.totalorder %s17, 0
    %p257 = por %p255, %p256
    %p258 = scmp.ne.s32.totalorder %s247, %s250
    %p259 = scmp.eq.s32.totalorder %s22, 1
    %p260 = por %p258, %p259
    %p261 = scmp.ne.s32.totalorder %s250, %s251
    %p262 = scmp.eq.s32.totalorder %s22, 0
    %p263 = por %p261, %p262
    %p264 = scmp.ne.s32.totalorder %s250, %s251
    %p265 = scmp.eq.s32.totalorder %s23, 1
    %p266 = por %p264, %p265
    %p268 = scmp.ne.s32.totalorder %s251, %s267
    %p269 = scmp.eq.s32.totalorder %s23, 0
    %p270 = por %p268, %p269
    %p271 = scmp.le.s32.totalorder 1, %s17
    %p272 = scmp.lt.s32.totalorder %s17, 3
    %p273 = pnand %p271, %p272
    %p274 = pneg %p273
    // Predicated region
    $region9: #{encoder_block_forward.1} parent=5 // pred_check
      _
    $region10: #{encoder_block_forward.1} parent=5 // pred_check_branch
      %276 = sbr.rel (%p273) target = $region12
    $region11: #{encoder_block_forward.1} parent=5 // pred_region
      %s277 = ssub.s32 %s17, 1
      // Predicated region
      $region13: #{encoder_block_forward.1} parent=11 // pred_check
        %p278 = pneg %p64
      $region14: #{encoder_block_forward.1} parent=11 // pred_check_branch
        %280 = sbr.rel (%p278) target = $region16
      $region15: #{encoder_block_forward.1} parent=11 // pred_region
        _
      $region16: #{encoder_block_forward.1} parent=11 // pred_fallthru
        _
      // Predicated region
      $region17: #{encoder_block_forward.1} parent=11 // pred_check
        %p281 = pneg %p85
      $region18: #{encoder_block_forward.1} parent=11 // pred_check_branch
        %283 = sbr.rel (%p281) target = $region20
      $region19: #{encoder_block_forward.1} parent=11 // pred_region
        _
      $region20: #{encoder_block_forward.1} parent=11 // pred_fallthru
        _
      // Predicated region
      $region21: #{encoder_block_forward.1} parent=11 // pred_check
        %p284 = pneg %p106
      $region22: #{encoder_block_forward.1} parent=11 // pred_check_branch
        %286 = sbr.rel (%p284) target = $region24
      $region23: #{encoder_block_forward.1} parent=11 // pred_region
        _
      $region24: #{encoder_block_forward.1} parent=11 // pred_fallthru
        _
      // Predicated region
      $region25: #{encoder_block_forward.1} parent=11 // pred_check
        %p287 = pneg %p127
      $region26: #{encoder_block_forward.1} parent=11 // pred_check_branch
        %289 = sbr.rel (%p287) target = $region28
      $region27: #{encoder_block_forward.1} parent=11 // pred_region
        _
      $region28: #{encoder_block_forward.1} parent=11 // pred_fallthru
        _
      // Predicated region
      $region29: #{encoder_block_forward.1} parent=11 // pred_check
        %p290 = pneg %p148
      $region30: #{encoder_block_forward.1} parent=11 // pred_check_branch
        %292 = sbr.rel (%p290) target = $region32
      $region31: #{encoder_block_forward.1} parent=11 // pred_region
        _
      $region32: #{encoder_block_forward.1} parent=11 // pred_fallthru
        _
      // Predicated region
      $region33: #{encoder_block_forward.1} parent=11 // pred_check
        %p293 = pneg %p169
      $region34: #{encoder_block_forward.1} parent=11 // pred_check_branch
        %295 = sbr.rel (%p293) target = $region36
      $region35: #{encoder_block_forward.1} parent=11 // pred_region
        _
      $region36: #{encoder_block_forward.1} parent=11 // pred_fallthru
        _
      // Predicated region
      $region37: #{encoder_block_forward.1} parent=11 // pred_check
        %p296 = pneg %p190
      $region38: #{encoder_block_forward.1} parent=11 // pred_check_branch
        %298 = sbr.rel (%p296) target = $region40
      $region39: #{encoder_block_forward.1} parent=11 // pred_region
        _
      $region40: #{encoder_block_forward.1} parent=11 // pred_fallthru
        _
      // Predicated region
      $region41: #{encoder_block_forward.1} parent=11 // pred_check
        %p299 = pneg %p211
      $region42: #{encoder_block_forward.1} parent=11 // pred_check_branch
        %301 = sbr.rel (%p299) target = $region44
      $region43: #{encoder_block_forward.1} parent=11 // pred_region
        _
      $region44: #{encoder_block_forward.1} parent=11 // pred_fallthru
        _
    $region12: #{encoder_block_forward.1} parent=5 // pred_fallthru
      _
    %p302 = scmp.lt.s32.totalorder %s17, 2
    // Predicated region
    $region45: #{encoder_block_forward.1} parent=5 // pred_check
      %p303 = pneg %p302
    $region46: #{encoder_block_forward.1} parent=5 // pred_check_branch
      %305 = sbr.rel (%p303) target = $region48
    $region47: #{encoder_block_forward.1} parent=5 // pred_region
      // Predicated region
      $region49: #{encoder_block_forward.1} parent=47 // pred_check
        %p306 = pneg %p37
      $region50: #{encoder_block_forward.1} parent=47 // pred_check_branch
        %308 = sbr.rel (%p306) target = $region52
      $region51: #{encoder_block_forward.1} parent=47 // pred_region
        %p309 = scmp.lt.s32.totalorder %s17, 1
        %s310 = scalar_select %p309, %s17, 1
        %s311 = smul.addr %s310, 4
        %s312 = smul.addr %s311, 4
        %s313 = scalar_lea.vmem %s0, %s312
      $region52: #{encoder_block_forward.1} parent=47 // pred_fallthru
        _
    $region48: #{encoder_block_forward.1} parent=5 // pred_fallthru
      _
    %p314 = scmp.le.s32.totalorder 1, %s17
    %p315 = scmp.lt.s32.totalorder %s17, 3
    %p316 = pnand %p314, %p315
    %p317 = pneg %p316
    // Predicated region
    $region53: #{encoder_block_forward.1} parent=5 // pred_check
      _
    $region54: #{encoder_block_forward.1} parent=5 // pred_check_branch
      %319 = sbr.rel (%p316) target = $region56
    $region55: #{encoder_block_forward.1} parent=5 // pred_region
      %s320 = ssub.s32 %s17, 1
      %p321 = scmp.lt.s32.totalorder %s22, 1
      %s322 = scalar_select %p321, %s22, 1
      %s323 = smul.addr %s322, 4
      %s324 = smul.addr %s323, 4
      %s325 = scalar_lea.vmem %s0, %s324
      %p326 = pneg %p43
      %p327 = pneg %p40
      %p328 = pneg %p64
      %p329 = pneg %p61
      %p330 = pneg %p85
      %p331 = pneg %p82
      %p332 = pneg %p106
      %p333 = pneg %p103
      %p334 = pneg %p127
      %p335 = pneg %p124
      %p336 = pneg %p148
      %p337 = pneg %p145
      %p338 = pneg %p169
      %p339 = pneg %p166
      %p340 = pneg %p190
      %p341 = pneg %p187
      %p342 = pneg %p211
      %p343 = pneg %p208
      %p344 = pneg %p237
      %p345 = pneg %p234
      %p346 = scmp.lt.s32.totalorder %s22, 1
      %s347 = scalar_select %p346, %s22, 1
      %s348 = smul.addr %s347, 4
      %s349 = smul.addr %s348, 8
      %s350 = scalar_lea.vmem %s9, %s349
      %p351 = pneg %p263
      %p352 = pneg %p260
      %p353 = scmp.lt.s32.totalorder %s22, 1
      %s354 = scalar_select %p353, %s22, 1
      %s355 = smul.addr %s354, 2
      %s356 = smul.addr %s355, 8
      %s357 = scalar_lea.vmem %s10, %s356
      %p358 = scmp.lt.s32.totalorder %s22, 1
      %s359 = scalar_select %p358, %s22, 1
      %s360 = smul.addr %s359, 4
      %s361 = smul.addr %s360, 4
      %s362 = scalar_lea.vmem %s0, %s361
      %p363 = scmp.lt.s32.totalorder %s22, 1
      %s364 = scalar_select %p363, %s22, 1
      %s365 = smul.addr %s364, 4
      %s366 = smul.addr %s365, 8
      %s367 = scalar_lea.vmem %s9, %s366
      %p368 = scmp.lt.s32.totalorder %s22, 1
      %s369 = scalar_select %p368, %s22, 1
      %s370 = smul.addr %s369, 2
      %s371 = smul.addr %s370, 8
      %s372 = scalar_lea.vmem %s10, %s371
      %v373 = vld [vmem:[%s1] sm:$0xff]
      %v374 = vld [vmem:[%s1 + $0x8] sm:$0xff]
      %v375 = vld [vmem:[%s2] ss:$4 sm:$0xf]
      %s376 = scalar_lea.vmem %s2, 1
      %v377 = vld [vmem:[%s376] ss:$4 sm:$0xf]
      %s378 = scalar_lea.vmem %s2, 2
      %v379 = vld [vmem:[%s378] ss:$4 sm:$0xf]
      %v380 = vld [vmem:[%s2 + $0x3] sm:$0x1]
      %v381 = vlaneseq
      %v382 = vshrl.u32 %v381, 7
      %v383 = vand.u32 %v382, 4294967294
      %v384 = vlaneseq
      %v385 = vand.u32 %v384, 127
      %v386 = vand.u32 %v385, 4294967294
      %vm387 = vcmp.eq.s32.totalorder %v383, %v386
      %v388 = vsel %vm387, 1.0, 0.0
      %v389 = vadd.s32 %v382, 8
      %v390 = vand.u32 %v382, 4294967292
      %v391 = vand.u32 %v389, 4294967292
      %v392 = vand.u32 %v385, 4294967292
      %vm393 = vcmp.eq.s32.totalorder %v390, %v392
      %vm394 = vcmp.eq.s32.totalorder %v391, %v392
      %v395 = vsel %vm393, 1.0, 0.0
      %v396 = vsel %vm394, 1.0, 0.0
      %v397 = vld [vmem:[%s362] sm:$0xff]
      %v398 = vld [vmem:[%s362 + $0x8] sm:$0xff]
      %v399 = vld [vmem:[%s3] sm:$0xff]
      %401 = vset.pattern.permute.xlu0 0
      %402 = vperm.xlu0 %401, %v373
      %v403 = vpop.permute.xlu0 %402
      %v407 = vcombine.high %v397, %v397
      %v408 = vcombine.high %v398, %v398
      %vm409 = vcmask 31744
      %v411 = vsel %vm409, %v399, 0
      %vm413 = vcmask 1043456
      %v414 = vsel %vm413, %v397, 0
      %v416 = vsel %vm413, %v407, 0
      %v418 = vsel %vm413, %v398, 0
      %v420 = vsel %vm413, %v408, 0
      %422 = vmatprep.subr.mxu0 %v416
      %423 = vmatpush1.msra.mxu0 %v414
      %424 = vmatprep.subr.mxu0 0.0
      %425 = vmatpush1.msra.mxu0 0.0
      %426 = vmatprep.subr.mxu0 0.0
      %427 = vmatpush1.msra.mxu0 0.0
      %428 = vmatprep.subr.mxu0 0.0
      %429 = vmatpush1.msra.mxu0 0.0
      %430 = vmatprep.subr.mxu0 0.0
      %431 = vmatpush1.msra.mxu0 0.0
      %432 = vmatprep.subr.mxu0 0.0
      %433 = vmatpush1.msra.mxu0 0.0
      %434 = vmatprep.subr.mxu0 0.0
      %435 = vmatpush1.msra.mxu0 0.0
      %436 = vmatprep.subr.mxu0 0.0
      %437 = vmatpush1.msra.mxu0 0.0
      %438 = vmatprep.subr.mxu0 0.0
      %439 = vmatpush1.msra.mxu0 0.0
      %440 = vmatprep.subr.mxu0 0.0
      %441 = vmatpush1.msra.mxu0 0.0
      %442 = vmatprep.subr.mxu0 0.0
      %443 = vmatpush1.msra.mxu0 0.0
      %444 = vmatprep.subr.mxu0 0.0
      %445 = vmatpush1.msra.mxu0 0.0
      %446 = vmatprep.subr.mxu0 0.0
      %447 = vmatpush1.msra.mxu0 0.0
      %448 = vmatprep.subr.mxu0 0.0
      %449 = vmatpush1.msra.mxu0 0.0
      %450 = vmatprep.subr.mxu0 0.0
      %451 = vmatpush1.msra.mxu0 0.0
      %452 = vmatprep.subr.mxu0 0.0
      %453 = vmatpush1.msra.mxu0 0.0
      %454 = vmatprep.subr.mxu0 0.0
      %455 = vmatpush1.msra.mxu0 0.0
      %456 = vmatprep.subr.mxu0 0.0
      %457 = vmatpush1.msra.mxu0 0.0
      %458 = vmatprep.subr.mxu0 0.0
      %459 = vmatpush1.msra.mxu0 0.0
      %460 = vmatprep.subr.mxu0 0.0
      %461 = vmatpush1.msra.mxu0 0.0
      %462 = vmatprep.subr.mxu0 0.0
      %463 = vmatpush1.msra.mxu0 0.0
      %464 = vmatprep.subr.mxu0 0.0
      %465 = vmatpush1.msra.mxu0 0.0
      %466 = vmatprep.subr.mxu0 0.0
      %467 = vmatpush1.msra.mxu0 0.0
      %468 = vmatprep.subr.mxu0 0.0
      %469 = vmatpush1.msra.mxu0 0.0
      %470 = vmatprep.subr.mxu0 0.0
      %471 = vmatpush1.msra.mxu0 0.0
      %472 = vmatprep.subr.mxu0 0.0
      %473 = vmatpush1.msra.mxu0 0.0
      %474 = vmatprep.subr.mxu0 0.0
      %475 = vmatpush1.msra.mxu0 0.0
      %476 = vmatprep.subr.mxu0 0.0
      %477 = vmatpush1.msra.mxu0 0.0
      %478 = vmatprep.subr.mxu0 0.0
      %479 = vmatpush1.msra.mxu0 0.0
      %480 = vmatprep.subr.mxu0 0.0
      %481 = vmatpush1.msra.mxu0 0.0
      %482 = vmatprep.subr.mxu0 0.0
      %483 = vmatpush1.msra.mxu0 0.0
      %484 = vmatprep.subr.mxu0 0.0
      %485 = vmatpush1.msra.mxu0 0.0
      %486 = vmatprep.mubr.f32.mxu0 0.0
      %487 = vmatmul.mubr.f32.gmra.mrb[0].mxu0 %v411
      %v488 = vpop.f32.mrb[0].mxu0
      %v489 = vadd.f32 %v403, %v488
      %v490 = vpop.f32.mrb[0].mxu0
      %v491 = vadd.f32 %v403, %v490
      %492 = vdwg.mxu0
      %493 = vmatprep.subr.mxu0 %v420
      %494 = vmatpush1.msra.mxu0 %v418
      %495 = vmatprep.subr.mxu0 0.0
      %496 = vmatpush1.msra.mxu0 0.0
      %497 = vmatprep.subr.mxu0 0.0
      %498 = vmatpush1.msra.mxu0 0.0
      %499 = vmatprep.subr.mxu0 0.0
      %500 = vmatpush1.msra.mxu0 0.0
      %501 = vmatprep.subr.mxu0 0.0
      %502 = vmatpush1.msra.mxu0 0.0
      %503 = vmatprep.subr.mxu0 0.0
      %504 = vmatpush1.msra.mxu0 0.0
      %505 = vmatprep.subr.mxu0 0.0
      %506 = vmatpush1.msra.mxu0 0.0
      %507 = vmatprep.subr.mxu0 0.0
      %508 = vmatpush1.msra.mxu0 0.0
      %509 = vmatprep.subr.mxu0 0.0
      %510 = vmatpush1.msra.mxu0 0.0
      %511 = vmatprep.subr.mxu0 0.0
      %512 = vmatpush1.msra.mxu0 0.0
      %513 = vmatprep.subr.mxu0 0.0
      %514 = vmatpush1.msra.mxu0 0.0
      %515 = vmatprep.subr.mxu0 0.0
      %516 = vmatpush1.msra.mxu0 0.0
      %517 = vmatprep.subr.mxu0 0.0
      %518 = vmatpush1.msra.mxu0 0.0
      %519 = vmatprep.subr.mxu0 0.0
      %520 = vmatpush1.msra.mxu0 0.0
      %521 = vmatprep.subr.mxu0 0.0
      %522 = vmatpush1.msra.mxu0 0.0
      %523 = vmatprep.subr.mxu0 0.0
      %524 = vmatpush1.msra.mxu0 0.0
      %525 = vmatprep.subr.mxu0 0.0
      %526 = vmatpush1.msra.mxu0 0.0
      %527 = vmatprep.subr.mxu0 0.0
      %528 = vmatpush1.msra.mxu0 0.0
      %529 = vmatprep.subr.mxu0 0.0
      %530 = vmatpush1.msra.mxu0 0.0
      %531 = vmatprep.subr.mxu0 0.0
      %532 = vmatpush1.msra.mxu0 0.0
      %533 = vmatprep.subr.mxu0 0.0
      %534 = vmatpush1.msra.mxu0 0.0
      %535 = vmatprep.subr.mxu0 0.0
      %536 = vmatpush1.msra.mxu0 0.0
      %537 = vmatprep.subr.mxu0 0.0
      %538 = vmatpush1.msra.mxu0 0.0
      %539 = vmatprep.subr.mxu0 0.0
      %540 = vmatpush1.msra.mxu0 0.0
      %541 = vmatprep.subr.mxu0 0.0
      %542 = vmatpush1.msra.mxu0 0.0
      %543 = vmatprep.subr.mxu0 0.0
      %544 = vmatpush1.msra.mxu0 0.0
      %545 = vmatprep.subr.mxu0 0.0
      %546 = vmatpush1.msra.mxu0 0.0
      %547 = vmatprep.subr.mxu0 0.0
      %548 = vmatpush1.msra.mxu0 0.0
      %549 = vmatprep.subr.mxu0 0.0
      %550 = vmatpush1.msra.mxu0 0.0
      %551 = vmatprep.subr.mxu0 0.0
      %552 = vmatpush1.msra.mxu0 0.0
      %553 = vmatprep.subr.mxu0 0.0
      %554 = vmatpush1.msra.mxu0 0.0
      %555 = vmatprep.subr.mxu0 0.0
      %556 = vmatpush1.msra.mxu0 0.0
      %557 = vmatprep.mubr.f32.mxu0 0.0
      %558 = vmatmul.mubr.f32.gmra.mrb[0].mxu0 %v411
      %v559 = vpop.f32.mrb[0].mxu0
      %v560 = vadd.f32 %v403, %v559
      %v561 = vpop.f32.mrb[0].mxu0
      %v562 = vadd.f32 %v403, %v561
      %563 = vdwg.mxu0
      %v564 = vadd.f32 %v489, %v491
      %v565 = vadd.f32 %v564, %v560
      %v566 = vadd.f32 %v565, %v562
      %567 = vadd.xlane.f32.xlu0 %v566
      %v568 = vpop.xlane.xlu0 %567
      %v569 = vmul.f32 %v489, %v489
      %v570 = vmul.f32 %v491, %v491
      %v571 = vmul.f32 %v560, %v560
      %v572 = vmul.f32 %v562, %v562
      %v573 = vadd.f32 %v569, %v570
      %v574 = vadd.f32 %v573, %v571
      %v575 = vadd.f32 %v574, %v572
      %576 = vadd.xlane.f32.xlu0 %v575
      %v577 = vpop.xlane.xlu0 %576
      %vm578 = vcmp.eq.s32.totalorder %v385, 0
      %v579 = vsel %vm578, %v568, %v577
      %vm580 = vcmask 64512
      %v582 = vsel %vm580, %v388, 0
      %584 = vmatprep.subr.mxu0 0.0
      %585 = vmatpush1.msra.mxu0 %v579
      %586 = vmatprep.subr.mxu0 0.0
      %587 = vmatpush1.msra.mxu0 0.0
      %588 = vmatprep.subr.mxu0 0.0
      %589 = vmatpush1.msra.mxu0 0.0
      %590 = vmatprep.subr.mxu0 0.0
      %591 = vmatpush1.msra.mxu0 0.0
      %592 = vmatprep.subr.mxu0 0.0
      %593 = vmatpush1.msra.mxu0 0.0
      %594 = vmatprep.subr.mxu0 0.0
      %595 = vmatpush1.msra.mxu0 0.0
      %596 = vmatprep.subr.mxu0 0.0
      %597 = vmatpush1.msra.mxu0 0.0
      %598 = vmatprep.subr.mxu0 0.0
      %599 = vmatpush1.msra.mxu0 0.0
      %600 = vmatprep.subr.mxu0 0.0
      %601 = vmatpush1.msra.mxu0 0.0
      %602 = vmatprep.subr.mxu0 0.0
      %603 = vmatpush1.msra.mxu0 0.0
      %604 = vmatprep.subr.mxu0 0.0
      %605 = vmatpush1.msra.mxu0 0.0
      %606 = vmatprep.subr.mxu0 0.0
      %607 = vmatpush1.msra.mxu0 0.0
      %608 = vmatprep.subr.mxu0 0.0
      %609 = vmatpush1.msra.mxu0 0.0
      %610 = vmatprep.subr.mxu0 0.0
      %611 = vmatpush1.msra.mxu0 0.0
      %612 = vmatprep.subr.mxu0 0.0
      %613 = vmatpush1.msra.mxu0 0.0
      %614 = vmatprep.subr.mxu0 0.0
      %615 = vmatpush1.msra.mxu0 0.0
      %616 = vmatprep.subr.mxu0 0.0
      %617 = vmatpush1.msra.mxu0 0.0
      %618 = vmatprep.subr.mxu0 0.0
      %619 = vmatpush1.msra.mxu0 0.0
      %620 = vmatprep.subr.mxu0 0.0
      %621 = vmatpush1.msra.mxu0 0.0
      %622 = vmatprep.subr.mxu0 0.0
      %623 = vmatpush1.msra.mxu0 0.0
      %624 = vmatprep.subr.mxu0 0.0
      %625 = vmatpush1.msra.mxu0 0.0
      %626 = vmatprep.subr.mxu0 0.0
      %627 = vmatpush1.msra.mxu0 0.0
      %628 = vmatprep.subr.mxu0 0.0
      %629 = vmatpush1.msra.mxu0 0.0
      %630 = vmatprep.subr.mxu0 0.0
      %631 = vmatpush1.msra.mxu0 0.0
      %632 = vmatprep.subr.mxu0 0.0
      %633 = vmatpush1.msra.mxu0 0.0
      %634 = vmatprep.subr.mxu0 0.0
      %635 = vmatpush1.msra.mxu0 0.0
      %636 = vmatprep.subr.mxu0 0.0
      %637 = vmatpush1.msra.mxu0 0.0
      %638 = vmatprep.subr.mxu0 0.0
      %639 = vmatpush1.msra.mxu0 0.0
      %640 = vmatprep.subr.mxu0 0.0
      %641 = vmatpush1.msra.mxu0 0.0
      %642 = vmatprep.subr.mxu0 0.0
      %643 = vmatpush1.msra.mxu0 0.0
      %644 = vmatprep.subr.mxu0 0.0
      %645 = vmatpush1.msra.mxu0 0.0
      %646 = vmatprep.subr.mxu0 0.0
      %647 = vmatpush1.msra.mxu0 0.0
      %648 = vmatprep.mubr.f32.mxu0 0.0
      %649 = vmatmul.mubr.f32.gmra.mrb[0].mxu0 %v582
      %v650 = vpop.f32.mrb[0].mxu0
      %v651 = vadd.f32 0.0, %v650
      %v652 = vpop.f32.mrb[0].mxu0
      %653 = vdwg.mxu0
      %v654 = vmul.f32 %v651, 0.0009765625
      %v655 = vmul.f32 %v654, %v654
      %657 = vrot.lane.b32.xlu0 %v655, 1
      %v658 = vpop.permute.xlu0 %657
      %v660 = vsub.f32 %v654, %v658
      %v661 = vmax.f32 %v660, 0.0
      %663 = vset.pattern.permute.xlu0 0
      %664 = vperm.xlu0 %663, %v654
      %v665 = vpop.permute.xlu0 %664
      %v667 = vsub.f32 %v489, %v665
      %v668 = vsub.f32 %v491, %v665
      %v669 = vsub.f32 %v560, %v665
      %v670 = vsub.f32 %v562, %v665
      %v671 = vadd.f32 %v661, 1e-05
      %v672 = vrsqrt.pop %v671
      %674 = vset.pattern.permute.xlu0 1
      %675 = vperm.xlu0 %674, %v672
      %v676 = vpop.permute.xlu0 %675
      %v678 = vmul.f32 %v667, %v676
      %v679 = vmul.f32 %v668, %v676
      %v680 = vmul.f32 %v669, %v676
      %v681 = vmul.f32 %v670, %v676
      %682 = vset.pattern.permute.xlu0 1
      %683 = vperm.xlu0 %682, %v373
      %v684 = vpop.permute.xlu0 %683
      %v686 = vmul.f32 %v678, %v684
      %v687 = vmul.f32 %v679, %v684
      %v688 = vmul.f32 %v680, %v684
      %v689 = vmul.f32 %v681, %v684
      %690 = vset.pattern.permute.xlu0 2
      %691 = vperm.xlu0 %690, %v373
      %v692 = vpop.permute.xlu0 %691
      %v694 = vadd.f32 %v686, %v692
      %v695 = vadd.f32 %v687, %v692
      %v696 = vadd.f32 %v688, %v692
      %v697 = vadd.f32 %v689, %v692
      %vm698 = vcmp.ge.f32.partialorder %v694, 0.0
      %vm699 = vcmp.ge.f32.partialorder %v695, 0.0
      %vm700 = vcmp.ge.f32.partialorder %v696, 0.0
      %vm701 = vcmp.ge.f32.partialorder %v697, 0.0
      %702 = vrot.lane.b32.xlu0 %v373, 114
      %v703 = vpop.permute.xlu0 %702
      %s704 = vtos %v703
      %v705 = vstv %s704
      %v707 = vmul.f32 %v705, %v694
      %v708 = vmul.f32 %v705, %v695
      %v709 = vmul.f32 %v705, %v696
      %v710 = vmul.f32 %v705, %v697
      %v711 = vsel %vm698, %v694, %v707
      %v712 = vsel %vm699, %v695, %v708
      %v713 = vsel %vm700, %v696, %v709
      %v714 = vsel %vm701, %v697, %v710
      %715 = vrot.lane.b32.xlu0 %v711, 73
      %v716 = vpop.permute.xlu0 %715
      %717 = vrot.lane.b32.xlu0 %v712, 73
      %v718 = vpop.permute.xlu0 %717
      %719 = vrot.lane.b32.xlu0 %v713, 73
      %v720 = vpop.permute.xlu0 %719
      %721 = vrot.lane.b32.xlu0 %v714, 73
      %v722 = vpop.permute.xlu0 %721
      %vm723 = vcmp.lt.s32.totalorder %v385, 73
      %v724 = vsel %vm723, %v720, %v722
      %v725 = vsel %vm723, %v718, %v720
      %v726 = vsel %vm723, %v716, %v718
      %v727 = vsel %vm723, %v722, %v716
      %vm728 = vcmp.ge.s32.totalorder %v375, 1
      %vm729 = vcmp.ge.s32.totalorder %v377, 1
      %vm730 = vcmp.ge.s32.totalorder %v379, 1
      %vm731 = vmand %vm728, %vm729
      %vm732 = vmand %vm731, %vm730
      %v733 = vsel %vm732, 1.0, 0.0
      %v735 = vlaneseq
      %v736 = vshrl.u32 %v735, 7
      %v737 = vsub.s32 0, %v736
      %v738 = vrot.slane %v733, %v737
      %v739 = vlaneseq
      %v740 = vshrl.u32 %v739, 7
      %v741 = vsub.s32 1, %v740
      %v742 = vrot.slane %v733, %v741
      %v743 = vlaneseq
      %v744 = vshrl.u32 %v743, 7
      %v745 = vsub.s32 2, %v744
      %v746 = vrot.slane %v733, %v745
      %v747 = vlaneseq
      %v748 = vshrl.u32 %v747, 7
      %v749 = vsub.s32 3, %v748
      %v750 = vrot.slane %v733, %v749
      %v755 = vmul.f32 %v727, %v738
      %v756 = vmul.f32 %v726, %v742
      %v757 = vmul.f32 %v725, %v746
      %v758 = vmul.f32 %v724, %v750
      %759 = vrot.lane.b32.xlu0 %v711, 72
      %v760 = vpop.permute.xlu0 %759
      %761 = vrot.lane.b32.xlu0 %v712, 72
      %v762 = vpop.permute.xlu0 %761
      %763 = vrot.lane.b32.xlu0 %v713, 72
      %v764 = vpop.permute.xlu0 %763
      %765 = vrot.lane.b32.xlu0 %v714, 72
      %v766 = vpop.permute.xlu0 %765
      %vm767 = vcmp.lt.s32.totalorder %v385, 72
      %v768 = vsel %vm767, %v764, %v766
      %v769 = vsel %vm767, %v762, %v764
      %v770 = vsel %vm767, %v760, %v762
      %v771 = vsel %vm767, %v766, %v760
      %v772 = vsel %vm731, 1.0, 0.0
      %v774 = vlaneseq
      %v775 = vshrl.u32 %v774, 7
      %v776 = vsub.s32 0, %v775
      %v777 = vrot.slane %v772, %v776
      %v778 = vlaneseq
      %v779 = vshrl.u32 %v778, 7
      %v780 = vsub.s32 1, %v779
      %v781 = vrot.slane %v772, %v780
      %v782 = vlaneseq
      %v783 = vshrl.u32 %v782, 7
      %v784 = vsub.s32 2, %v783
      %v785 = vrot.slane %v772, %v784
      %v786 = vlaneseq
      %v787 = vshrl.u32 %v786, 7
      %v788 = vsub.s32 3, %v787
      %v789 = vrot.slane %v772, %v788
      %v794 = vmul.f32 %v771, %v777
      %v795 = vmul.f32 %v770, %v781
      %v796 = vmul.f32 %v769, %v785
      %v797 = vmul.f32 %v768, %v789
      %798 = vrot.lane.b32.xlu0 %v711, 71
      %v799 = vpop.permute.xlu0 %798
      %800 = vrot.lane.b32.xlu0 %v712, 71
      %v801 = vpop.permute.xlu0 %800
      %802 = vrot.lane.b32.xlu0 %v713, 71
      %v803 = vpop.permute.xlu0 %802
      %804 = vrot.lane.b32.xlu0 %v714, 71
      %v805 = vpop.permute.xlu0 %804
      %vm806 = vcmp.lt.s32.totalorder %v385, 71
      %v807 = vsel %vm806, %v803, %v805
      %v808 = vsel %vm806, %v801, %v803
      %v809 = vsel %vm806, %v799, %v801
      %v810 = vsel %vm806, %v805, %v799
      %vm811 = vcmp.le.s32.totalorder %v379, 6
      %vm812 = vmand %vm731, %vm811
      %v813 = vsel %vm812, 1.0, 0.0
      %v815 = vlaneseq
      %v816 = vshrl.u32 %v815, 7
      %v817 = vsub.s32 0, %v816
      %v818 = vrot.slane %v813, %v817
      %v819 = vlaneseq
      %v820 = vshrl.u32 %v819, 7
      %v821 = vsub.s32 1, %v820
      %v822 = vrot.slane %v813, %v821
      %v823 = vlaneseq
      %v824 = vshrl.u32 %v823, 7
      %v825 = vsub.s32 2, %v824
      %v826 = vrot.slane %v813, %v825
      %v827 = vlaneseq
      %v828 = vshrl.u32 %v827, 7
      %v829 = vsub.s32 3, %v828
      %v830 = vrot.slane %v813, %v829
      %v835 = vmul.f32 %v810, %v818
      %v836 = vmul.f32 %v809, %v822
      %v837 = vmul.f32 %v808, %v826
      %v838 = vmul.f32 %v807, %v830
      %839 = vrot.lane.b32.xlu0 %v711, 65
      %v840 = vpop.permute.xlu0 %839
      %841 = vrot.lane.b32.xlu0 %v712, 65
      %v842 = vpop.permute.xlu0 %841
      %843 = vrot.lane.b32.xlu0 %v713, 65
      %v844 = vpop.permute.xlu0 %843
      %845 = vrot.lane.b32.xlu0 %v714, 65
      %v846 = vpop.permute.xlu0 %845
      %vm847 = vcmp.lt.s32.totalorder %v385, 65
      %v848 = vsel %vm847, %v844, %v846
      %v849 = vsel %vm847, %v842, %v844
      %v850 = vsel %vm847, %v840, %v842
      %v851 = vsel %vm847, %v846, %v840
      %vm852 = vmand %vm728, %vm730
      %v853 = vsel %vm852, 1.0, 0.0
      %v855 = vlaneseq
      %v856 = vshrl.u32 %v855, 7
      %v857 = vsub.s32 0, %v856
      %v858 = vrot.slane %v853, %v857
      %v859 = vlaneseq
      %v860 = vshrl.u32 %v859, 7
      %v861 = vsub.s32 1, %v860
      %v862 = vrot.slane %v853, %v861
      %v863 = vlaneseq
      %v864 = vshrl.u32 %v863, 7
      %v865 = vsub.s32 2, %v864
      %v866 = vrot.slane %v853, %v865
      %v867 = vlaneseq
      %v868 = vshrl.u32 %v867, 7
      %v869 = vsub.s32 3, %v868
      %v870 = vrot.slane %v853, %v869
      %v875 = vmul.f32 %v851, %v858
      %v876 = vmul.f32 %v850, %v862
      %v877 = vmul.f32 %v849, %v866
      %v878 = vmul.f32 %v848, %v870
      %879 = vrot.lane.b32.xlu0 %v711, 64
      %v880 = vpop.permute.xlu0 %879
      %881 = vrot.lane.b32.xlu0 %v712, 64
      %v882 = vpop.permute.xlu0 %881
      %883 = vrot.lane.b32.xlu0 %v713, 64
      %v884 = vpop.permute.xlu0 %883
      %885 = vrot.lane.b32.xlu0 %v714, 64
      %v886 = vpop.permute.xlu0 %885
      %vm887 = vcmp.lt.s32.totalorder %v385, 64
      %v888 = vsel %vm887, %v884, %v886
      %v889 = vsel %vm887, %v882, %v884
      %v890 = vsel %vm887, %v880, %v882
      %v891 = vsel %vm887, %v886, %v880
      %v892 = vsel %vm728, 1.0, 0.0
      %v894 = vlaneseq
      %v895 = vshrl.u32 %v894, 7
      %v896 = vsub.s32 0, %v895
      %v897 = vrot.slane %v892, %v896
      %v898 = vlaneseq
      %v899 = vshrl.u32 %v898, 7
      %v900 = vsub.s32 1, %v899
      %v901 = vrot.slane %v892, %v900
      %v902 = vlaneseq
      %v903 = vshrl.u32 %v902, 7
      %v904 = vsub.s32 2, %v903
      %v905 = vrot.slane %v892, %v904
      %v906 = vlaneseq
      %v907 = vshrl.u32 %v906, 7
      %v908 = vsub.s32 3, %v907
      %v909 = vrot.slane %v892, %v908
      %v914 = vmul.f32 %v891, %v897
      %v915 = vmul.f32 %v890, %v901
      %v916 = vmul.f32 %v889, %v905
      %v917 = vmul.f32 %v888, %v909
      %918 = vrot.lane.b32.xlu0 %v711, 63
      %v919 = vpop.permute.xlu0 %918
      %920 = vrot.lane.b32.xlu0 %v712, 63
      %v921 = vpop.permute.xlu0 %920
      %922 = vrot.lane.b32.xlu0 %v713, 63
      %v923 = vpop.permute.xlu0 %922
      %924 = vrot.lane.b32.xlu0 %v714, 63
      %v925 = vpop.permute.xlu0 %924
      %vm926 = vcmp.lt.s32.totalorder %v385, 63
      %v927 = vsel %vm926, %v923, %v925
      %v928 = vsel %vm926, %v921, %v923
      %v929 = vsel %vm926, %v919, %v921
      %v930 = vsel %vm926, %v925, %v919
      %vm931 = vmand %vm728, %vm811
      %v932 = vsel %vm931, 1.0, 0.0
      %v934 = vlaneseq
      %v935 = vshrl.u32 %v934, 7
      %v936 = vsub.s32 0, %v935
      %v937 = vrot.slane %v932, %v936
      %v938 = vlaneseq
      %v939 = vshrl.u32 %v938, 7
      %v940 = vsub.s32 1, %v939
      %v941 = vrot.slane %v932, %v940
      %v942 = vlaneseq
      %v943 = vshrl.u32 %v942, 7
      %v944 = vsub.s32 2, %v943
      %v945 = vrot.slane %v932, %v944
      %v946 = vlaneseq
      %v947 = vshrl.u32 %v946, 7
      %v948 = vsub.s32 3, %v947
      %v949 = vrot.slane %v932, %v948
      %v954 = vmul.f32 %v930, %v937
      %v955 = vmul.f32 %v929, %v941
      %v956 = vmul.f32 %v928, %v945
      %v957 = vmul.f32 %v927, %v949
      %958 = vrot.lane.b32.xlu0 %v711, 57
      %v959 = vpop.permute.xlu0 %958
      %960 = vrot.lane.b32.xlu0 %v712, 57
      %v961 = vpop.permute.xlu0 %960
      %962 = vrot.lane.b32.xlu0 %v713, 57
      %v963 = vpop.permute.xlu0 %962
      %964 = vrot.lane.b32.xlu0 %v714, 57
      %v965 = vpop.permute.xlu0 %964
      %vm966 = vcmp.lt.s32.totalorder %v385, 57
      %v967 = vsel %vm966, %v963, %v965
      %v968 = vsel %vm966, %v961, %v963
      %v969 = vsel %vm966, %v959, %v961
      %v970 = vsel %vm966, %v965, %v959
      %vm971 = vcmp.le.s32.totalorder %v377, 6
      %vm972 = vmand %vm728, %vm971
      %vm973 = vmand %vm972, %vm730
      %v974 = vsel %vm973, 1.0, 0.0
      %v976 = vlaneseq
      %v977 = vshrl.u32 %v976, 7
      %v978 = vsub.s32 0, %v977
      %v979 = vrot.slane %v974, %v978
      %v980 = vlaneseq
      %v981 = vshrl.u32 %v980, 7
      %v982 = vsub.s32 1, %v981
      %v983 = vrot.slane %v974, %v982
      %v984 = vlaneseq
      %v985 = vshrl.u32 %v984, 7
      %v986 = vsub.s32 2, %v985
      %v987 = vrot.slane %v974, %v986
      %v988 = vlaneseq
      %v989 = vshrl.u32 %v988, 7
      %v990 = vsub.s32 3, %v989
      %v991 = vrot.slane %v974, %v990
      %v996 = vmul.f32 %v970, %v979
      %v997 = vmul.f32 %v969, %v983
      %v998 = vmul.f32 %v968, %v987
      %v999 = vmul.f32 %v967, %v991
      %1000 = vrot.lane.b32.xlu0 %v711, 56
      %v1001 = vpop.permute.xlu0 %1000
      %1002 = vrot.lane.b32.xlu0 %v712, 56
      %v1003 = vpop.permute.xlu0 %1002
      %1004 = vrot.lane.b32.xlu0 %v713, 56
      %v1005 = vpop.permute.xlu0 %1004
      %1006 = vrot.lane.b32.xlu0 %v714, 56
      %v1007 = vpop.permute.xlu0 %1006
      %vm1008 = vcmp.lt.s32.totalorder %v385, 56
      %v1009 = vsel %vm1008, %v1005, %v1007
      %v1010 = vsel %vm1008, %v1003, %v1005
      %v1011 = vsel %vm1008, %v1001, %v1003
      %v1012 = vsel %vm1008, %v1007, %v1001
      %v1013 = vsel %vm972, 1.0, 0.0
      %v1015 = vlaneseq
      %v1016 = vshrl.u32 %v1015, 7
      %v1017 = vsub.s32 0, %v1016
      %v1018 = vrot.slane %v1013, %v1017
      %v1019 = vlaneseq
      %v1020 = vshrl.u32 %v1019, 7
      %v1021 = vsub.s32 1, %v1020
      %v1022 = vrot.slane %v1013, %v1021
      %v1023 = vlaneseq
      %v1024 = vshrl.u32 %v1023, 7
      %v1025 = vsub.s32 2, %v1024
      %v1026 = vrot.slane %v1013, %v1025
      %v1027 = vlaneseq
      %v1028 = vshrl.u32 %v1027, 7
      %v1029 = vsub.s32 3, %v1028
      %v1030 = vrot.slane %v1013, %v1029
      %v1035 = vmul.f32 %v1012, %v1018
      %v1036 = vmul.f32 %v1011, %v1022
      %v1037 = vmul.f32 %v1010, %v1026
      %v1038 = vmul.f32 %v1009, %v1030
      %1039 = vrot.lane.b32.xlu0 %v711, 55
      %v1040 = vpop.permute.xlu0 %1039
      %1041 = vrot.lane.b32.xlu0 %v712, 55
      %v1042 = vpop.permute.xlu0 %1041
      %1043 = vrot.lane.b32.xlu0 %v713, 55
      %v1044 = vpop.permute.xlu0 %1043
      %1045 = vrot.lane.b32.xlu0 %v714, 55
      %v1046 = vpop.permute.xlu0 %1045
      %vm1047 = vcmp.lt.s32.totalorder %v385, 55
      %v1048 = vsel %vm1047, %v1044, %v1046
      %v1049 = vsel %vm1047, %v1042, %v1044
      %v1050 = vsel %vm1047, %v1040, %v1042
      %v1051 = vsel %vm1047, %v1046, %v1040
      %vm1052 = vmand %vm972, %vm811
      %v1053 = vsel %vm1052, 1.0, 0.0
      %v1055 = vlaneseq
      %v1056 = vshrl.u32 %v1055, 7
      %v1057 = vsub.s32 0, %v1056
      %v1058 = vrot.slane %v1053, %v1057
      %v1059 = vlaneseq
      %v1060 = vshrl.u32 %v1059, 7
      %v1061 = vsub.s32 1, %v1060
      %v1062 = vrot.slane %v1053, %v1061
      %v1063 = vlaneseq
      %v1064 = vshrl.u32 %v1063, 7
      %v1065 = vsub.s32 2, %v1064
      %v1066 = vrot.slane %v1053, %v1065
      %v1067 = vlaneseq
      %v1068 = vshrl.u32 %v1067, 7
      %v1069 = vsub.s32 3, %v1068
      %v1070 = vrot.slane %v1053, %v1069
      %v1075 = vmul.f32 %v1051, %v1058
      %v1076 = vmul.f32 %v1050, %v1062
      %v1077 = vmul.f32 %v1049, %v1066
      %v1078 = vmul.f32 %v1048, %v1070
      %1079 = vrot.lane.b32.xlu0 %v711, 9
      %v1080 = vpop.permute.xlu0 %1079
      %1081 = vrot.lane.b32.xlu0 %v712, 9
      %v1082 = vpop.permute.xlu0 %1081
      %1083 = vrot.lane.b32.xlu0 %v713, 9
      %v1084 = vpop.permute.xlu0 %1083
      %1085 = vrot.lane.b32.xlu0 %v714, 9
      %v1086 = vpop.permute.xlu0 %1085
      %vm1087 = vcmp.lt.s32.totalorder %v385, 9
      %v1088 = vsel %vm1087, %v1084, %v1086
      %v1089 = vsel %vm1087, %v1082, %v1084
      %v1090 = vsel %vm1087, %v1080, %v1082
      %v1091 = vsel %vm1087, %v1086, %v1080
      %vm1092 = vmand %vm729, %vm730
      %v1093 = vsel %vm1092, 1.0, 0.0
      %v1095 = vlaneseq
      %v1096 = vshrl.u32 %v1095, 7
      %v1097 = vsub.s32 0, %v1096
      %v1098 = vrot.slane %v1093, %v1097
      %v1099 = vlaneseq
      %v1100 = vshrl.u32 %v1099, 7
      %v1101 = vsub.s32 1, %v1100
      %v1102 = vrot.slane %v1093, %v1101
      %v1103 = vlaneseq
      %v1104 = vshrl.u32 %v1103, 7
      %v1105 = vsub.s32 2, %v1104
      %v1106 = vrot.slane %v1093, %v1105
      %v1107 = vlaneseq
      %v1108 = vshrl.u32 %v1107, 7
      %v1109 = vsub.s32 3, %v1108
      %v1110 = vrot.slane %v1093, %v1109
      %v1115 = vmul.f32 %v1091, %v1098
      %v1116 = vmul.f32 %v1090, %v1102
      %v1117 = vmul.f32 %v1089, %v1106
      %v1118 = vmul.f32 %v1088, %v1110
      %1119 = vrot.lane.b32.xlu0 %v711, 8
      %v1120 = vpop.permute.xlu0 %1119
      %1121 = vrot.lane.b32.xlu0 %v712, 8
      %v1122 = vpop.permute.xlu0 %1121
      %1123 = vrot.lane.b32.xlu0 %v713, 8
      %v1124 = vpop.permute.xlu0 %1123
      %1125 = vrot.lane.b32.xlu0 %v714, 8
      %v1126 = vpop.permute.xlu0 %1125
      %vm1127 = vcmp.lt.s32.totalorder %v385, 8
      %v1128 = vsel %vm1127, %v1124, %v1126
      %v1129 = vsel %vm1127, %v1122, %v1124
      %v1130 = vsel %vm1127, %v1120, %v1122
      %v1131 = vsel %vm1127, %v1126, %v1120
      %v1132 = vsel %vm729, 1.0, 0.0
      %v1134 = vlaneseq
      %v1135 = vshrl.u32 %v1134, 7
      %v1136 = vsub.s32 0, %v1135
      %v1137 = vrot.slane %v1132, %v1136
      %v1138 = vlaneseq
      %v1139 = vshrl.u32 %v1138, 7
      %v1140 = vsub.s32 1, %v1139
      %v1141 = vrot.slane %v1132, %v1140
      %v1142 = vlaneseq
      %v1143 = vshrl.u32 %v1142, 7
      %v1144 = vsub.s32 2, %v1143
      %v1145 = vrot.slane %v1132, %v1144
      %v1146 = vlaneseq
      %v1147 = vshrl.u32 %v1146, 7
      %v1148 = vsub.s32 3, %v1147
      %v1149 = vrot.slane %v1132, %v1148
      %v1154 = vmul.f32 %v1131, %v1137
      %v1155 = vmul.f32 %v1130, %v1141
      %v1156 = vmul.f32 %v1129, %v1145
      %v1157 = vmul.f32 %v1128, %v1149
      %1158 = vrot.lane.b32.xlu0 %v711, 7
      %v1159 = vpop.permute.xlu0 %1158
      %1160 = vrot.lane.b32.xlu0 %v712, 7
      %v1161 = vpop.permute.xlu0 %1160
      %1162 = vrot.lane.b32.xlu0 %v713, 7
      %v1163 = vpop.permute.xlu0 %1162
      %1164 = vrot.lane.b32.xlu0 %v714, 7
      %v1165 = vpop.permute.xlu0 %1164
      %vm1166 = vcmp.lt.s32.totalorder %v385, 7
      %v1167 = vsel %vm1166, %v1163, %v1165
      %v1168 = vsel %vm1166, %v1161, %v1163
      %v1169 = vsel %vm1166, %v1159, %v1161
      %v1170 = vsel %vm1166, %v1165, %v1159
      %vm1171 = vmand %vm729, %vm811
      %v1172 = vsel %vm1171, 1.0, 0.0
      %v1174 = vlaneseq
      %v1175 = vshrl.u32 %v1174, 7
      %v1176 = vsub.s32 0, %v1175
      %v1177 = vrot.slane %v1172, %v1176
      %v1178 = vlaneseq
      %v1179 = vshrl.u32 %v1178, 7
      %v1180 = vsub.s32 1, %v1179
      %v1181 = vrot.slane %v1172, %v1180
      %v1182 = vlaneseq
      %v1183 = vshrl.u32 %v1182, 7
      %v1184 = vsub.s32 2, %v1183
      %v1185 = vrot.slane %v1172, %v1184
      %v1186 = vlaneseq
      %v1187 = vshrl.u32 %v1186, 7
      %v1188 = vsub.s32 3, %v1187
      %v1189 = vrot.slane %v1172, %v1188
      %v1194 = vmul.f32 %v1170, %v1177
      %v1195 = vmul.f32 %v1169, %v1181
      %v1196 = vmul.f32 %v1168, %v1185
      %v1197 = vmul.f32 %v1167, %v1189
      %1198 = vrot.lane.b32.xlu0 %v711, 1
      %v1199 = vpop.permute.xlu0 %1198
      %1200 = vrot.lane.b32.xlu0 %v712, 1
      %v1201 = vpop.permute.xlu0 %1200
      %1202 = vrot.lane.b32.xlu0 %v713, 1
      %v1203 = vpop.permute.xlu0 %1202
      %1204 = vrot.lane.b32.xlu0 %v714, 1
      %v1205 = vpop.permute.xlu0 %1204
      %vm1206 = vcmp.lt.s32.totalorder %v385, 1
      %v1207 = vsel %vm1206, %v1203, %v1205
      %v1208 = vsel %vm1206, %v1201, %v1203
      %v1209 = vsel %vm1206, %v1199, %v1201
      %v1210 = vsel %vm1206, %v1205, %v1199
      %v1211 = vsel %vm730, 1.0, 0.0
      %v1213 = vlaneseq
      %v1214 = vshrl.u32 %v1213, 7
      %v1215 = vsub.s32 0, %v1214
      %v1216 = vrot.slane %v1211, %v1215
      %v1217 = vlaneseq
      %v1218 = vshrl.u32 %v1217, 7
      %v1219 = vsub.s32 1, %v1218
      %v1220 = vrot.slane %v1211, %v1219
      %v1221 = vlaneseq
      %v1222 = vshrl.u32 %v1221, 7
      %v1223 = vsub.s32 2, %v1222
      %v1224 = vrot.slane %v1211, %v1223
      %v1225 = vlaneseq
      %v1226 = vshrl.u32 %v1225, 7
      %v1227 = vsub.s32 3, %v1226
      %v1228 = vrot.slane %v1211, %v1227
      %v1233 = vmul.f32 %v1210, %v1216
      %v1234 = vmul.f32 %v1209, %v1220
      %v1235 = vmul.f32 %v1208, %v1224
      %v1236 = vmul.f32 %v1207, %v1228
      %1237 = vrot.lane.b32.xlu0 %v711, 127
      %v1238 = vpop.permute.xlu0 %1237
      %1239 = vrot.lane.b32.xlu0 %v712, 127
      %v1240 = vpop.permute.xlu0 %1239
      %1241 = vrot.lane.b32.xlu0 %v713, 127
      %v1242 = vpop.permute.xlu0 %1241
      %1243 = vrot.lane.b32.xlu0 %v714, 127
      %v1244 = vpop.permute.xlu0 %1243
      %vm1245 = vcmp.lt.s32.totalorder %v385, 127
      %v1246 = vsel %vm1245, %v1242, %v1244
      %v1247 = vsel %vm1245, %v1240, %v1242
      %v1248 = vsel %vm1245, %v1238, %v1240
      %v1249 = vsel %vm1245, %v1244, %v1238
      %v1250 = vsel %vm811, 1.0, 0.0
      %v1252 = vlaneseq
      %v1253 = vshrl.u32 %v1252, 7
      %v1254 = vsub.s32 0, %v1253
      %v1255 = vrot.slane %v1250, %v1254
      %v1256 = vlaneseq
      %v1257 = vshrl.u32 %v1256, 7
      %v1258 = vsub.s32 1, %v1257
      %v1259 = vrot.slane %v1250, %v1258
      %v1260 = vlaneseq
      %v1261 = vshrl.u32 %v1260, 7
      %v1262 = vsub.s32 2, %v1261
      %v1263 = vrot.slane %v1250, %v1262
      %v1264 = vlaneseq
      %v1265 = vshrl.u32 %v1264, 7
      %v1266 = vsub.s32 3, %v1265
      %v1267 = vrot.slane %v1250, %v1266
      %v1272 = vmul.f32 %v1248, %v1255
      %v1273 = vmul.f32 %v1247, %v1259
      %v1274 = vmul.f32 %v1246, %v1263
      %v1275 = vmul.f32 %v1249, %v1267
      %1276 = vrot.lane.b32.xlu0 %v711, 121
      %v1277 = vpop.permute.xlu0 %1276
      %1278 = vrot.lane.b32.xlu0 %v712, 121
      %v1279 = vpop.permute.xlu0 %1278
      %1280 = vrot.lane.b32.xlu0 %v713, 121
      %v1281 = vpop.permute.xlu0 %1280
      %1282 = vrot.lane.b32.xlu0 %v714, 121
      %v1283 = vpop.permute.xlu0 %1282
      %vm1284 = vcmp.lt.s32.totalorder %v385, 121
      %v1285 = vsel %vm1284, %v1281, %v1283
      %v1286 = vsel %vm1284, %v1279, %v1281
      %v1287 = vsel %vm1284, %v1277, %v1279
      %v1288 = vsel %vm1284, %v1283, %v1277
      %vm1289 = vmand %vm971, %vm730
      %v1290 = vsel %vm1289, 1.0, 0.0
      %v1292 = vlaneseq
      %v1293 = vshrl.u32 %v1292, 7
      %v1294 = vsub.s32 0, %v1293
      %v1295 = vrot.slane %v1290, %v1294
      %v1296 = vlaneseq
      %v1297 = vshrl.u32 %v1296, 7
      %v1298 = vsub.s32 1, %v1297
      %v1299 = vrot.slane %v1290, %v1298
      %v1300 = vlaneseq
      %v1301 = vshrl.u32 %v1300, 7
      %v1302 = vsub.s32 2, %v1301
      %v1303 = vrot.slane %v1290, %v1302
      %v1304 = vlaneseq
      %v1305 = vshrl.u32 %v1304, 7
      %v1306 = vsub.s32 3, %v1305
      %v1307 = vrot.slane %v1290, %v1306
      %v1312 = vmul.f32 %v1287, %v1295
      %v1313 = vmul.f32 %v1286, %v1299
      %v1314 = vmul.f32 %v1285, %v1303
      %v1315 = vmul.f32 %v1288, %v1307
      %1316 = vrot.lane.b32.xlu0 %v711, 120
      %v1317 = vpop.permute.xlu0 %1316
      %1318 = vrot.lane.b32.xlu0 %v712, 120
      %v1319 = vpop.permute.xlu0 %1318
      %1320 = vrot.lane.b32.xlu0 %v713, 120
      %v1321 = vpop.permute.xlu0 %1320
      %1322 = vrot.lane.b32.xlu0 %v714, 120
      %v1323 = vpop.permute.xlu0 %1322
      %vm1324 = vcmp.lt.s32.totalorder %v385, 120
      %v1325 = vsel %vm1324, %v1321, %v1323
      %v1326 = vsel %vm1324, %v1319, %v1321
      %v1327 = vsel %vm1324, %v1317, %v1319
      %v1328 = vsel %vm1324, %v1323, %v1317
      %v1329 = vsel %vm971, 1.0, 0.0
      %v1331 = vlaneseq
      %v1332 = vshrl.u32 %v1331, 7
      %v1333 = vsub.s32 0, %v1332
      %v1334 = vrot.slane %v1329, %v1333
      %v1335 = vlaneseq
      %v1336 = vshrl.u32 %v1335, 7
      %v1337 = vsub.s32 1, %v1336
      %v1338 = vrot.slane %v1329, %v1337
      %v1339 = vlaneseq
      %v1340 = vshrl.u32 %v1339, 7
      %v1341 = vsub.s32 2, %v1340
      %v1342 = vrot.slane %v1329, %v1341
      %v1343 = vlaneseq
      %v1344 = vshrl.u32 %v1343, 7
      %v1345 = vsub.s32 3, %v1344
      %v1346 = vrot.slane %v1329, %v1345
      %v1351 = vmul.f32 %v1327, %v1334
      %v1352 = vmul.f32 %v1326, %v1338
      %v1353 = vmul.f32 %v1325, %v1342
      %v1354 = vmul.f32 %v1328, %v1346
      %1355 = vrot.lane.b32.xlu0 %v711, 119
      %v1356 = vpop.permute.xlu0 %1355
      %1357 = vrot.lane.b32.xlu0 %v712, 119
      %v1358 = vpop.permute.xlu0 %1357
      %1359 = vrot.lane.b32.xlu0 %v713, 119
      %v1360 = vpop.permute.xlu0 %1359
      %1361 = vrot.lane.b32.xlu0 %v714, 119
      %v1362 = vpop.permute.xlu0 %1361
      %vm1363 = vcmp.lt.s32.totalorder %v385, 119
      %v1364 = vsel %vm1363, %v1360, %v1362
      %v1365 = vsel %vm1363, %v1358, %v1360
      %v1366 = vsel %vm1363, %v1356, %v1358
      %v1367 = vsel %vm1363, %v1362, %v1356
      %vm1368 = vmand %vm971, %vm811
      %v1369 = vsel %vm1368, 1.0, 0.0
      %v1371 = vlaneseq
      %v1372 = vshrl.u32 %v1371, 7
      %v1373 = vsub.s32 0, %v1372
      %v1374 = vrot.slane %v1369, %v1373
      %v1375 = vlaneseq
      %v1376 = vshrl.u32 %v1375, 7
      %v1377 = vsub.s32 1, %v1376
      %v1378 = vrot.slane %v1369, %v1377
      %v1379 = vlaneseq
      %v1380 = vshrl.u32 %v1379, 7
      %v1381 = vsub.s32 2, %v1380
      %v1382 = vrot.slane %v1369, %v1381
      %v1383 = vlaneseq
      %v1384 = vshrl.u32 %v1383, 7
      %v1385 = vsub.s32 3, %v1384
      %v1386 = vrot.slane %v1369, %v1385
      %v1391 = vmul.f32 %v1366, %v1374
      %v1392 = vmul.f32 %v1365, %v1378
      %v1393 = vmul.f32 %v1364, %v1382
      %v1394 = vmul.f32 %v1367, %v1386
      %vm1395 = vcmp.le.s32.totalorder %v375, 6
      %vm1396 = vmand %vm1395, %vm729
      %vm1397 = vmand %vm1396, %vm730
      %v1398 = vsel %vm1397, 1.0, 0.0
      %v1400 = vlaneseq
      %v1401 = vshrl.u32 %v1400, 7
      %v1402 = vsub.s32 0, %v1401
      %v1403 = vrot.slane %v1398, %v1402
      %v1404 = vlaneseq
      %v1405 = vshrl.u32 %v1404, 7
      %v1406 = vsub.s32 1, %v1405
      %v1407 = vrot.slane %v1398, %v1406
      %v1408 = vlaneseq
      %v1409 = vshrl.u32 %v1408, 7
      %v1410 = vsub.s32 2, %v1409
      %v1411 = vrot.slane %v1398, %v1410
      %v1412 = vlaneseq
      %v1413 = vshrl.u32 %v1412, 7
      %v1414 = vsub.s32 3, %v1413
      %v1415 = vrot.slane %v1398, %v1414
      %v1420 = vmul.f32 %v726, %v1403
      %v1421 = vmul.f32 %v725, %v1407
      %v1422 = vmul.f32 %v724, %v1411
      %v1423 = vmul.f32 %v727, %v1415
      %v1424 = vsel %vm1396, 1.0, 0.0
      %v1426 = vlaneseq
      %v1427 = vshrl.u32 %v1426, 7
      %v1428 = vsub.s32 0, %v1427
      %v1429 = vrot.slane %v1424, %v1428
      %v1430 = vlaneseq
      %v1431 = vshrl.u32 %v1430, 7
      %v1432 = vsub.s32 1, %v1431
      %v1433 = vrot.slane %v1424, %v1432
      %v1434 = vlaneseq
      %v1435 = vshrl.u32 %v1434, 7
      %v1436 = vsub.s32 2, %v1435
      %v1437 = vrot.slane %v1424, %v1436
      %v1438 = vlaneseq
      %v1439 = vshrl.u32 %v1438, 7
      %v1440 = vsub.s32 3, %v1439
      %v1441 = vrot.slane %v1424, %v1440
      %v1446 = vmul.f32 %v770, %v1429
      %v1447 = vmul.f32 %v769, %v1433
      %v1448 = vmul.f32 %v768, %v1437
      %v1449 = vmul.f32 %v771, %v1441
      %vm1450 = vmand %vm1396, %vm811
      %v1451 = vsel %vm1450, 1.0, 0.0
      %v1453 = vlaneseq
      %v1454 = vshrl.u32 %v1453, 7
      %v1455 = vsub.s32 0, %v1454
      %v1456 = vrot.slane %v1451, %v1455
      %v1457 = vlaneseq
      %v1458 = vshrl.u32 %v1457, 7
      %v1459 = vsub.s32 1, %v1458
      %v1460 = vrot.slane %v1451, %v1459
      %v1461 = vlaneseq
      %v1462 = vshrl.u32 %v1461, 7
      %v1463 = vsub.s32 2, %v1462
      %v1464 = vrot.slane %v1451, %v1463
      %v1465 = vlaneseq
      %v1466 = vshrl.u32 %v1465, 7
      %v1467 = vsub.s32 3, %v1466
      %v1468 = vrot.slane %v1451, %v1467
      %v1473 = vmul.f32 %v809, %v1456
      %v1474 = vmul.f32 %v808, %v1460
      %v1475 = vmul.f32 %v807, %v1464
      %v1476 = vmul.f32 %v810, %v1468
      %vm1477 = vmand %vm1395, %vm730
      %v1478 = vsel %vm1477, 1.0, 0.0
      %v1480 = vlaneseq
      %v1481 = vshrl.u32 %v1480, 7
      %v1482 = vsub.s32 0, %v1481
      %v1483 = vrot.slane %v1478, %v1482
      %v1484 = vlaneseq
      %v1485 = vshrl.u32 %v1484, 7
      %v1486 = vsub.s32 1, %v1485
      %v1487 = vrot.slane %v1478, %v1486
      %v1488 = vlaneseq
      %v1489 = vshrl.u32 %v1488, 7
      %v1490 = vsub.s32 2, %v1489
      %v1491 = vrot.slane %v1478, %v1490
      %v1492 = vlaneseq
      %v1493 = vshrl.u32 %v1492, 7
      %v1494 = vsub.s32 3, %v1493
      %v1495 = vrot.slane %v1478, %v1494
      %v1500 = vmul.f32 %v850, %v1483
      %v1501 = vmul.f32 %v849, %v1487
      %v1502 = vmul.f32 %v848, %v1491
      %v1503 = vmul.f32 %v851, %v1495
      %v1504 = vsel %vm1395, 1.0, 0.0
      %v1506 = vlaneseq
      %v1507 = vshrl.u32 %v1506, 7
      %v1508 = vsub.s32 0, %v1507
      %v1509 = vrot.slane %v1504, %v1508
      %v1510 = vlaneseq
      %v1511 = vshrl.u32 %v1510, 7
      %v1512 = vsub.s32 1, %v1511
      %v1513 = vrot.slane %v1504, %v1512
      %v1514 = vlaneseq
      %v1515 = vshrl.u32 %v1514, 7
      %v1516 = vsub.s32 2, %v1515
      %v1517 = vrot.slane %v1504, %v1516
      %v1518 = vlaneseq
      %v1519 = vshrl.u32 %v1518, 7
      %v1520 = vsub.s32 3, %v1519
      %v1521 = vrot.slane %v1504, %v1520
      %v1526 = vmul.f32 %v890, %v1509
      %v1527 = vmul.f32 %v889, %v1513
      %v1528 = vmul.f32 %v888, %v1517
      %v1529 = vmul.f32 %v891, %v1521
      %vm1530 = vmand %vm1395, %vm811
      %v1531 = vsel %vm1530, 1.0, 0.0
      %v1533 = vlaneseq
      %v1534 = vshrl.u32 %v1533, 7
      %v1535 = vsub.s32 0, %v1534
      %v1536 = vrot.slane %v1531, %v1535
      %v1537 = vlaneseq
      %v1538 = vshrl.u32 %v1537, 7
      %v1539 = vsub.s32 1, %v1538
      %v1540 = vrot.slane %v1531, %v1539
      %v1541 = vlaneseq
      %v1542 = vshrl.u32 %v1541, 7
      %v1543 = vsub.s32 2, %v1542
      %v1544 = vrot.slane %v1531, %v1543
      %v1545 = vlaneseq
      %v1546 = vshrl.u32 %v1545, 7
      %v1547 = vsub.s32 3, %v1546
      %v1548 = vrot.slane %v1531, %v1547
      %v1553 = vmul.f32 %v929, %v1536
      %v1554 = vmul.f32 %v928, %v1540
      %v1555 = vmul.f32 %v927, %v1544
      %v1556 = vmul.f32 %v930, %v1548
      %vm1557 = vmand %vm1395, %vm971
      %vm1558 = vmand %vm1557, %vm730
      %v1559 = vsel %vm1558, 1.0, 0.0
      %v1561 = vlaneseq
      %v1562 = vshrl.u32 %v1561, 7
      %v1563 = vsub.s32 0, %v1562
      %v1564 = vrot.slane %v1559, %v1563
      %v1565 = vlaneseq
      %v1566 = vshrl.u32 %v1565, 7
      %v1567 = vsub.s32 1, %v1566
      %v1568 = vrot.slane %v1559, %v1567
      %v1569 = vlaneseq
      %v1570 = vshrl.u32 %v1569, 7
      %v1571 = vsub.s32 2, %v1570
      %v1572 = vrot.slane %v1559, %v1571
      %v1573 = vlaneseq
      %v1574 = vshrl.u32 %v1573, 7
      %v1575 = vsub.s32 3, %v1574
      %v1576 = vrot.slane %v1559, %v1575
      %v1581 = vmul.f32 %v969, %v1564
      %v1582 = vmul.f32 %v968, %v1568
      %v1583 = vmul.f32 %v967, %v1572
      %v1584 = vmul.f32 %v970, %v1576
      %v1585 = vsel %vm1557, 1.0, 0.0
      %v1587 = vlaneseq
      %v1588 = vshrl.u32 %v1587, 7
      %v1589 = vsub.s32 0, %v1588
      %v1590 = vrot.slane %v1585, %v1589
      %v1591 = vlaneseq
      %v1592 = vshrl.u32 %v1591, 7
      %v1593 = vsub.s32 1, %v1592
      %v1594 = vrot.slane %v1585, %v1593
      %v1595 = vlaneseq
      %v1596 = vshrl.u32 %v1595, 7
      %v1597 = vsub.s32 2, %v1596
      %v1598 = vrot.slane %v1585, %v1597
      %v1599 = vlaneseq
      %v1600 = vshrl.u32 %v1599, 7
      %v1601 = vsub.s32 3, %v1600
      %v1602 = vrot.slane %v1585, %v1601
      %v1607 = vmul.f32 %v1011, %v1590
      %v1608 = vmul.f32 %v1010, %v1594
      %v1609 = vmul.f32 %v1009, %v1598
      %v1610 = vmul.f32 %v1012, %v1602
      %vm1611 = vmand %vm1557, %vm811
      %v1612 = vsel %vm1611, 1.0, 0.0
      %v1614 = vlaneseq
      %v1615 = vshrl.u32 %v1614, 7
      %v1616 = vsub.s32 0, %v1615
      %v1617 = vrot.slane %v1612, %v1616
      %v1618 = vlaneseq
      %v1619 = vshrl.u32 %v1618, 7
      %v1620 = vsub.s32 1, %v1619
      %v1621 = vrot.slane %v1612, %v1620
      %v1622 = vlaneseq
      %v1623 = vshrl.u32 %v1622, 7
      %v1624 = vsub.s32 2, %v1623
      %v1625 = vrot.slane %v1612, %v1624
      %v1626 = vlaneseq
      %v1627 = vshrl.u32 %v1626, 7
      %v1628 = vsub.s32 3, %v1627
      %v1629 = vrot.slane %v1612, %v1628
      %v1634 = vmul.f32 %v1050, %v1617
      %v1635 = vmul.f32 %v1049, %v1621
      %v1636 = vmul.f32 %v1048, %v1625
      %v1637 = vmul.f32 %v1051, %v1629
      %v1638 = vld [vmem:[%s4] sm:$0xff]
      %v1639 = vld [vmem:[%s4 + $0x8] sm:$0xff]
      %1640 = vset.pattern.permute.xlu0 3
      %1641 = vperm.xlu0 %1640, %v373
      %v1642 = vpop.permute.xlu0 %1641
      %1644 = vmatprep.subr.mxu0 %v756
      %1645 = vmatpush1.msra.mxu0 %v755
      %1646 = vmatprep.subr.mxu0 %v795
      %1647 = vmatpush1.msra.mxu0 %v794
      %1648 = vmatprep.subr.mxu0 %v836
      %1649 = vmatpush1.msra.mxu0 %v835
      %1650 = vmatprep.subr.mxu0 %v876
      %1651 = vmatpush1.msra.mxu0 %v875
      %1652 = vmatprep.subr.mxu0 %v915
      %1653 = vmatpush1.msra.mxu0 %v914
      %1654 = vmatprep.subr.mxu0 %v955
      %1655 = vmatpush1.msra.mxu0 %v954
      %1656 = vmatprep.subr.mxu0 %v997
      %1657 = vmatpush1.msra.mxu0 %v996
      %1658 = vmatprep.subr.mxu0 %v1036
      %1659 = vmatpush1.msra.mxu0 %v1035
      %1660 = vmatprep.subr.mxu0 %v1076
      %1661 = vmatpush1.msra.mxu0 %v1075
      %1662 = vmatprep.subr.mxu0 %v1116
      %1663 = vmatpush1.msra.mxu0 %v1115
      %1664 = vmatprep.subr.mxu0 %v1155
      %1665 = vmatpush1.msra.mxu0 %v1154
      %1666 = vmatprep.subr.mxu0 %v1195
      %1667 = vmatpush1.msra.mxu0 %v1194
      %1668 = vmatprep.subr.mxu0 %v1234
      %1669 = vmatpush1.msra.mxu0 %v1233
      %1670 = vmatprep.subr.mxu0 %v712
      %1671 = vmatpush1.msra.mxu0 %v711
      %1672 = vmatprep.subr.mxu0 %v1273
      %1673 = vmatpush1.msra.mxu0 %v1272
      %1674 = vmatprep.subr.mxu0 %v1313
      %1675 = vmatpush1.msra.mxu0 %v1312
      %1676 = vmatprep.subr.mxu0 %v1352
      %1677 = vmatpush1.msra.mxu0 %v1351
      %1678 = vmatprep.subr.mxu0 %v1392
      %1679 = vmatpush1.msra.mxu0 %v1391
      %1680 = vmatprep.subr.mxu0 %v1421
      %1681 = vmatpush1.msra.mxu0 %v1420
      %1682 = vmatprep.subr.mxu0 %v1447
      %1683 = vmatpush1.msra.mxu0 %v1446
      %1684 = vmatprep.subr.mxu0 %v1474
      %1685 = vmatpush1.msra.mxu0 %v1473
      %1686 = vmatprep.subr.mxu0 %v1501
      %1687 = vmatpush1.msra.mxu0 %v1500
      %1688 = vmatprep.subr.mxu0 %v1527
      %1689 = vmatpush1.msra.mxu0 %v1526
      %1690 = vmatprep.subr.mxu0 %v1554
      %1691 = vmatpush1.msra.mxu0 %v1553
      %1692 = vmatprep.subr.mxu0 %v1582
      %1693 = vmatpush1.msra.mxu0 %v1581
      %1694 = vmatprep.subr.mxu0 %v1608
      %1695 = vmatpush1.msra.mxu0 %v1607
      %1696 = vmatprep.subr.mxu0 %v1635
      %1697 = vmatpush1.msra.mxu0 %v1634
      %1698 = vmatprep.subr.mxu0 0.0
      %1699 = vmatpush1.msra.mxu0 0.0
      %1700 = vmatprep.subr.mxu0 0.0
      %1701 = vmatpush1.msra.mxu0 0.0
      %1702 = vmatprep.subr.mxu0 0.0
      %1703 = vmatpush1.msra.mxu0 0.0
      %1704 = vmatprep.subr.mxu0 0.0
      %1705 = vmatpush1.msra.mxu0 0.0
      %1706 = vmatprep.subr.mxu0 0.0
      %1707 = vmatpush1.msra.mxu0 0.0
      %1708 = vmatprep.mubr.f32.mxu0 %v1639
      %1709 = vmatmul.mubr.f32.gmra.mrb[0].mxu0 %v1638
      %v1710 = vpop.f32.mrb[0].mxu0
      %v1711 = vadd.f32 %v1642, %v1710
      %v1712 = vpop.f32.mrb[0].mxu0
      %v1713 = vadd.f32 %v1642, %v1712
      %1714 = vdwg.mxu0
      %1715 = vmatprep.subr.mxu0 %v758
      %1716 = vmatpush1.msra.mxu0 %v757
      %1717 = vmatprep.subr.mxu0 %v797
      %1718 = vmatpush1.msra.mxu0 %v796
      %1719 = vmatprep.subr.mxu0 %v838
      %1720 = vmatpush1.msra.mxu0 %v837
      %1721 = vmatprep.subr.mxu0 %v878
      %1722 = vmatpush1.msra.mxu0 %v877
      %1723 = vmatprep.subr.mxu0 %v917
      %1724 = vmatpush1.msra.mxu0 %v916
      %1725 = vmatprep.subr.mxu0 %v957
      %1726 = vmatpush1.msra.mxu0 %v956
      %1727 = vmatprep.subr.mxu0 %v999
      %1728 = vmatpush1.msra.mxu0 %v998
      %1729 = vmatprep.subr.mxu0 %v1038
      %1730 = vmatpush1.msra.mxu0 %v1037
      %1731 = vmatprep.subr.mxu0 %v1078
      %1732 = vmatpush1.msra.mxu0 %v1077
      %1733 = vmatprep.subr.mxu0 %v1118
      %1734 = vmatpush1.msra.mxu0 %v1117
      %1735 = vmatprep.subr.mxu0 %v1157
      %1736 = vmatpush1.msra.mxu0 %v1156
      %1737 = vmatprep.subr.mxu0 %v1197
      %1738 = vmatpush1.msra.mxu0 %v1196
      %1739 = vmatprep.subr.mxu0 %v1236
      %1740 = vmatpush1.msra.mxu0 %v1235
      %1741 = vmatprep.subr.mxu0 %v714
      %1742 = vmatpush1.msra.mxu0 %v713
      %1743 = vmatprep.subr.mxu0 %v1275
      %1744 = vmatpush1.msra.mxu0 %v1274
      %1745 = vmatprep.subr.mxu0 %v1315
      %1746 = vmatpush1.msra.mxu0 %v1314
      %1747 = vmatprep.subr.mxu0 %v1354
      %1748 = vmatpush1.msra.mxu0 %v1353
      %1749 = vmatprep.subr.mxu0 %v1394
      %1750 = vmatpush1.msra.mxu0 %v1393
      %1751 = vmatprep.subr.mxu0 %v1423
      %1752 = vmatpush1.msra.mxu0 %v1422
      %1753 = vmatprep.subr.mxu0 %v1449
      %1754 = vmatpush1.msra.mxu0 %v1448
      %1755 = vmatprep.subr.mxu0 %v1476
      %1756 = vmatpush1.msra.mxu0 %v1475
      %1757 = vmatprep.subr.mxu0 %v1503
      %1758 = vmatpush1.msra.mxu0 %v1502
      %1759 = vmatprep.subr.mxu0 %v1529
      %1760 = vmatpush1.msra.mxu0 %v1528
      %1761 = vmatprep.subr.mxu0 %v1556
      %1762 = vmatpush1.msra.mxu0 %v1555
      %1763 = vmatprep.subr.mxu0 %v1584
      %1764 = vmatpush1.msra.mxu0 %v1583
      %1765 = vmatprep.subr.mxu0 %v1610
      %1766 = vmatpush1.msra.mxu0 %v1609
      %1767 = vmatprep.subr.mxu0 %v1637
      %1768 = vmatpush1.msra.mxu0 %v1636
      %1769 = vmatprep.subr.mxu0 0.0
      %1770 = vmatpush1.msra.mxu0 0.0
      %1771 = vmatprep.subr.mxu0 0.0
      %1772 = vmatpush1.msra.mxu0 0.0
      %1773 = vmatprep.subr.mxu0 0.0
      %1774 = vmatpush1.msra.mxu0 0.0
      %1775 = vmatprep.subr.mxu0 0.0
      %1776 = vmatpush1.msra.mxu0 0.0
      %1777 = vmatprep.subr.mxu0 0.0
      %1778 = vmatpush1.msra.mxu0 0.0
      %1779 = vmatprep.mubr.f32.mxu0 %v1639
      %1780 = vmatmul.mubr.f32.gmra.mrb[0].mxu0 %v1638
      %v1781 = vpop.f32.mrb[0].mxu0
      %v1782 = vadd.f32 %v1642, %v1781
      %v1783 = vpop.f32.mrb[0].mxu0
      %v1784 = vadd.f32 %v1642, %v1783
      %1785 = vdwg.mxu0
      %v1786 = vadd.f32 %v1711, %v1713
      %v1787 = vadd.f32 %v1786, %v1782
      %v1788 = vadd.f32 %v1787, %v1784
      %1789 = vadd.xlane.f32.xlu0 %v1788
      %v1790 = vpop.xlane.xlu0 %1789
      %v1791 = vmul.f32 %v1711, %v1711
      %v1792 = vmul.f32 %v1713, %v1713
      %v1793 = vmul.f32 %v1782, %v1782
      %v1794 = vmul.f32 %v1784, %v1784
      %v1795 = vadd.f32 %v1791, %v1792
      %v1796 = vadd.f32 %v1795, %v1793
      %v1797 = vadd.f32 %v1796, %v1794
      %1798 = vadd.xlane.f32.xlu0 %v1797
      %v1799 = vpop.xlane.xlu0 %1798
      %v1800 = vsel %vm578, %v1790, %v1799
      %1801 = vmatprep.subr.mxu0 0.0
      %1802 = vmatpush1.msra.mxu0 %v1800
      %1803 = vmatprep.subr.mxu0 0.0
      %1804 = vmatpush1.msra.mxu0 0.0
      %1805 = vmatprep.subr.mxu0 0.0
      %1806 = vmatpush1.msra.mxu0 0.0
      %1807 = vmatprep.subr.mxu0 0.0
      %1808 = vmatpush1.msra.mxu0 0.0
      %1809 = vmatprep.subr.mxu0 0.0
      %1810 = vmatpush1.msra.mxu0 0.0
      %1811 = vmatprep.subr.mxu0 0.0
      %1812 = vmatpush1.msra.mxu0 0.0
      %1813 = vmatprep.subr.mxu0 0.0
      %1814 = vmatpush1.msra.mxu0 0.0
      %1815 = vmatprep.subr.mxu0 0.0
      %1816 = vmatpush1.msra.mxu0 0.0
      %1817 = vmatprep.subr.mxu0 0.0
      %1818 = vmatpush1.msra.mxu0 0.0
      %1819 = vmatprep.subr.mxu0 0.0
      %1820 = vmatpush1.msra.mxu0 0.0
      %1821 = vmatprep.subr.mxu0 0.0
      %1822 = vmatpush1.msra.mxu0 0.0
      %1823 = vmatprep.subr.mxu0 0.0
      %1824 = vmatpush1.msra.mxu0 0.0
      %1825 = vmatprep.subr.mxu0 0.0
      %1826 = vmatpush1.msra.mxu0 0.0
      %1827 = vmatprep.subr.mxu0 0.0
      %1828 = vmatpush1.msra.mxu0 0.0
      %1829 = vmatprep.subr.mxu0 0.0
      %1830 = vmatpush1.msra.mxu0 0.0
      %1831 = vmatprep.subr.mxu0 0.0
      %1832 = vmatpush1.msra.mxu0 0.0
      %1833 = vmatprep.subr.mxu0 0.0
      %1834 = vmatpush1.msra.mxu0 0.0
      %1835 = vmatprep.subr.mxu0 0.0
      %1836 = vmatpush1.msra.mxu0 0.0
      %1837 = vmatprep.subr.mxu0 0.0
      %1838 = vmatpush1.msra.mxu0 0.0
      %1839 = vmatprep.subr.mxu0 0.0
      %1840 = vmatpush1.msra.mxu0 0.0
      %1841 = vmatprep.subr.mxu0 0.0
      %1842 = vmatpush1.msra.mxu0 0.0
      %1843 = vmatprep.subr.mxu0 0.0
      %1844 = vmatpush1.msra.mxu0 0.0
      %1845 = vmatprep.subr.mxu0 0.0
      %1846 = vmatpush1.msra.mxu0 0.0
      %1847 = vmatprep.subr.mxu0 0.0
      %1848 = vmatpush1.msra.mxu0 0.0
      %1849 = vmatprep.subr.mxu0 0.0
      %1850 = vmatpush1.msra.mxu0 0.0
      %1851 = vmatprep.subr.mxu0 0.0
      %1852 = vmatpush1.msra.mxu0 0.0
      %1853 = vmatprep.subr.mxu0 0.0
      %1854 = vmatpush1.msra.mxu0 0.0
      %1855 = vmatprep.subr.mxu0 0.0
      %1856 = vmatpush1.msra.mxu0 0.0
      %1857 = vmatprep.subr.mxu0 0.0
      %1858 = vmatpush1.msra.mxu0 0.0
      %1859 = vmatprep.subr.mxu0 0.0
      %1860 = vmatpush1.msra.mxu0 0.0
      %1861 = vmatprep.subr.mxu0 0.0
      %1862 = vmatpush1.msra.mxu0 0.0
      %1863 = vmatprep.subr.mxu0 0.0
      %1864 = vmatpush1.msra.mxu0 0.0
      %1865 = vmatprep.mubr.f32.mxu0 0.0
      %1866 = vmatmul.mubr.f32.gmra.mrb[0].mxu0 %v582
      %v1867 = vpop.f32.mrb[0].mxu0
      %v1868 = vadd.f32 0.0, %v1867
      %v1869 = vpop.f32.mrb[0].mxu0
      %1870 = vdwg.mxu0
      %v1871 = vmul.f32 %v1868, 0.0009765625
      %v1872 = vmul.f32 %v1871, %v1871
      %1874 = vrot.lane.b32.xlu0 %v1872, 1
      %v1875 = vpop.permute.xlu0 %1874
      %v1877 = vsub.f32 %v1871, %v1875
      %v1878 = vmax.f32 %v1877, 0.0
      %1880 = vset.pattern.permute.xlu0 0
      %1881 = vperm.xlu0 %1880, %v1871
      %v1882 = vpop.permute.xlu0 %1881
      %v1884 = vsub.f32 %v1711, %v1882
      %v1885 = vsub.f32 %v1713, %v1882
      %v1886 = vsub.f32 %v1782, %v1882
      %v1887 = vsub.f32 %v1784, %v1882
      %v1888 = vadd.f32 %v1878, 1e-05
      %v1889 = vrsqrt.pop %v1888
      %1891 = vset.pattern.permute.xlu0 1
      %1892 = vperm.xlu0 %1891, %v1889
      %v1893 = vpop.permute.xlu0 %1892
      %v1895 = vmul.f32 %v1884, %v1893
      %v1896 = vmul.f32 %v1885, %v1893
      %v1897 = vmul.f32 %v1886, %v1893
      %v1898 = vmul.f32 %v1887, %v1893
      %1899 = vset.pattern.permute.xlu0 4
      %1900 = vperm.xlu0 %1899, %v373
      %v1901 = vpop.permute.xlu0 %1900
      %v1903 = vmul.f32 %v1895, %v1901
      %v1904 = vmul.f32 %v1896, %v1901
      %v1905 = vmul.f32 %v1897, %v1901
      %v1906 = vmul.f32 %v1898, %v1901
      %1907 = vset.pattern.permute.xlu0 5
      %1908 = vperm.xlu0 %1907, %v373
      %v1909 = vpop.permute.xlu0 %1908
      %v1911 = vadd.f32 %v1903, %v1909
      %v1912 = vadd.f32 %v1904, %v1909
      %v1913 = vadd.f32 %v1905, %v1909
      %v1914 = vadd.f32 %v1906, %v1909
      %vm1915 = vcmp.ge.f32.partialorder %v1911, 0.0
      %vm1916 = vcmp.ge.f32.partialorder %v1912, 0.0
      %vm1917 = vcmp.ge.f32.partialorder %v1913, 0.0
      %vm1918 = vcmp.ge.f32.partialorder %v1914, 0.0
      %v1919 = vrot.slane %v373, 1
      %1920 = vrot.lane.b32.xlu0 %v1919, 114
      %v1921 = vpop.permute.xlu0 %1920
      %s1922 = vtos %v1921
      %v1923 = vstv %s1922
      %v1925 = vmul.f32 %v1923, %v1911
      %v1926 = vmul.f32 %v1923, %v1912
      %v1927 = vmul.f32 %v1923, %v1913
      %v1928 = vmul.f32 %v1923, %v1914
      %v1929 = vsel %vm1915, %v1911, %v1925
      %v1930 = vsel %vm1916, %v1912, %v1926
      %v1931 = vsel %vm1917, %v1913, %v1927
      %v1932 = vsel %vm1918, %v1914, %v1928
      %1933 = vrot.lane.b32.xlu0 %v1929, 73
      %v1934 = vpop.permute.xlu0 %1933
      %1935 = vrot.lane.b32.xlu0 %v1930, 73
      %v1936 = vpop.permute.xlu0 %1935
      %1937 = vrot.lane.b32.xlu0 %v1931, 73
      %v1938 = vpop.permute.xlu0 %1937
      %1939 = vrot.lane.b32.xlu0 %v1932, 73
      %v1940 = vpop.permute.xlu0 %1939
      %v1941 = vsel %vm723, %v1938, %v1940
      %v1942 = vsel %vm723, %v1936, %v1938
      %v1943 = vsel %vm723, %v1934, %v1936
      %v1944 = vsel %vm723, %v1940, %v1934
      %v1945 = vmul.f32 %v1944, %v738
      %v1946 = vmul.f32 %v1943, %v742
      %v1947 = vmul.f32 %v1942, %v746
      %v1948 = vmul.f32 %v1941, %v750
      %1949 = vrot.lane.b32.xlu0 %v1929, 72
      %v1950 = vpop.permute.xlu0 %1949
      %1951 = vrot.lane.b32.xlu0 %v1930, 72
      %v1952 = vpop.permute.xlu0 %1951
      %1953 = vrot.lane.b32.xlu0 %v1931, 72
      %v1954 = vpop.permute.xlu0 %1953
      %1955 = vrot.lane.b32.xlu0 %v1932, 72
      %v1956 = vpop.permute.xlu0 %1955
      %v1957 = vsel %vm767, %v1954, %v1956
      %v1958 = vsel %vm767, %v1952, %v1954
      %v1959 = vsel %vm767, %v1950, %v1952
      %v1960 = vsel %vm767, %v1956, %v1950
      %v1961 = vmul.f32 %v1960, %v777
      %v1962 = vmul.f32 %v1959, %v781
      %v1963 = vmul.f32 %v1958, %v785
      %v1964 = vmul.f32 %v1957, %v789
      %1965 = vrot.lane.b32.xlu0 %v1929, 71
      %v1966 = vpop.permute.xlu0 %1965
      %1967 = vrot.lane.b32.xlu0 %v1930, 71
      %v1968 = vpop.permute.xlu0 %1967
      %1969 = vrot.lane.b32.xlu0 %v1931, 71
      %v1970 = vpop.permute.xlu0 %1969
      %1971 = vrot.lane.b32.xlu0 %v1932, 71
      %v1972 = vpop.permute.xlu0 %1971
      %v1973 = vsel %vm806, %v1970, %v1972
      %v1974 = vsel %vm806, %v1968, %v1970
      %v1975 = vsel %vm806, %v1966, %v1968
      %v1976 = vsel %vm806, %v1972, %v1966
      %v1977 = vmul.f32 %v1976, %v818
      %v1978 = vmul.f32 %v1975, %v822
      %v1979 = vmul.f32 %v1974, %v826
      %v1980 = vmul.f32 %v1973, %v830
      %1981 = vrot.lane.b32.xlu0 %v1929, 65
      %v1982 = vpop.permute.xlu0 %1981
      %1983 = vrot.lane.b32.xlu0 %v1930, 65
      %v1984 = vpop.permute.xlu0 %1983
      %1985 = vrot.lane.b32.xlu0 %v1931, 65
      %v1986 = vpop.permute.xlu0 %1985
      %1987 = vrot.lane.b32.xlu0 %v1932, 65
      %v1988 = vpop.permute.xlu0 %1987
      %v1989 = vsel %vm847, %v1986, %v1988
      %v1990 = vsel %vm847, %v1984, %v1986
      %v1991 = vsel %vm847, %v1982, %v1984
      %v1992 = vsel %vm847, %v1988, %v1982
      %v1993 = vmul.f32 %v1992, %v858
      %v1994 = vmul.f32 %v1991, %v862
      %v1995 = vmul.f32 %v1990, %v866
      %v1996 = vmul.f32 %v1989, %v870
      %1997 = vrot.lane.b32.xlu0 %v1929, 64
      %v1998 = vpop.permute.xlu0 %1997
      %1999 = vrot.lane.b32.xlu0 %v1930, 64
      %v2000 = vpop.permute.xlu0 %1999
      %2001 = vrot.lane.b32.xlu0 %v1931, 64
      %v2002 = vpop.permute.xlu0 %2001
      %2003 = vrot.lane.b32.xlu0 %v1932, 64
      %v2004 = vpop.permute.xlu0 %2003
      %v2005 = vsel %vm887, %v2002, %v2004
      %v2006 = vsel %vm887, %v2000, %v2002
      %v2007 = vsel %vm887, %v1998, %v2000
      %v2008 = vsel %vm887, %v2004, %v1998
      %v2009 = vmul.f32 %v2008, %v897
      %v2010 = vmul.f32 %v2007, %v901
      %v2011 = vmul.f32 %v2006, %v905
      %v2012 = vmul.f32 %v2005, %v909
      %2013 = vrot.lane.b32.xlu0 %v1929, 63
      %v2014 = vpop.permute.xlu0 %2013
      %2015 = vrot.lane.b32.xlu0 %v1930, 63
      %v2016 = vpop.permute.xlu0 %2015
      %2017 = vrot.lane.b32.xlu0 %v1931, 63
      %v2018 = vpop.permute.xlu0 %2017
      %2019 = vrot.lane.b32.xlu0 %v1932, 63
      %v2020 = vpop.permute.xlu0 %2019
      %v2021 = vsel %vm926, %v2018, %v2020
      %v2022 = vsel %vm926, %v2016, %v2018
      %v2023 = vsel %vm926, %v2014, %v2016
      %v2024 = vsel %vm926, %v2020, %v2014
      %v2025 = vmul.f32 %v2024, %v937
      %v2026 = vmul.f32 %v2023, %v941
      %v2027 = vmul.f32 %v2022, %v945
      %v2028 = vmul.f32 %v2021, %v949
      %2029 = vrot.lane.b32.xlu0 %v1929, 57
      %v2030 = vpop.permute.xlu0 %2029
      %2031 = vrot.lane.b32.xlu0 %v1930, 57
      %v2032 = vpop.permute.xlu0 %2031
      %2033 = vrot.lane.b32.xlu0 %v1931, 57
      %v2034 = vpop.permute.xlu0 %2033
      %2035 = vrot.lane.b32.xlu0 %v1932, 57
      %v2036 = vpop.permute.xlu0 %2035
      %v2037 = vsel %vm966, %v2034, %v2036
      %v2038 = vsel %vm966, %v2032, %v2034
      %v2039 = vsel %vm966, %v2030, %v2032
      %v2040 = vsel %vm966, %v2036, %v2030
      %v2041 = vmul.f32 %v2040, %v979
      %v2042 = vmul.f32 %v2039, %v983
      %v2043 = vmul.f32 %v2038, %v987
      %v2044 = vmul.f32 %v2037, %v991
      %2045 = vrot.lane.b32.xlu0 %v1929, 56
      %v2046 = vpop.permute.xlu0 %2045
      %2047 = vrot.lane.b32.xlu0 %v1930, 56
      %v2048 = vpop.permute.xlu0 %2047
      %2049 = vrot.lane.b32.xlu0 %v1931, 56
      %v2050 = vpop.permute.xlu0 %2049
      %2051 = vrot.lane.b32.xlu0 %v1932, 56
      %v2052 = vpop.permute.xlu0 %2051
      %v2053 = vsel %vm1008, %v2050, %v2052
      %v2054 = vsel %vm1008, %v2048, %v2050
      %v2055 = vsel %vm1008, %v2046, %v2048
      %v2056 = vsel %vm1008, %v2052, %v2046
      %v2057 = vmul.f32 %v2056, %v1018
      %v2058 = vmul.f32 %v2055, %v1022
      %v2059 = vmul.f32 %v2054, %v1026
      %v2060 = vmul.f32 %v2053, %v1030
      %2061 = vrot.lane.b32.xlu0 %v1929, 55
      %v2062 = vpop.permute.xlu0 %2061
      %2063 = vrot.lane.b32.xlu0 %v1930, 55
      %v2064 = vpop.permute.xlu0 %2063
      %2065 = vrot.lane.b32.xlu0 %v1931, 55
      %v2066 = vpop.permute.xlu0 %2065
      %2067 = vrot.lane.b32.xlu0 %v1932, 55
      %v2068 = vpop.permute.xlu0 %2067
      %v2069 = vsel %vm1047, %v2066, %v2068
      %v2070 = vsel %vm1047, %v2064, %v2066
      %v2071 = vsel %vm1047, %v2062, %v2064
      %v2072 = vsel %vm1047, %v2068, %v2062
      %v2073 = vmul.f32 %v2072, %v1058
      %v2074 = vmul.f32 %v2071, %v1062
      %v2075 = vmul.f32 %v2070, %v1066
      %v2076 = vmul.f32 %v2069, %v1070
      %2077 = vrot.lane.b32.xlu0 %v1929, 9
      %v2078 = vpop.permute.xlu0 %2077
      %2079 = vrot.lane.b32.xlu0 %v1930, 9
      %v2080 = vpop.permute.xlu0 %2079
      %2081 = vrot.lane.b32.xlu0 %v1931, 9
      %v2082 = vpop.permute.xlu0 %2081
      %2083 = vrot.lane.b32.xlu0 %v1932, 9
      %v2084 = vpop.permute.xlu0 %2083
      %v2085 = vsel %vm1087, %v2082, %v2084
      %v2086 = vsel %vm1087, %v2080, %v2082
      %v2087 = vsel %vm1087, %v2078, %v2080
      %v2088 = vsel %vm1087, %v2084, %v2078
      %v2089 = vmul.f32 %v2088, %v1098
      %v2090 = vmul.f32 %v2087, %v1102
      %v2091 = vmul.f32 %v2086, %v1106
      %v2092 = vmul.f32 %v2085, %v1110
      %2093 = vrot.lane.b32.xlu0 %v1929, 8
      %v2094 = vpop.permute.xlu0 %2093
      %2095 = vrot.lane.b32.xlu0 %v1930, 8
      %v2096 = vpop.permute.xlu0 %2095
      %2097 = vrot.lane.b32.xlu0 %v1931, 8
      %v2098 = vpop.permute.xlu0 %2097
      %2099 = vrot.lane.b32.xlu0 %v1932, 8
      %v2100 = vpop.permute.xlu0 %2099
      %v2101 = vsel %vm1127, %v2098, %v2100
      %v2102 = vsel %vm1127, %v2096, %v2098
      %v2103 = vsel %vm1127, %v2094, %v2096
      %v2104 = vsel %vm1127, %v2100, %v2094
      %v2105 = vmul.f32 %v2104, %v1137
      %v2106 = vmul.f32 %v2103, %v1141
      %v2107 = vmul.f32 %v2102, %v1145
      %v2108 = vmul.f32 %v2101, %v1149
      %2109 = vrot.lane.b32.xlu0 %v1929, 7
      %v2110 = vpop.permute.xlu0 %2109
      %2111 = vrot.lane.b32.xlu0 %v1930, 7
      %v2112 = vpop.permute.xlu0 %2111
      %2113 = vrot.lane.b32.xlu0 %v1931, 7
      %v2114 = vpop.permute.xlu0 %2113
      %2115 = vrot.lane.b32.xlu0 %v1932, 7
      %v2116 = vpop.permute.xlu0 %2115
      %v2117 = vsel %vm1166, %v2114, %v2116
      %v2118 = vsel %vm1166, %v2112, %v2114
      %v2119 = vsel %vm1166, %v2110, %v2112
      %v2120 = vsel %vm1166, %v2116, %v2110
      %v2121 = vmul.f32 %v2120, %v1177
      %v2122 = vmul.f32 %v2119, %v1181
      %v2123 = vmul.f32 %v2118, %v1185
      %v2124 = vmul.f32 %v2117, %v1189
      %2125 = vrot.lane.b32.xlu0 %v1929, 1
      %v2126 = vpop.permute.xlu0 %2125
      %2127 = vrot.lane.b32.xlu0 %v1930, 1
      %v2128 = vpop.permute.xlu0 %2127
      %2129 = vrot.lane.b32.xlu0 %v1931, 1
      %v2130 = vpop.permute.xlu0 %2129
      %2131 = vrot.lane.b32.xlu0 %v1932, 1
      %v2132 = vpop.permute.xlu0 %2131
      %v2133 = vsel %vm1206, %v2130, %v2132
      %v2134 = vsel %vm1206, %v2128, %v2130
      %v2135 = vsel %vm1206, %v2126, %v2128
      %v2136 = vsel %vm1206, %v2132, %v2126
      %v2137 = vmul.f32 %v2136, %v1216
      %v2138 = vmul.f32 %v2135, %v1220
      %v2139 = vmul.f32 %v2134, %v1224
      %v2140 = vmul.f32 %v2133, %v1228
      %2141 = vrot.lane.b32.xlu0 %v1929, 127
      %v2142 = vpop.permute.xlu0 %2141
      %2143 = vrot.lane.b32.xlu0 %v1930, 127
      %v2144 = vpop.permute.xlu0 %2143
      %2145 = vrot.lane.b32.xlu0 %v1931, 127
      %v2146 = vpop.permute.xlu0 %2145
      %2147 = vrot.lane.b32.xlu0 %v1932, 127
      %v2148 = vpop.permute.xlu0 %2147
      %v2149 = vsel %vm1245, %v2146, %v2148
      %v2150 = vsel %vm1245, %v2144, %v2146
      %v2151 = vsel %vm1245, %v2142, %v2144
      %v2152 = vsel %vm1245, %v2148, %v2142
      %v2153 = vmul.f32 %v2151, %v1255
      %v2154 = vmul.f32 %v2150, %v1259
      %v2155 = vmul.f32 %v2149, %v1263
      %v2156 = vmul.f32 %v2152, %v1267
      %2157 = vrot.lane.b32.xlu0 %v1929, 121
      %v2158 = vpop.permute.xlu0 %2157
      %2159 = vrot.lane.b32.xlu0 %v1930, 121
      %v2160 = vpop.permute.xlu0 %2159
      %2161 = vrot.lane.b32.xlu0 %v1931, 121
      %v2162 = vpop.permute.xlu0 %2161
      %2163 = vrot.lane.b32.xlu0 %v1932, 121
      %v2164 = vpop.permute.xlu0 %2163
      %v2165 = vsel %vm1284, %v2162, %v2164
      %v2166 = vsel %vm1284, %v2160, %v2162
      %v2167 = vsel %vm1284, %v2158, %v2160
      %v2168 = vsel %vm1284, %v2164, %v2158
      %v2169 = vmul.f32 %v2167, %v1295
      %v2170 = vmul.f32 %v2166, %v1299
      %v2171 = vmul.f32 %v2165, %v1303
      %v2172 = vmul.f32 %v2168, %v1307
      %2173 = vrot.lane.b32.xlu0 %v1929, 120
      %v2174 = vpop.permute.xlu0 %2173
      %2175 = vrot.lane.b32.xlu0 %v1930, 120
      %v2176 = vpop.permute.xlu0 %2175
      %2177 = vrot.lane.b32.xlu0 %v1931, 120
      %v2178 = vpop.permute.xlu0 %2177
      %2179 = vrot.lane.b32.xlu0 %v1932, 120
      %v2180 = vpop.permute.xlu0 %2179
      %v2181 = vsel %vm1324, %v2178, %v2180
      %v2182 = vsel %vm1324, %v2176, %v2178
      %v2183 = vsel %vm1324, %v2174, %v2176
      %v2184 = vsel %vm1324, %v2180, %v2174
      %v2185 = vmul.f32 %v2183, %v1334
      %v2186 = vmul.f32 %v2182, %v1338
      %v2187 = vmul.f32 %v2181, %v1342
      %v2188 = vmul.f32 %v2184, %v1346
      %2189 = vrot.lane.b32.xlu0 %v1929, 119
      %v2190 = vpop.permute.xlu0 %2189
      %2191 = vrot.lane.b32.xlu0 %v1930, 119
      %v2192 = vpop.permute.xlu0 %2191
      %2193 = vrot.lane.b32.xlu0 %v1931, 119
      %v2194 = vpop.permute.xlu0 %2193
      %2195 = vrot.lane.b32.xlu0 %v1932, 119
      %v2196 = vpop.permute.xlu0 %2195
      %v2197 = vsel %vm1363, %v2194, %v2196
      %v2198 = vsel %vm1363, %v2192, %v2194
      %v2199 = vsel %vm1363, %v2190, %v2192
      %v2200 = vsel %vm1363, %v2196, %v2190
      %v2201 = vmul.f32 %v2199, %v1374
      %v2202 = vmul.f32 %v2198, %v1378
      %v2203 = vmul.f32 %v2197, %v1382
      %v2204 = vmul.f32 %v2200, %v1386
      %v2205 = vmul.f32 %v1943, %v1403
      %v2206 = vmul.f32 %v1942, %v1407
      %v2207 = vmul.f32 %v1941, %v1411
      %v2208 = vmul.f32 %v1944, %v1415
      %v2209 = vmul.f32 %v1959, %v1429
      %v2210 = vmul.f32 %v1958, %v1433
      %v2211 = vmul.f32 %v1957, %v1437
      %v2212 = vmul.f32 %v1960, %v1441
      %v2213 = vmul.f32 %v1975, %v1456
      %v2214 = vmul.f32 %v1974, %v1460
      %v2215 = vmul.f32 %v1973, %v1464
      %v2216 = vmul.f32 %v1976, %v1468
      %v2217 = vmul.f32 %v1991, %v1483
      %v2218 = vmul.f32 %v1990, %v1487
      %v2219 = vmul.f32 %v1989, %v1491
      %v2220 = vmul.f32 %v1992, %v1495
      %v2221 = vmul.f32 %v2007, %v1509
      %v2222 = vmul.f32 %v2006, %v1513
      %v2223 = vmul.f32 %v2005, %v1517
      %v2224 = vmul.f32 %v2008, %v1521
      %v2225 = vmul.f32 %v2023, %v1536
      %v2226 = vmul.f32 %v2022, %v1540
      %v2227 = vmul.f32 %v2021, %v1544
      %v2228 = vmul.f32 %v2024, %v1548
      %v2229 = vmul.f32 %v2039, %v1564
      %v2230 = vmul.f32 %v2038, %v1568
      %v2231 = vmul.f32 %v2037, %v1572
      %v2232 = vmul.f32 %v2040, %v1576
      %v2233 = vmul.f32 %v2055, %v1590
      %v2234 = vmul.f32 %v2054, %v1594
      %v2235 = vmul.f32 %v2053, %v1598
      %v2236 = vmul.f32 %v2056, %v1602
      %v2237 = vmul.f32 %v2071, %v1617
      %v2238 = vmul.f32 %v2070, %v1621
      %v2239 = vmul.f32 %v2069, %v1625
      %v2240 = vmul.f32 %v2072, %v1629
      %v2241 = vld [vmem:[%s5] sm:$0xff]
      %v2242 = vld [vmem:[%s5 + $0x8] sm:$0xff]
      %2243 = vset.pattern.permute.xlu0 6
      %2244 = vperm.xlu0 %2243, %v373
      %v2245 = vpop.permute.xlu0 %2244
      %2247 = vmatprep.subr.mxu0 %v1946
      %2248 = vmatpush1.msra.mxu0 %v1945
      %2249 = vmatprep.subr.mxu0 %v1962
      %2250 = vmatpush1.msra.mxu0 %v1961
      %2251 = vmatprep.subr.mxu0 %v1978
      %2252 = vmatpush1.msra.mxu0 %v1977
      %2253 = vmatprep.subr.mxu0 %v1994
      %2254 = vmatpush1.msra.mxu0 %v1993
      %2255 = vmatprep.subr.mxu0 %v2010
      %2256 = vmatpush1.msra.mxu0 %v2009
      %2257 = vmatprep.subr.mxu0 %v2026
      %2258 = vmatpush1.msra.mxu0 %v2025
      %2259 = vmatprep.subr.mxu0 %v2042
      %2260 = vmatpush1.msra.mxu0 %v2041
      %2261 = vmatprep.subr.mxu0 %v2058
      %2262 = vmatpush1.msra.mxu0 %v2057
      %2263 = vmatprep.subr.mxu0 %v2074
      %2264 = vmatpush1.msra.mxu0 %v2073
      %2265 = vmatprep.subr.mxu0 %v2090
      %2266 = vmatpush1.msra.mxu0 %v2089
      %2267 = vmatprep.subr.mxu0 %v2106
      %2268 = vmatpush1.msra.mxu0 %v2105
      %2269 = vmatprep.subr.mxu0 %v2122
      %2270 = vmatpush1.msra.mxu0 %v2121
      %2271 = vmatprep.subr.mxu0 %v2138
      %2272 = vmatpush1.msra.mxu0 %v2137
      %2273 = vmatprep.subr.mxu0 %v1930
      %2274 = vmatpush1.msra.mxu0 %v1929
      %2275 = vmatprep.subr.mxu0 %v2154
      %2276 = vmatpush1.msra.mxu0 %v2153
      %2277 = vmatprep.subr.mxu0 %v2170
      %2278 = vmatpush1.msra.mxu0 %v2169
      %2279 = vmatprep.subr.mxu0 %v2186
      %2280 = vmatpush1.msra.mxu0 %v2185
      %2281 = vmatprep.subr.mxu0 %v2202
      %2282 = vmatpush1.msra.mxu0 %v2201
      %2283 = vmatprep.subr.mxu0 %v2206
      %2284 = vmatpush1.msra.mxu0 %v2205
      %2285 = vmatprep.subr.mxu0 %v2210
      %2286 = vmatpush1.msra.mxu0 %v2209
      %2287 = vmatprep.subr.mxu0 %v2214
      %2288 = vmatpush1.msra.mxu0 %v2213
      %2289 = vmatprep.subr.mxu0 %v2218
      %2290 = vmatpush1.msra.mxu0 %v2217
      %2291 = vmatprep.subr.mxu0 %v2222
      %2292 = vmatpush1.msra.mxu0 %v2221
      %2293 = vmatprep.subr.mxu0 %v2226
      %2294 = vmatpush1.msra.mxu0 %v2225
      %2295 = vmatprep.subr.mxu0 %v2230
      %2296 = vmatpush1.msra.mxu0 %v2229
      %2297 = vmatprep.subr.mxu0 %v2234
      %2298 = vmatpush1.msra.mxu0 %v2233
      %2299 = vmatprep.subr.mxu0 %v2238
      %2300 = vmatpush1.msra.mxu0 %v2237
      %2301 = vmatprep.subr.mxu0 0.0
      %2302 = vmatpush1.msra.mxu0 0.0
      %2303 = vmatprep.subr.mxu0 0.0
      %2304 = vmatpush1.msra.mxu0 0.0
      %2305 = vmatprep.subr.mxu0 0.0
      %2306 = vmatpush1.msra.mxu0 0.0
      %2307 = vmatprep.subr.mxu0 0.0
      %2308 = vmatpush1.msra.mxu0 0.0
      %2309 = vmatprep.subr.mxu0 0.0
      %2310 = vmatpush1.msra.mxu0 0.0
      %2311 = vmatprep.mubr.f32.mxu0 %v2242
      %2312 = vmatmul.mubr.f32.gmra.mrb[0].mxu0 %v2241
      %v2313 = vpop.f32.mrb[0].mxu0
      %v2314 = vadd.f32 %v2245, %v2313
      %v2315 = vpop.f32.mrb[0].mxu0
      %v2316 = vadd.f32 %v2245, %v2315
      %2317 = vdwg.mxu0
      %2318 = vmatprep.subr.mxu0 %v1948
      %2319 = vmatpush1.msra.mxu0 %v1947
      %2320 = vmatprep.subr.mxu0 %v1964
      %2321 = vmatpush1.msra.mxu0 %v1963
      %2322 = vmatprep.subr.mxu0 %v1980
      %2323 = vmatpush1.msra.mxu0 %v1979
      %2324 = vmatprep.subr.mxu0 %v1996
      %2325 = vmatpush1.msra.mxu0 %v1995
      %2326 = vmatprep.subr.mxu0 %v2012
      %2327 = vmatpush1.msra.mxu0 %v2011
      %2328 = vmatprep.subr.mxu0 %v2028
      %2329 = vmatpush1.msra.mxu0 %v2027
      %2330 = vmatprep.subr.mxu0 %v2044
      %2331 = vmatpush1.msra.mxu0 %v2043
      %2332 = vmatprep.subr.mxu0 %v2060
      %2333 = vmatpush1.msra.mxu0 %v2059
      %2334 = vmatprep.subr.mxu0 %v2076
      %2335 = vmatpush1.msra.mxu0 %v2075
      %2336 = vmatprep.subr.mxu0 %v2092
      %2337 = vmatpush1.msra.mxu0 %v2091
      %2338 = vmatprep.subr.mxu0 %v2108
      %2339 = vmatpush1.msra.mxu0 %v2107
      %2340 = vmatprep.subr.mxu0 %v2124
      %2341 = vmatpush1.msra.mxu0 %v2123
      %2342 = vmatprep.subr.mxu0 %v2140
      %2343 = vmatpush1.msra.mxu0 %v2139
      %2344 = vmatprep.subr.mxu0 %v1932
      %2345 = vmatpush1.msra.mxu0 %v1931
      %2346 = vmatprep.subr.mxu0 %v2156
      %2347 = vmatpush1.msra.mxu0 %v2155
      %2348 = vmatprep.subr.mxu0 %v2172
      %2349 = vmatpush1.msra.mxu0 %v2171
      %2350 = vmatprep.subr.mxu0 %v2188
      %2351 = vmatpush1.msra.mxu0 %v2187
      %2352 = vmatprep.subr.mxu0 %v2204
      %2353 = vmatpush1.msra.mxu0 %v2203
      %2354 = vmatprep.subr.mxu0 %v2208
      %2355 = vmatpush1.msra.mxu0 %v2207
      %2356 = vmatprep.subr.mxu0 %v2212
      %2357 = vmatpush1.msra.mxu0 %v2211
      %2358 = vmatprep.subr.mxu0 %v2216
      %2359 = vmatpush1.msra.mxu0 %v2215
      %2360 = vmatprep.subr.mxu0 %v2220
      %2361 = vmatpush1.msra.mxu0 %v2219
      %2362 = vmatprep.subr.mxu0 %v2224
      %2363 = vmatpush1.msra.mxu0 %v2223
      %2364 = vmatprep.subr.mxu0 %v2228
      %2365 = vmatpush1.msra.mxu0 %v2227
      %2366 = vmatprep.subr.mxu0 %v2232
      %2367 = vmatpush1.msra.mxu0 %v2231
      %2368 = vmatprep.subr.mxu0 %v2236
      %2369 = vmatpush1.msra.mxu0 %v2235
      %2370 = vmatprep.subr.mxu0 %v2240
      %2371 = vmatpush1.msra.mxu0 %v2239
      %2372 = vmatprep.subr.mxu0 0.0
      %2373 = vmatpush1.msra.mxu0 0.0
      %2374 = vmatprep.subr.mxu0 0.0
      %2375 = vmatpush1.msra.mxu0 0.0
      %2376 = vmatprep.subr.mxu0 0.0
      %2377 = vmatpush1.msra.mxu0 0.0
      %2378 = vmatprep.subr.mxu0 0.0
      %2379 = vmatpush1.msra.mxu0 0.0
      %2380 = vmatprep.subr.mxu0 0.0
      %2381 = vmatpush1.msra.mxu0 0.0
      %2382 = vmatprep.mubr.f32.mxu0 %v2242
      %2383 = vmatmul.mubr.f32.gmra.mrb[0].mxu0 %v2241
      %v2384 = vpop.f32.mrb[0].mxu0
      %v2385 = vadd.f32 %v2245, %v2384
      %v2386 = vpop.f32.mrb[0].mxu0
      %v2387 = vadd.f32 %v2245, %v2386
      %2388 = vdwg.mxu0
      %v2389 = vadd.f32 %v2314, %v2316
      %v2390 = vadd.f32 %v2389, %v2385
      %v2391 = vadd.f32 %v2390, %v2387
      %2392 = vadd.xlane.f32.xlu0 %v2391
      %v2393 = vpop.xlane.xlu0 %2392
      %v2394 = vmul.f32 %v2314, %v2314
      %v2395 = vmul.f32 %v2316, %v2316
      %v2396 = vmul.f32 %v2385, %v2385
      %v2397 = vmul.f32 %v2387, %v2387
      %v2398 = vadd.f32 %v2394, %v2395
      %v2399 = vadd.f32 %v2398, %v2396
      %v2400 = vadd.f32 %v2399, %v2397
      %2401 = vadd.xlane.f32.xlu0 %v2400
      %v2402 = vpop.xlane.xlu0 %2401
      %v2403 = vsel %vm578, %v2393, %v2402
      %2404 = vmatprep.subr.mxu0 0.0
      %2405 = vmatpush1.msra.mxu0 %v2403
      %2406 = vmatprep.subr.mxu0 0.0
      %2407 = vmatpush1.msra.mxu0 0.0
      %2408 = vmatprep.subr.mxu0 0.0
      %2409 = vmatpush1.msra.mxu0 0.0
      %2410 = vmatprep.subr.mxu0 0.0
      %2411 = vmatpush1.msra.mxu0 0.0
      %2412 = vmatprep.subr.mxu0 0.0
      %2413 = vmatpush1.msra.mxu0 0.0
      %2414 = vmatprep.subr.mxu0 0.0
      %2415 = vmatpush1.msra.mxu0 0.0
      %2416 = vmatprep.subr.mxu0 0.0
      %2417 = vmatpush1.msra.mxu0 0.0
      %2418 = vmatprep.subr.mxu0 0.0
      %2419 = vmatpush1.msra.mxu0 0.0
      %2420 = vmatprep.subr.mxu0 0.0
      %2421 = vmatpush1.msra.mxu0 0.0
      %2422 = vmatprep.subr.mxu0 0.0
      %2423 = vmatpush1.msra.mxu0 0.0
      %2424 = vmatprep.subr.mxu0 0.0
      %2425 = vmatpush1.msra.mxu0 0.0
      %2426 = vmatprep.subr.mxu0 0.0
      %2427 = vmatpush1.msra.mxu0 0.0
      %2428 = vmatprep.subr.mxu0 0.0
      %2429 = vmatpush1.msra.mxu0 0.0
      %2430 = vmatprep.subr.mxu0 0.0
      %2431 = vmatpush1.msra.mxu0 0.0
      %2432 = vmatprep.subr.mxu0 0.0
      %2433 = vmatpush1.msra.mxu0 0.0
      %2434 = vmatprep.subr.mxu0 0.0
      %2435 = vmatpush1.msra.mxu0 0.0
      %2436 = vmatprep.subr.mxu0 0.0
      %2437 = vmatpush1.msra.mxu0 0.0
      %2438 = vmatprep.subr.mxu0 0.0
      %2439 = vmatpush1.msra.mxu0 0.0
      %2440 = vmatprep.subr.mxu0 0.0
      %2441 = vmatpush1.msra.mxu0 0.0
      %2442 = vmatprep.subr.mxu0 0.0
      %2443 = vmatpush1.msra.mxu0 0.0
      %2444 = vmatprep.subr.mxu0 0.0
      %2445 = vmatpush1.msra.mxu0 0.0
      %2446 = vmatprep.subr.mxu0 0.0
      %2447 = vmatpush1.msra.mxu0 0.0
      %2448 = vmatprep.subr.mxu0 0.0
      %2449 = vmatpush1.msra.mxu0 0.0
      %2450 = vmatprep.subr.mxu0 0.0
      %2451 = vmatpush1.msra.mxu0 0.0
      %2452 = vmatprep.subr.mxu0 0.0
      %2453 = vmatpush1.msra.mxu0 0.0
      %2454 = vmatprep.subr.mxu0 0.0
      %2455 = vmatpush1.msra.mxu0 0.0
      %2456 = vmatprep.subr.mxu0 0.0
      %2457 = vmatpush1.msra.mxu0 0.0
      %2458 = vmatprep.subr.mxu0 0.0
      %2459 = vmatpush1.msra.mxu0 0.0
      %2460 = vmatprep.subr.mxu0 0.0
      %2461 = vmatpush1.msra.mxu0 0.0
      %2462 = vmatprep.subr.mxu0 0.0
      %2463 = vmatpush1.msra.mxu0 0.0
      %2464 = vmatprep.subr.mxu0 0.0
      %2465 = vmatpush1.msra.mxu0 0.0
      %2466 = vmatprep.subr.mxu0 0.0
      %2467 = vmatpush1.msra.mxu0 0.0
      %2468 = vmatprep.mubr.f32.mxu0 0.0
      %2469 = vmatmul.mubr.f32.gmra.mrb[0].mxu0 %v582
      %v2470 = vpop.f32.mrb[0].mxu0
      %v2471 = vadd.f32 0.0, %v2470
      %v2472 = vpop.f32.mrb[0].mxu0
      %2473 = vdwg.mxu0
      %v2474 = vmul.f32 %v2471, 0.0009765625
      %v2475 = vmul.f32 %v2474, %v2474
      %2477 = vrot.lane.b32.xlu0 %v2475, 1
      %v2478 = vpop.permute.xlu0 %2477
      %v2480 = vsub.f32 %v2474, %v2478
      %v2481 = vmax.f32 %v2480, 0.0
      %2483 = vset.pattern.permute.xlu0 0
      %2484 = vperm.xlu0 %2483, %v2474
      %v2485 = vpop.permute.xlu0 %2484
      %v2487 = vsub.f32 %v2314, %v2485
      %v2488 = vsub.f32 %v2316, %v2485
      %v2489 = vsub.f32 %v2385, %v2485
      %v2490 = vsub.f32 %v2387, %v2485
      %v2491 = vadd.f32 %v2481, 1e-05
      %v2492 = vrsqrt.pop %v2491
      %2494 = vset.pattern.permute.xlu0 1
      %2495 = vperm.xlu0 %2494, %v2492
      %v2496 = vpop.permute.xlu0 %2495
      %v2498 = vmul.f32 %v2487, %v2496
      %v2499 = vmul.f32 %v2488, %v2496
      %v2500 = vmul.f32 %v2489, %v2496
      %v2501 = vmul.f32 %v2490, %v2496
      %2502 = vset.pattern.permute.xlu0 7
      %2503 = vperm.xlu0 %2502, %v373
      %v2504 = vpop.permute.xlu0 %2503
      %v2506 = vmul.f32 %v2498, %v2504
      %v2507 = vmul.f32 %v2499, %v2504
      %v2508 = vmul.f32 %v2500, %v2504
      %v2509 = vmul.f32 %v2501, %v2504
      %2510 = vset.pattern.permute.xlu0 8
      %2511 = vperm.xlu0 %2510, %v373
      %v2512 = vpop.permute.xlu0 %2511
      %v2514 = vadd.f32 %v2506, %v2512
      %v2515 = vadd.f32 %v2507, %v2512
      %v2516 = vadd.f32 %v2508, %v2512
      %v2517 = vadd.f32 %v2509, %v2512
      %vm2518 = vcmp.ge.f32.partialorder %v2514, 0.0
      %vm2519 = vcmp.ge.f32.partialorder %v2515, 0.0
      %vm2520 = vcmp.ge.f32.partialorder %v2516, 0.0
      %vm2521 = vcmp.ge.f32.partialorder %v2517, 0.0
      %v2522 = vrot.slane %v373, 2
      %2523 = vrot.lane.b32.xlu0 %v2522, 114
      %v2524 = vpop.permute.xlu0 %2523
      %s2525 = vtos %v2524
      %v2526 = vstv %s2525
      %v2528 = vmul.f32 %v2526, %v2514
      %v2529 = vmul.f32 %v2526, %v2515
      %v2530 = vmul.f32 %v2526, %v2516
      %v2531 = vmul.f32 %v2526, %v2517
      %v2532 = vsel %vm2518, %v2514, %v2528
      %v2533 = vsel %vm2519, %v2515, %v2529
      %v2534 = vsel %vm2520, %v2516, %v2530
      %v2535 = vsel %vm2521, %v2517, %v2531
      %v2536 = vadd.f32 %v2532, %v2533
      %v2537 = vadd.f32 %v2536, %v2534
      %v2538 = vadd.f32 %v2537, %v2535
      %2539 = vadd.xlane.f32.xlu0 %v2538
      %v2540 = vpop.xlane.xlu0 %2539
      %v2541 = vmul.f32 %v2540, 0.001953125
      %v2542 = vld [vmem:[%s6] sm:$0xf]
      %2543 = vrot.lane.b32.xlu0 %v373, 115
      %v2544 = vpop.permute.xlu0 %2543
      %v2547 = vsel %vm580, %v2542, 0
      %2549 = vmatprep.subr.mxu0 0.0
      %2550 = vmatpush1.msra.mxu0 %v2541
      %2551 = vmatprep.subr.mxu0 0.0
      %2552 = vmatpush1.msra.mxu0 0.0
      %2553 = vmatprep.subr.mxu0 0.0
      %2554 = vmatpush1.msra.mxu0 0.0
      %2555 = vmatprep.subr.mxu0 0.0
      %2556 = vmatpush1.msra.mxu0 0.0
      %2557 = vmatprep.subr.mxu0 0.0
      %2558 = vmatpush1.msra.mxu0 0.0
      %2559 = vmatprep.subr.mxu0 0.0
      %2560 = vmatpush1.msra.mxu0 0.0
      %2561 = vmatprep.subr.mxu0 0.0
      %2562 = vmatpush1.msra.mxu0 0.0
      %2563 = vmatprep.subr.mxu0 0.0
      %2564 = vmatpush1.msra.mxu0 0.0
      %2565 = vmatprep.subr.mxu0 0.0
      %2566 = vmatpush1.msra.mxu0 0.0
      %2567 = vmatprep.subr.mxu0 0.0
      %2568 = vmatpush1.msra.mxu0 0.0
      %2569 = vmatprep.subr.mxu0 0.0
      %2570 = vmatpush1.msra.mxu0 0.0
      %2571 = vmatprep.subr.mxu0 0.0
      %2572 = vmatpush1.msra.mxu0 0.0
      %2573 = vmatprep.subr.mxu0 0.0
      %2574 = vmatpush1.msra.mxu0 0.0
      %2575 = vmatprep.subr.mxu0 0.0
      %2576 = vmatpush1.msra.mxu0 0.0
      %2577 = vmatprep.subr.mxu0 0.0
      %2578 = vmatpush1.msra.mxu0 0.0
      %2579 = vmatprep.subr.mxu0 0.0
      %2580 = vmatpush1.msra.mxu0 0.0
      %2581 = vmatprep.subr.mxu0 0.0
      %2582 = vmatpush1.msra.mxu0 0.0
      %2583 = vmatprep.subr.mxu0 0.0
      %2584 = vmatpush1.msra.mxu0 0.0
      %2585 = vmatprep.subr.mxu0 0.0
      %2586 = vmatpush1.msra.mxu0 0.0
      %2587 = vmatprep.subr.mxu0 0.0
      %2588 = vmatpush1.msra.mxu0 0.0
      %2589 = vmatprep.subr.mxu0 0.0
      %2590 = vmatpush1.msra.mxu0 0.0
      %2591 = vmatprep.subr.mxu0 0.0
      %2592 = vmatpush1.msra.mxu0 0.0
      %2593 = vmatprep.subr.mxu0 0.0
      %2594 = vmatpush1.msra.mxu0 0.0
      %2595 = vmatprep.subr.mxu0 0.0
      %2596 = vmatpush1.msra.mxu0 0.0
      %2597 = vmatprep.subr.mxu0 0.0
      %2598 = vmatpush1.msra.mxu0 0.0
      %2599 = vmatprep.subr.mxu0 0.0
      %2600 = vmatpush1.msra.mxu0 0.0
      %2601 = vmatprep.subr.mxu0 0.0
      %2602 = vmatpush1.msra.mxu0 0.0
      %2603 = vmatprep.subr.mxu0 0.0
      %2604 = vmatpush1.msra.mxu0 0.0
      %2605 = vmatprep.subr.mxu0 0.0
      %2606 = vmatpush1.msra.mxu0 0.0
      %2607 = vmatprep.subr.mxu0 0.0
      %2608 = vmatpush1.msra.mxu0 0.0
      %2609 = vmatprep.subr.mxu0 0.0
      %2610 = vmatpush1.msra.mxu0 0.0
      %2611 = vmatprep.subr.mxu0 0.0
      %2612 = vmatpush1.msra.mxu0 0.0
      %2613 = vmatprep.mubr.f32.mxu0 0.0
      %2614 = vmatmul.mubr.f32.gmra.mrb[0].mxu0 %v2547
      %v2615 = vpop.f32.mrb[0].mxu0
      %v2616 = vadd.f32 %v2544, %v2615
      %v2617 = vpop.f32.mrb[0].mxu0
      %2618 = vdwg.mxu0
      %vm2619 = vcmp.ge.f32.partialorder %v2616, 0.0
      %v2620 = vlaneseq
      %v2621 = vshrl.u32 %v2620, 7
      %v2622 = vsub.s32 3, %v2621
      %v2623 = vrot.slane %v373, %v2622
      %2625 = vrot.lane.b32.xlu0 %v2616, 14
      %v2626 = vpop.permute.xlu0 %2625
      %v2628 = vmul.f32 %v2623, %v2626
      %2630 = vrot.lane.b32.xlu0 %v2628, 114
      %v2631 = vpop.permute.xlu0 %2630
      %v2633 = vsel %vm2619, %v2616, %v2631
      %v2634 = vld [vmem:[%s7] sm:$0xff]
      %2635 = vrot.lane.b32.xlu0 %v373, 119
      %v2636 = vpop.permute.xlu0 %2635
      %v2639 = vsel %vm409, %v2634, 0
      %v2642 = vsel %vm413, %v2633, 0
      %2644 = vmatprep.subr.mxu0 0.0
      %2645 = vmatpush1.msra.mxu0 %v2642
      %2646 = vmatprep.subr.mxu0 0.0
      %2647 = vmatpush1.msra.mxu0 0.0
      %2648 = vmatprep.subr.mxu0 0.0
      %2649 = vmatpush1.msra.mxu0 0.0
      %2650 = vmatprep.subr.mxu0 0.0
      %2651 = vmatpush1.msra.mxu0 0.0
      %2652 = vmatprep.subr.mxu0 0.0
      %2653 = vmatpush1.msra.mxu0 0.0
      %2654 = vmatprep.subr.mxu0 0.0
      %2655 = vmatpush1.msra.mxu0 0.0
      %2656 = vmatprep.subr.mxu0 0.0
      %2657 = vmatpush1.msra.mxu0 0.0
      %2658 = vmatprep.subr.mxu0 0.0
      %2659 = vmatpush1.msra.mxu0 0.0
      %2660 = vmatprep.subr.mxu0 0.0
      %2661 = vmatpush1.msra.mxu0 0.0
      %2662 = vmatprep.subr.mxu0 0.0
      %2663 = vmatpush1.msra.mxu0 0.0
      %2664 = vmatprep.subr.mxu0 0.0
      %2665 = vmatpush1.msra.mxu0 0.0
      %2666 = vmatprep.subr.mxu0 0.0
      %2667 = vmatpush1.msra.mxu0 0.0
      %2668 = vmatprep.subr.mxu0 0.0
      %2669 = vmatpush1.msra.mxu0 0.0
      %2670 = vmatprep.subr.mxu0 0.0
      %2671 = vmatpush1.msra.mxu0 0.0
      %2672 = vmatprep.subr.mxu0 0.0
      %2673 = vmatpush1.msra.mxu0 0.0
      %2674 = vmatprep.subr.mxu0 0.0
      %2675 = vmatpush1.msra.mxu0 0.0
      %2676 = vmatprep.subr.mxu0 0.0
      %2677 = vmatpush1.msra.mxu0 0.0
      %2678 = vmatprep.subr.mxu0 0.0
      %2679 = vmatpush1.msra.mxu0 0.0
      %2680 = vmatprep.subr.mxu0 0.0
      %2681 = vmatpush1.msra.mxu0 0.0
      %2682 = vmatprep.subr.mxu0 0.0
      %2683 = vmatpush1.msra.mxu0 0.0
      %2684 = vmatprep.subr.mxu0 0.0
      %2685 = vmatpush1.msra.mxu0 0.0
      %2686 = vmatprep.subr.mxu0 0.0
      %2687 = vmatpush1.msra.mxu0 0.0
      %2688 = vmatprep.subr.mxu0 0.0
      %2689 = vmatpush1.msra.mxu0 0.0
      %2690 = vmatprep.subr.mxu0 0.0
      %2691 = vmatpush1.msra.mxu0 0.0
      %2692 = vmatprep.subr.mxu0 0.0
      %2693 = vmatpush1.msra.mxu0 0.0
      %2694 = vmatprep.subr.mxu0 0.0
      %2695 = vmatpush1.msra.mxu0 0.0
      %2696 = vmatprep.subr.mxu0 0.0
      %2697 = vmatpush1.msra.mxu0 0.0
      %2698 = vmatprep.subr.mxu0 0.0
      %2699 = vmatpush1.msra.mxu0 0.0
      %2700 = vmatprep.subr.mxu0 0.0
      %2701 = vmatpush1.msra.mxu0 0.0
      %2702 = vmatprep.subr.mxu0 0.0
      %2703 = vmatpush1.msra.mxu0 0.0
      %2704 = vmatprep.subr.mxu0 0.0
      %2705 = vmatpush1.msra.mxu0 0.0
      %2706 = vmatprep.subr.mxu0 0.0
      %2707 = vmatpush1.msra.mxu0 0.0
      %2708 = vmatprep.mubr.f32.mxu0 0.0
      %2709 = vmatmul.mubr.f32.gmra.mrb[0].mxu0 %v2639
      %v2710 = vpop.f32.mrb[0].mxu0
      %v2711 = vadd.f32 %v2636, %v2710
      %v2712 = vpop.f32.mrb[0].mxu0
      %2713 = vdwg.mxu0
      %v2714 = vxor.u32 %v2711, 2147483648
      %v2715 = vmul.f32 %v2714, 1.442695
      %v2716 = vpow.pop %v2715
      %v2717 = vadd.f32 %v2716, 1.0
      %v2718 = vrcp.pop %v2717
      %v2719 = vmul.f32 1.0, %v2718
      %2721 = vset.pattern.permute.xlu0 0
      %2722 = vperm.xlu0 %2721, %v2719
      %v2723 = vpop.permute.xlu0 %2722
      %v2725 = vmul.f32 %v2532, %v2723
      %v2726 = vmul.f32 %v2533, %v2723
      %v2727 = vmul.f32 %v2534, %v2723
      %v2728 = vmul.f32 %v2535, %v2723
      %v2729 = vadd.f32 %v2725, %v711
      %v2730 = vadd.f32 %v2726, %v712
      %v2731 = vadd.f32 %v2727, %v713
      %v2732 = vadd.f32 %v2728, %v714
      %2733 = vst [vmem:[%s367] sm:$0xff] %v2729
      %2734 = vst [vmem:[%s367 + $0x8] sm:$0xff] %v2730
      %2735 = vst [vmem:[%s367 + $0x10] sm:$0xff] %v2731
      %2736 = vst [vmem:[%s367 + $0x18] sm:$0xff] %v2732
      %2737 = vrot.lane.b32.xlu0 %v2729, 127
      %v2738 = vpop.permute.xlu0 %2737
      %2739 = vrot.lane.b32.xlu0 %v2730, 127
      %v2740 = vpop.permute.xlu0 %2739
      %2741 = vrot.lane.b32.xlu0 %v2731, 127
      %v2742 = vpop.permute.xlu0 %2741
      %2743 = vrot.lane.b32.xlu0 %v2732, 127
      %v2744 = vpop.permute.xlu0 %2743
      %v2745 = vsel %vm1245, %v2742, %v2744
      %v2746 = vsel %vm1245, %v2740, %v2742
      %v2747 = vsel %vm1245, %v2738, %v2740
      %v2748 = vsel %vm1245, %v2744, %v2738
      %2749 = vrot.lane.b32.xlu0 %v2729, 120
      %v2750 = vpop.permute.xlu0 %2749
      %2751 = vrot.lane.b32.xlu0 %v2730, 120
      %v2752 = vpop.permute.xlu0 %2751
      %2753 = vrot.lane.b32.xlu0 %v2731, 120
      %v2754 = vpop.permute.xlu0 %2753
      %2755 = vrot.lane.b32.xlu0 %v2732, 120
      %v2756 = vpop.permute.xlu0 %2755
      %v2757 = vsel %vm1324, %v2754, %v2756
      %v2758 = vsel %vm1324, %v2752, %v2754
      %v2759 = vsel %vm1324, %v2750, %v2752
      %v2760 = vsel %vm1324, %v2756, %v2750
      %2761 = vrot.lane.b32.xlu0 %v2729, 119
      %v2762 = vpop.permute.xlu0 %2761
      %2763 = vrot.lane.b32.xlu0 %v2730, 119
      %v2764 = vpop.permute.xlu0 %2763
      %2765 = vrot.lane.b32.xlu0 %v2731, 119
      %v2766 = vpop.permute.xlu0 %2765
      %2767 = vrot.lane.b32.xlu0 %v2732, 119
      %v2768 = vpop.permute.xlu0 %2767
      %v2769 = vsel %vm1363, %v2766, %v2768
      %v2770 = vsel %vm1363, %v2764, %v2766
      %v2771 = vsel %vm1363, %v2762, %v2764
      %v2772 = vsel %vm1363, %v2768, %v2762
      %2773 = vrot.lane.b32.xlu0 %v2729, 64
      %v2774 = vpop.permute.xlu0 %2773
      %2775 = vrot.lane.b32.xlu0 %v2730, 64
      %v2776 = vpop.permute.xlu0 %2775
      %2777 = vrot.lane.b32.xlu0 %v2731, 64
      %v2778 = vpop.permute.xlu0 %2777
      %2779 = vrot.lane.b32.xlu0 %v2732, 64
      %v2780 = vpop.permute.xlu0 %2779
      %v2781 = vsel %vm887, %v2778, %v2780
      %v2782 = vsel %vm887, %v2776, %v2778
      %v2783 = vsel %vm887, %v2774, %v2776
      %v2784 = vsel %vm887, %v2780, %v2774
      %2785 = vrot.lane.b32.xlu0 %v2729, 63
      %v2786 = vpop.permute.xlu0 %2785
      %2787 = vrot.lane.b32.xlu0 %v2730, 63
      %v2788 = vpop.permute.xlu0 %2787
      %2789 = vrot.lane.b32.xlu0 %v2731, 63
      %v2790 = vpop.permute.xlu0 %2789
      %2791 = vrot.lane.b32.xlu0 %v2732, 63
      %v2792 = vpop.permute.xlu0 %2791
      %v2793 = vsel %vm926, %v2790, %v2792
      %v2794 = vsel %vm926, %v2788, %v2790
      %v2795 = vsel %vm926, %v2786, %v2788
      %v2796 = vsel %vm926, %v2792, %v2786
      %2797 = vrot.lane.b32.xlu0 %v2729, 56
      %v2798 = vpop.permute.xlu0 %2797
      %2799 = vrot.lane.b32.xlu0 %v2730, 56
      %v2800 = vpop.permute.xlu0 %2799
      %2801 = vrot.lane.b32.xlu0 %v2731, 56
      %v2802 = vpop.permute.xlu0 %2801
      %2803 = vrot.lane.b32.xlu0 %v2732, 56
      %v2804 = vpop.permute.xlu0 %2803
      %v2805 = vsel %vm1008, %v2802, %v2804
      %v2806 = vsel %vm1008, %v2800, %v2802
      %v2807 = vsel %vm1008, %v2798, %v2800
      %v2808 = vsel %vm1008, %v2804, %v2798
      %2809 = vrot.lane.b32.xlu0 %v2729, 55
      %v2810 = vpop.permute.xlu0 %2809
      %2811 = vrot.lane.b32.xlu0 %v2730, 55
      %v2812 = vpop.permute.xlu0 %2811
      %2813 = vrot.lane.b32.xlu0 %v2731, 55
      %v2814 = vpop.permute.xlu0 %2813
      %2815 = vrot.lane.b32.xlu0 %v2732, 55
      %v2816 = vpop.permute.xlu0 %2815
      %v2817 = vsel %vm1047, %v2814, %v2816
      %v2818 = vsel %vm1047, %v2812, %v2814
      %v2819 = vsel %vm1047, %v2810, %v2812
      %v2820 = vsel %vm1047, %v2816, %v2810
      %v2821 = vld [vmem:[%s8] sm:$0xff]
      %v2822 = vld [vmem:[%s8 + $0x8] sm:$0xff]
      %vm2823 = vcmask 523264
      %v2825 = vsel %vm2823, %v2821, 0
      %v2828 = vsel %vm2823, %v2822, 0
      %2830 = vmatprep.subr.mxu0 %v2730
      %2831 = vmatpush1.msra.mxu0 %v2729
      %2832 = vmatprep.subr.mxu0 %v2746
      %2833 = vmatpush1.msra.mxu0 %v2747
      %2834 = vmatprep.subr.mxu0 %v2758
      %2835 = vmatpush1.msra.mxu0 %v2759
      %2836 = vmatprep.subr.mxu0 %v2770
      %2837 = vmatpush1.msra.mxu0 %v2771
      %2838 = vmatprep.subr.mxu0 %v2782
      %2839 = vmatpush1.msra.mxu0 %v2783
      %2840 = vmatprep.subr.mxu0 %v2794
      %2841 = vmatpush1.msra.mxu0 %v2795
      %2842 = vmatprep.subr.mxu0 %v2806
      %2843 = vmatpush1.msra.mxu0 %v2807
      %2844 = vmatprep.subr.mxu0 %v2818
      %2845 = vmatpush1.msra.mxu0 %v2819
      %2846 = vmatprep.subr.mxu0 0.0
      %2847 = vmatpush1.msra.mxu0 0.0
      %2848 = vmatprep.subr.mxu0 0.0
      %2849 = vmatpush1.msra.mxu0 0.0
      %2850 = vmatprep.subr.mxu0 0.0
      %2851 = vmatpush1.msra.mxu0 0.0
      %2852 = vmatprep.subr.mxu0 0.0
      %2853 = vmatpush1.msra.mxu0 0.0
      %2854 = vmatprep.subr.mxu0 0.0
      %2855 = vmatpush1.msra.mxu0 0.0
      %2856 = vmatprep.subr.mxu0 0.0
      %2857 = vmatpush1.msra.mxu0 0.0
      %2858 = vmatprep.subr.mxu0 0.0
      %2859 = vmatpush1.msra.mxu0 0.0
      %2860 = vmatprep.subr.mxu0 0.0
      %2861 = vmatpush1.msra.mxu0 0.0
      %2862 = vmatprep.subr.mxu0 0.0
      %2863 = vmatpush1.msra.mxu0 0.0
      %2864 = vmatprep.subr.mxu0 0.0
      %2865 = vmatpush1.msra.mxu0 0.0
      %2866 = vmatprep.subr.mxu0 0.0
      %2867 = vmatpush1.msra.mxu0 0.0
      %2868 = vmatprep.subr.mxu0 0.0
      %2869 = vmatpush1.msra.mxu0 0.0
      %2870 = vmatprep.subr.mxu0 0.0
      %2871 = vmatpush1.msra.mxu0 0.0
      %2872 = vmatprep.subr.mxu0 0.0
      %2873 = vmatpush1.msra.mxu0 0.0
      %2874 = vmatprep.subr.mxu0 0.0
      %2875 = vmatpush1.msra.mxu0 0.0
      %2876 = vmatprep.subr.mxu0 0.0
      %2877 = vmatpush1.msra.mxu0 0.0
      %2878 = vmatprep.subr.mxu0 0.0
      %2879 = vmatpush1.msra.mxu0 0.0
      %2880 = vmatprep.subr.mxu0 0.0
      %2881 = vmatpush1.msra.mxu0 0.0
      %2882 = vmatprep.subr.mxu0 0.0
      %2883 = vmatpush1.msra.mxu0 0.0
      %2884 = vmatprep.subr.mxu0 0.0
      %2885 = vmatpush1.msra.mxu0 0.0
      %2886 = vmatprep.subr.mxu0 0.0
      %2887 = vmatpush1.msra.mxu0 0.0
      %2888 = vmatprep.subr.mxu0 0.0
      %2889 = vmatpush1.msra.mxu0 0.0
      %2890 = vmatprep.subr.mxu0 0.0
      %2891 = vmatpush1.msra.mxu0 0.0
      %2892 = vmatprep.subr.mxu0 0.0
      %2893 = vmatpush1.msra.mxu0 0.0
      %2894 = vmatprep.mubr.f32.mxu0 0.0
      %2895 = vmatmul.mubr.f32.gmra.mrb[0].mxu0 %v2825
      %v2896 = vpop.f32.mrb[0].mxu0
      %v2897 = vadd.f32 0.0, %v2896
      %v2898 = vpop.f32.mrb[0].mxu0
      %v2899 = vadd.f32 0.0, %v2898
      %2900 = vmatprep.mubr.f32.mxu0 0.0
      %2901 = vmatmul.mubr.f32.gmra.mrb[0].mxu0 %v2828
      %v2902 = vpop.f32.mrb[0].mxu0
      %v2903 = vadd.f32 0.0, %v2902
      %v2904 = vpop.f32.mrb[0].mxu0
      %v2905 = vadd.f32 0.0, %v2904
      %2906 = vdwg.mxu0
      %2907 = vmatprep.subr.mxu0 %v2732
      %2908 = vmatpush1.msra.mxu0 %v2731
      %2909 = vmatprep.subr.mxu0 %v2748
      %2910 = vmatpush1.msra.mxu0 %v2745
      %2911 = vmatprep.subr.mxu0 %v2760
      %2912 = vmatpush1.msra.mxu0 %v2757
      %2913 = vmatprep.subr.mxu0 %v2772
      %2914 = vmatpush1.msra.mxu0 %v2769
      %2915 = vmatprep.subr.mxu0 %v2784
      %2916 = vmatpush1.msra.mxu0 %v2781
      %2917 = vmatprep.subr.mxu0 %v2796
      %2918 = vmatpush1.msra.mxu0 %v2793
      %2919 = vmatprep.subr.mxu0 %v2808
      %2920 = vmatpush1.msra.mxu0 %v2805
      %2921 = vmatprep.subr.mxu0 %v2820
      %2922 = vmatpush1.msra.mxu0 %v2817
      %2923 = vmatprep.subr.mxu0 0.0
      %2924 = vmatpush1.msra.mxu0 0.0
      %2925 = vmatprep.subr.mxu0 0.0
      %2926 = vmatpush1.msra.mxu0 0.0
      %2927 = vmatprep.subr.mxu0 0.0
      %2928 = vmatpush1.msra.mxu0 0.0
      %2929 = vmatprep.subr.mxu0 0.0
      %2930 = vmatpush1.msra.mxu0 0.0
      %2931 = vmatprep.subr.mxu0 0.0
      %2932 = vmatpush1.msra.mxu0 0.0
      %2933 = vmatprep.subr.mxu0 0.0
      %2934 = vmatpush1.msra.mxu0 0.0
      %2935 = vmatprep.subr.mxu0 0.0
      %2936 = vmatpush1.msra.mxu0 0.0
      %2937 = vmatprep.subr.mxu0 0.0
      %2938 = vmatpush1.msra.mxu0 0.0
      %2939 = vmatprep.subr.mxu0 0.0
      %2940 = vmatpush1.msra.mxu0 0.0
      %2941 = vmatprep.subr.mxu0 0.0
      %2942 = vmatpush1.msra.mxu0 0.0
      %2943 = vmatprep.subr.mxu0 0.0
      %2944 = vmatpush1.msra.mxu0 0.0
      %2945 = vmatprep.subr.mxu0 0.0
      %2946 = vmatpush1.msra.mxu0 0.0
      %2947 = vmatprep.subr.mxu0 0.0
      %2948 = vmatpush1.msra.mxu0 0.0
      %2949 = vmatprep.subr.mxu0 0.0
      %2950 = vmatpush1.msra.mxu0 0.0
      %2951 = vmatprep.subr.mxu0 0.0
      %2952 = vmatpush1.msra.mxu0 0.0
      %2953 = vmatprep.subr.mxu0 0.0
      %2954 = vmatpush1.msra.mxu0 0.0
      %2955 = vmatprep.subr.mxu0 0.0
      %2956 = vmatpush1.msra.mxu0 0.0
      %2957 = vmatprep.subr.mxu0 0.0
      %2958 = vmatpush1.msra.mxu0 0.0
      %2959 = vmatprep.subr.mxu0 0.0
      %2960 = vmatpush1.msra.mxu0 0.0
      %2961 = vmatprep.subr.mxu0 0.0
      %2962 = vmatpush1.msra.mxu0 0.0
      %2963 = vmatprep.subr.mxu0 0.0
      %2964 = vmatpush1.msra.mxu0 0.0
      %2965 = vmatprep.subr.mxu0 0.0
      %2966 = vmatpush1.msra.mxu0 0.0
      %2967 = vmatprep.subr.mxu0 0.0
      %2968 = vmatpush1.msra.mxu0 0.0
      %2969 = vmatprep.subr.mxu0 0.0
      %2970 = vmatpush1.msra.mxu0 0.0
      %2971 = vmatprep.mubr.f32.mxu0 0.0
      %2972 = vmatmul.mubr.f32.gmra.mrb[0].mxu0 %v2825
      %v2973 = vpop.f32.mrb[0].mxu0
      %v2974 = vadd.f32 0.0, %v2973
      %v2975 = vpop.f32.mrb[0].mxu0
      %v2976 = vadd.f32 0.0, %v2975
      %2977 = vmatprep.mubr.f32.mxu0 0.0
      %2978 = vmatmul.mubr.f32.gmra.mrb[0].mxu0 %v2828
      %v2979 = vpop.f32.mrb[0].mxu0
      %v2980 = vadd.f32 0.0, %v2979
      %v2981 = vpop.f32.mrb[0].mxu0
      %v2982 = vadd.f32 0.0, %v2981
      %2983 = vdwg.mxu0
      %v2984 = vadd.s32 %v382, 16
      %v2985 = vadd.s32 %v382, 24
      %v2986 = vadd.s32 %v382, 32
      %v2987 = vadd.s32 %v382, 40
      %v2988 = vadd.s32 %v382, 48
      %v2989 = vadd.s32 %v382, 56
      %v2990 = vadd.s32 %v382, 64
      %v2991 = vadd.s32 %v382, 72
      %v2992 = vadd.s32 %v382, 80
      %v2993 = vadd.s32 %v382, 88
      %v2994 = vadd.s32 %v382, 96
      %v2995 = vadd.s32 %v382, 104
      %v2996 = vadd.s32 %v382, 112
      %v2997 = vadd.s32 %v382, 120
      %v2998 = vadd.s32 %v382, 128
      %v2999 = vadd.s32 %v382, 136
      %v3000 = vadd.s32 %v382, 144
      %v3001 = vadd.s32 %v382, 152
      %v3002 = vadd.s32 %v382, 160
      %v3003 = vadd.s32 %v382, 168
      %v3004 = vadd.s32 %v382, 176
      %v3005 = vadd.s32 %v382, 184
      %v3006 = vadd.s32 %v382, 192
      %v3007 = vadd.s32 %v382, 200
      %v3008 = vadd.s32 %v382, 208
      %v3009 = vadd.s32 %v382, 216
      %v3010 = vadd.s32 %v382, 224
      %v3011 = vadd.s32 %v382, 232
      %v3012 = vadd.s32 %v382, 240
      %v3013 = vadd.s32 %v382, 248
      %v3014 = vadd.s32 %v382, 256
      %v3015 = vadd.s32 %v382, 264
      %v3016 = vadd.s32 %v382, 272
      %v3017 = vadd.s32 %v382, 280
      %v3018 = vadd.s32 %v382, 288
      %v3019 = vadd.s32 %v382, 296
      %v3020 = vadd.s32 %v382, 304
      %v3021 = vadd.s32 %v382, 312
      %v3022 = vadd.s32 %v382, 320
      %v3023 = vadd.s32 %v382, 328
      %v3024 = vadd.s32 %v382, 336
      %v3025 = vadd.s32 %v382, 344
      %v3026 = vadd.s32 %v382, 352
      %v3027 = vadd.s32 %v382, 360
      %v3028 = vadd.s32 %v382, 368
      %v3029 = vadd.s32 %v382, 376
      %v3030 = vadd.s32 %v382, 384
      %v3031 = vadd.s32 %v382, 392
      %v3032 = vadd.s32 %v382, 400
      %v3033 = vadd.s32 %v382, 408
      %v3034 = vadd.s32 %v382, 416
      %v3035 = vadd.s32 %v382, 424
      %v3036 = vadd.s32 %v382, 432
      %v3037 = vadd.s32 %v382, 440
      %v3038 = vadd.s32 %v382, 448
      %v3039 = vadd.s32 %v382, 456
      %v3040 = vadd.s32 %v382, 464
      %v3041 = vadd.s32 %v382, 472
      %v3042 = vadd.s32 %v382, 480
      %v3043 = vadd.s32 %v382, 488
      %v3044 = vadd.s32 %v382, 496
      %v3045 = vadd.s32 %v382, 504
      %v3046 = vlaneseq
      %v3047 = vshrl.u32 %v3046, 7
      %v3048 = vsub.s32 0, %v3047
      %v3049 = vrot.slane %v380, %v3048
      %vm3050 = vcmp.eq.s32.totalorder %v382, %v3049
      %vm3051 = vcmp.eq.s32.totalorder %v389, %v3049
      %vm3052 = vcmp.eq.s32.totalorder %v2984, %v3049
      %vm3053 = vcmp.eq.s32.totalorder %v2985, %v3049
      %vm3054 = vcmp.eq.s32.totalorder %v2986, %v3049
      %vm3055 = vcmp.eq.s32.totalorder %v2987, %v3049
      %vm3056 = vcmp.eq.s32.totalorder %v2988, %v3049
      %vm3057 = vcmp.eq.s32.totalorder %v2989, %v3049
      %vm3058 = vcmp.eq.s32.totalorder %v2990, %v3049
      %vm3059 = vcmp.eq.s32.totalorder %v2991, %v3049
      %vm3060 = vcmp.eq.s32.totalorder %v2992, %v3049
      %vm3061 = vcmp.eq.s32.totalorder %v2993, %v3049
      %vm3062 = vcmp.eq.s32.totalorder %v2994, %v3049
      %vm3063 = vcmp.eq.s32.totalorder %v2995, %v3049
      %vm3064 = vcmp.eq.s32.totalorder %v2996, %v3049
      %vm3065 = vcmp.eq.s32.totalorder %v2997, %v3049
      %vm3066 = vcmp.eq.s32.totalorder %v2998, %v3049
      %vm3067 = vcmp.eq.s32.totalorder %v2999, %v3049
      %vm3068 = vcmp.eq.s32.totalorder %v3000, %v3049
      %vm3069 = vcmp.eq.s32.totalorder %v3001, %v3049
      %vm3070 = vcmp.eq.s32.totalorder %v3002, %v3049
      %vm3071 = vcmp.eq.s32.totalorder %v3003, %v3049
      %vm3072 = vcmp.eq.s32.totalorder %v3004, %v3049
      %vm3073 = vcmp.eq.s32.totalorder %v3005, %v3049
      %vm3074 = vcmp.eq.s32.totalorder %v3006, %v3049
      %vm3075 = vcmp.eq.s32.totalorder %v3007, %v3049
      %vm3076 = vcmp.eq.s32.totalorder %v3008, %v3049
      %vm3077 = vcmp.eq.s32.totalorder %v3009, %v3049
      %vm3078 = vcmp.eq.s32.totalorder %v3010, %v3049
      %vm3079 = vcmp.eq.s32.totalorder %v3011, %v3049
      %vm3080 = vcmp.eq.s32.totalorder %v3012, %v3049
      %vm3081 = vcmp.eq.s32.totalorder %v3013, %v3049
      %vm3082 = vcmp.eq.s32.totalorder %v3014, %v3049
      %vm3083 = vcmp.eq.s32.totalorder %v3015, %v3049
      %vm3084 = vcmp.eq.s32.totalorder %v3016, %v3049
      %vm3085 = vcmp.eq.s32.totalorder %v3017, %v3049
      %vm3086 = vcmp.eq.s32.totalorder %v3018, %v3049
      %vm3087 = vcmp.eq.s32.totalorder %v3019, %v3049
      %vm3088 = vcmp.eq.s32.totalorder %v3020, %v3049
      %vm3089 = vcmp.eq.s32.totalorder %v3021, %v3049
      %vm3090 = vcmp.eq.s32.totalorder %v3022, %v3049
      %vm3091 = vcmp.eq.s32.totalorder %v3023, %v3049
      %vm3092 = vcmp.eq.s32.totalorder %v3024, %v3049
      %vm3093 = vcmp.eq.s32.totalorder %v3025, %v3049
      %vm3094 = vcmp.eq.s32.totalorder %v3026, %v3049
      %vm3095 = vcmp.eq.s32.totalorder %v3027, %v3049
      %vm3096 = vcmp.eq.s32.totalorder %v3028, %v3049
      %vm3097 = vcmp.eq.s32.totalorder %v3029, %v3049
      %vm3098 = vcmp.eq.s32.totalorder %v3030, %v3049
      %vm3099 = vcmp.eq.s32.totalorder %v3031, %v3049
      %vm3100 = vcmp.eq.s32.totalorder %v3032, %v3049
      %vm3101 = vcmp.eq.s32.totalorder %v3033, %v3049
      %vm3102 = vcmp.eq.s32.totalorder %v3034, %v3049
      %vm3103 = vcmp.eq.s32.totalorder %v3035, %v3049
      %vm3104 = vcmp.eq.s32.totalorder %v3036, %v3049
      %vm3105 = vcmp.eq.s32.totalorder %v3037, %v3049
      %vm3106 = vcmp.eq.s32.totalorder %v3038, %v3049
      %vm3107 = vcmp.eq.s32.totalorder %v3039, %v3049
      %vm3108 = vcmp.eq.s32.totalorder %v3040, %v3049
      %vm3109 = vcmp.eq.s32.totalorder %v3041, %v3049
      %vm3110 = vcmp.eq.s32.totalorder %v3042, %v3049
      %vm3111 = vcmp.eq.s32.totalorder %v3043, %v3049
      %vm3112 = vcmp.eq.s32.totalorder %v3044, %v3049
      %vm3113 = vcmp.eq.s32.totalorder %v3045, %v3049
      %v3114 = vsel %vm3050, 1.0, 0.0
      %v3115 = vsel %vm3051, 1.0, 0.0
      %v3116 = vsel %vm3052, 1.0, 0.0
      %v3117 = vsel %vm3053, 1.0, 0.0
      %v3118 = vsel %vm3054, 1.0, 0.0
      %v3119 = vsel %vm3055, 1.0, 0.0
      %v3120 = vsel %vm3056, 1.0, 0.0
      %v3121 = vsel %vm3057, 1.0, 0.0
      %v3122 = vsel %vm3058, 1.0, 0.0
      %v3123 = vsel %vm3059, 1.0, 0.0
      %v3124 = vsel %vm3060, 1.0, 0.0
      %v3125 = vsel %vm3061, 1.0, 0.0
      %v3126 = vsel %vm3062, 1.0, 0.0
      %v3127 = vsel %vm3063, 1.0, 0.0
      %v3128 = vsel %vm3064, 1.0, 0.0
      %v3129 = vsel %vm3065, 1.0, 0.0
      %v3130 = vsel %vm3066, 1.0, 0.0
      %v3131 = vsel %vm3067, 1.0, 0.0
      %v3132 = vsel %vm3068, 1.0, 0.0
      %v3133 = vsel %vm3069, 1.0, 0.0
      %v3134 = vsel %vm3070, 1.0, 0.0
      %v3135 = vsel %vm3071, 1.0, 0.0
      %v3136 = vsel %vm3072, 1.0, 0.0
      %v3137 = vsel %vm3073, 1.0, 0.0
      %v3138 = vsel %vm3074, 1.0, 0.0
      %v3139 = vsel %vm3075, 1.0, 0.0
      %v3140 = vsel %vm3076, 1.0, 0.0
      %v3141 = vsel %vm3077, 1.0, 0.0
      %v3142 = vsel %vm3078, 1.0, 0.0
      %v3143 = vsel %vm3079, 1.0, 0.0
      %v3144 = vsel %vm3080, 1.0, 0.0
      %v3145 = vsel %vm3081, 1.0, 0.0
      %v3146 = vsel %vm3082, 1.0, 0.0
      %v3147 = vsel %vm3083, 1.0, 0.0
      %v3148 = vsel %vm3084, 1.0, 0.0
      %v3149 = vsel %vm3085, 1.0, 0.0
      %v3150 = vsel %vm3086, 1.0, 0.0
      %v3151 = vsel %vm3087, 1.0, 0.0
      %v3152 = vsel %vm3088, 1.0, 0.0
      %v3153 = vsel %vm3089, 1.0, 0.0
      %v3154 = vsel %vm3090, 1.0, 0.0
      %v3155 = vsel %vm3091, 1.0, 0.0
      %v3156 = vsel %vm3092, 1.0, 0.0
      %v3157 = vsel %vm3093, 1.0, 0.0
      %v3158 = vsel %vm3094, 1.0, 0.0
      %v3159 = vsel %vm3095, 1.0, 0.0
      %v3160 = vsel %vm3096, 1.0, 0.0
      %v3161 = vsel %vm3097, 1.0, 0.0
      %v3162 = vsel %vm3098, 1.0, 0.0
      %v3163 = vsel %vm3099, 1.0, 0.0
      %v3164 = vsel %vm3100, 1.0, 0.0
      %v3165 = vsel %vm3101, 1.0, 0.0
      %v3166 = vsel %vm3102, 1.0, 0.0
      %v3167 = vsel %vm3103, 1.0, 0.0
      %v3168 = vsel %vm3104, 1.0, 0.0
      %v3169 = vsel %vm3105, 1.0, 0.0
      %v3170 = vsel %vm3106, 1.0, 0.0
      %v3171 = vsel %vm3107, 1.0, 0.0
      %v3172 = vsel %vm3108, 1.0, 0.0
      %v3173 = vsel %vm3109, 1.0, 0.0
      %v3174 = vsel %vm3110, 1.0, 0.0
      %v3175 = vsel %vm3111, 1.0, 0.0
      %v3176 = vsel %vm3112, 1.0, 0.0
      %v3177 = vsel %vm3113, 1.0, 0.0
      %3178 = vset.pattern.permute.xlu0 10
      %3179 = vperm.xlu0 %3178, %v373
      %v3180 = vpop.permute.xlu0 %3179
      %3183 = vset.pattern.permute.xlu0 10
      %3184 = vperm.xlu0 %3183, %v374
      %v3185 = vpop.permute.xlu0 %3184
      %3187 = vmatprep.subr.mxu0 0.0
      %3188 = vmatpush1.msra.mxu0 %v3114
      %3189 = vmatprep.subr.mxu0 0.0
      %3190 = vmatpush1.msra.mxu0 %v3115
      %3191 = vmatprep.subr.mxu0 0.0
      %3192 = vmatpush1.msra.mxu0 %v3116
      %3193 = vmatprep.subr.mxu0 0.0
      %3194 = vmatpush1.msra.mxu0 %v3117
      %3195 = vmatprep.subr.mxu0 0.0
      %3196 = vmatpush1.msra.mxu0 %v3118
      %3197 = vmatprep.subr.mxu0 0.0
      %3198 = vmatpush1.msra.mxu0 %v3119
      %3199 = vmatprep.subr.mxu0 0.0
      %3200 = vmatpush1.msra.mxu0 %v3120
      %3201 = vmatprep.subr.mxu0 0.0
      %3202 = vmatpush1.msra.mxu0 %v3121
      %3203 = vmatprep.subr.mxu0 0.0
      %3204 = vmatpush1.msra.mxu0 %v3122
      %3205 = vmatprep.subr.mxu0 0.0
      %3206 = vmatpush1.msra.mxu0 %v3123
      %3207 = vmatprep.subr.mxu0 0.0
      %3208 = vmatpush1.msra.mxu0 %v3124
      %3209 = vmatprep.subr.mxu0 0.0
      %3210 = vmatpush1.msra.mxu0 %v3125
      %3211 = vmatprep.subr.mxu0 0.0
      %3212 = vmatpush1.msra.mxu0 %v3126
      %3213 = vmatprep.subr.mxu0 0.0
      %3214 = vmatpush1.msra.mxu0 %v3127
      %3215 = vmatprep.subr.mxu0 0.0
      %3216 = vmatpush1.msra.mxu0 %v3128
      %3217 = vmatprep.subr.mxu0 0.0
      %3218 = vmatpush1.msra.mxu0 %v3129
      %3219 = vmatprep.subr.mxu0 0.0
      %3220 = vmatpush1.msra.mxu0 %v3130
      %3221 = vmatprep.subr.mxu0 0.0
      %3222 = vmatpush1.msra.mxu0 %v3131
      %3223 = vmatprep.subr.mxu0 0.0
      %3224 = vmatpush1.msra.mxu0 %v3132
      %3225 = vmatprep.subr.mxu0 0.0
      %3226 = vmatpush1.msra.mxu0 %v3133
      %3227 = vmatprep.subr.mxu0 0.0
      %3228 = vmatpush1.msra.mxu0 %v3134
      %3229 = vmatprep.subr.mxu0 0.0
      %3230 = vmatpush1.msra.mxu0 %v3135
      %3231 = vmatprep.subr.mxu0 0.0
      %3232 = vmatpush1.msra.mxu0 %v3136
      %3233 = vmatprep.subr.mxu0 0.0
      %3234 = vmatpush1.msra.mxu0 %v3137
      %3235 = vmatprep.subr.mxu0 0.0
      %3236 = vmatpush1.msra.mxu0 %v3138
      %3237 = vmatprep.subr.mxu0 0.0
      %3238 = vmatpush1.msra.mxu0 %v3139
      %3239 = vmatprep.subr.mxu0 0.0
      %3240 = vmatpush1.msra.mxu0 %v3140
      %3241 = vmatprep.subr.mxu0 0.0
      %3242 = vmatpush1.msra.mxu0 %v3141
      %3243 = vmatprep.subr.mxu0 0.0
      %3244 = vmatpush1.msra.mxu0 %v3142
      %3245 = vmatprep.subr.mxu0 0.0
      %3246 = vmatpush1.msra.mxu0 %v3143
      %3247 = vmatprep.subr.mxu0 0.0
      %3248 = vmatpush1.msra.mxu0 %v3144
      %3249 = vmatprep.subr.mxu0 0.0
      %3250 = vmatpush1.msra.mxu0 %v3145
      %3251 = vmatprep.mubr.f32.mxu0 %v2899
      %3252 = vmatmul.mubr.f32.gmra.mrb[0].mxu0 %v2897
      %v3253 = vpop.f32.mrb[0].mxu0
      %v3254 = vadd.f32 %v3180, %v3253
      %v3255 = vpop.f32.mrb[0].mxu0
      %3256 = vmatprep.mubr.f32.mxu0 %v2905
      %3257 = vmatmul.mubr.f32.gmra.mrb[0].mxu0 %v2903
      %v3258 = vpop.f32.mrb[0].mxu0
      %v3259 = vadd.f32 %v3185, %v3258
      %v3260 = vpop.f32.mrb[0].mxu0
      %3261 = vdwg.mxu0
      %3262 = vmatprep.subr.mxu0 0.0
      %3263 = vmatpush1.msra.mxu0 %v3146
      %3264 = vmatprep.subr.mxu0 0.0
      %3265 = vmatpush1.msra.mxu0 %v3147
      %3266 = vmatprep.subr.mxu0 0.0
      %3267 = vmatpush1.msra.mxu0 %v3148
      %3268 = vmatprep.subr.mxu0 0.0
      %3269 = vmatpush1.msra.mxu0 %v3149
      %3270 = vmatprep.subr.mxu0 0.0
      %3271 = vmatpush1.msra.mxu0 %v3150
      %3272 = vmatprep.subr.mxu0 0.0
      %3273 = vmatpush1.msra.mxu0 %v3151
      %3274 = vmatprep.subr.mxu0 0.0
      %3275 = vmatpush1.msra.mxu0 %v3152
      %3276 = vmatprep.subr.mxu0 0.0
      %3277 = vmatpush1.msra.mxu0 %v3153
      %3278 = vmatprep.subr.mxu0 0.0
      %3279 = vmatpush1.msra.mxu0 %v3154
      %3280 = vmatprep.subr.mxu0 0.0
      %3281 = vmatpush1.msra.mxu0 %v3155
      %3282 = vmatprep.subr.mxu0 0.0
      %3283 = vmatpush1.msra.mxu0 %v3156
      %3284 = vmatprep.subr.mxu0 0.0
      %3285 = vmatpush1.msra.mxu0 %v3157
      %3286 = vmatprep.subr.mxu0 0.0
      %3287 = vmatpush1.msra.mxu0 %v3158
      %3288 = vmatprep.subr.mxu0 0.0
      %3289 = vmatpush1.msra.mxu0 %v3159
      %3290 = vmatprep.subr.mxu0 0.0
      %3291 = vmatpush1.msra.mxu0 %v3160
      %3292 = vmatprep.subr.mxu0 0.0
      %3293 = vmatpush1.msra.mxu0 %v3161
      %3294 = vmatprep.subr.mxu0 0.0
      %3295 = vmatpush1.msra.mxu0 %v3162
      %3296 = vmatprep.subr.mxu0 0.0
      %3297 = vmatpush1.msra.mxu0 %v3163
      %3298 = vmatprep.subr.mxu0 0.0
      %3299 = vmatpush1.msra.mxu0 %v3164
      %3300 = vmatprep.subr.mxu0 0.0
      %3301 = vmatpush1.msra.mxu0 %v3165
      %3302 = vmatprep.subr.mxu0 0.0
      %3303 = vmatpush1.msra.mxu0 %v3166
      %3304 = vmatprep.subr.mxu0 0.0
      %3305 = vmatpush1.msra.mxu0 %v3167
      %3306 = vmatprep.subr.mxu0 0.0
      %3307 = vmatpush1.msra.mxu0 %v3168
      %3308 = vmatprep.subr.mxu0 0.0
      %3309 = vmatpush1.msra.mxu0 %v3169
      %3310 = vmatprep.subr.mxu0 0.0
      %3311 = vmatpush1.msra.mxu0 %v3170
      %3312 = vmatprep.subr.mxu0 0.0
      %3313 = vmatpush1.msra.mxu0 %v3171
      %3314 = vmatprep.subr.mxu0 0.0
      %3315 = vmatpush1.msra.mxu0 %v3172
      %3316 = vmatprep.subr.mxu0 0.0
      %3317 = vmatpush1.msra.mxu0 %v3173
      %3318 = vmatprep.subr.mxu0 0.0
      %3319 = vmatpush1.msra.mxu0 %v3174
      %3320 = vmatprep.subr.mxu0 0.0
      %3321 = vmatpush1.msra.mxu0 %v3175
      %3322 = vmatprep.subr.mxu0 0.0
      %3323 = vmatpush1.msra.mxu0 %v3176
      %3324 = vmatprep.subr.mxu0 0.0
      %3325 = vmatpush1.msra.mxu0 %v3177
      %3326 = vmatprep.mubr.f32.mxu0 %v2976
      %3327 = vmatmul.mubr.f32.gmra.mrb[0].mxu0 %v2974
      %v3328 = vpop.f32.mrb[0].mxu0
      %v3329 = vadd.f32 %v3254, %v3328
      %v3330 = vpop.f32.mrb[0].mxu0
      %3331 = vmatprep.mubr.f32.mxu0 %v2982
      %3332 = vmatmul.mubr.f32.gmra.mrb[0].mxu0 %v2980
      %v3333 = vpop.f32.mrb[0].mxu0
      %v3334 = vadd.f32 %v3259, %v3333
      %v3335 = vpop.f32.mrb[0].mxu0
      %3336 = vdwg.mxu0
      %v3337 = vsel %vm2823, %v3329, 0.0
      %3338 = vadd.xlane.f32.xlu0 %v3337
      %v3339 = vpop.xlane.xlu0 %3338
      %v3340 = vsel %vm2823, %v3334, 0.0
      %3341 = vadd.xlane.f32.xlu0 %v3340
      %v3342 = vpop.xlane.xlu0 %3341
      %v3343 = vmul.f32 %v3329, %v3329
      %v3344 = vmul.f32 %v3334, %v3334
      %v3345 = vsel %vm2823, %v3343, 0.0
      %3346 = vadd.xlane.f32.xlu0 %v3345
      %v3347 = vpop.xlane.xlu0 %3346
      %v3348 = vsel %vm2823, %v3344, 0.0
      %3349 = vadd.xlane.f32.xlu0 %v3348
      %v3350 = vpop.xlane.xlu0 %3349
      %v3351 = vsel %vm578, %v3339, %v3347
      %v3352 = vsel %vm578, %v3342, %v3350
      %vm3353 = vcmask 130048
      %v3355 = vsel %vm3353, %v395, 0
      %v3358 = vsel %vm3353, %v396, 0
      %3360 = vmatprep.subr.mxu0 0.0
      %3361 = vmatpush1.msra.mxu0 %v3351
      %3362 = vmatprep.subr.mxu0 0.0
      %3363 = vmatpush1.msra.mxu0 %v3352
      %3364 = vmatprep.subr.mxu0 0.0
      %3365 = vmatpush1.msra.mxu0 0.0
      %3366 = vmatprep.subr.mxu0 0.0
      %3367 = vmatpush1.msra.mxu0 0.0
      %3368 = vmatprep.subr.mxu0 0.0
      %3369 = vmatpush1.msra.mxu0 0.0
      %3370 = vmatprep.subr.mxu0 0.0
      %3371 = vmatpush1.msra.mxu0 0.0
      %3372 = vmatprep.subr.mxu0 0.0
      %3373 = vmatpush1.msra.mxu0 0.0
      %3374 = vmatprep.subr.mxu0 0.0
      %3375 = vmatpush1.msra.mxu0 0.0
      %3376 = vmatprep.subr.mxu0 0.0
      %3377 = vmatpush1.msra.mxu0 0.0
      %3378 = vmatprep.subr.mxu0 0.0
      %3379 = vmatpush1.msra.mxu0 0.0
      %3380 = vmatprep.subr.mxu0 0.0
      %3381 = vmatpush1.msra.mxu0 0.0
      %3382 = vmatprep.subr.mxu0 0.0
      %3383 = vmatpush1.msra.mxu0 0.0
      %3384 = vmatprep.subr.mxu0 0.0
      %3385 = vmatpush1.msra.mxu0 0.0
      %3386 = vmatprep.subr.mxu0 0.0
      %3387 = vmatpush1.msra.mxu0 0.0
      %3388 = vmatprep.subr.mxu0 0.0
      %3389 = vmatpush1.msra.mxu0 0.0
      %3390 = vmatprep.subr.mxu0 0.0
      %3391 = vmatpush1.msra.mxu0 0.0
      %3392 = vmatprep.subr.mxu0 0.0
      %3393 = vmatpush1.msra.mxu0 0.0
      %3394 = vmatprep.subr.mxu0 0.0
      %3395 = vmatpush1.msra.mxu0 0.0
      %3396 = vmatprep.subr.mxu0 0.0
      %3397 = vmatpush1.msra.mxu0 0.0
      %3398 = vmatprep.subr.mxu0 0.0
      %3399 = vmatpush1.msra.mxu0 0.0
      %3400 = vmatprep.subr.mxu0 0.0
      %3401 = vmatpush1.msra.mxu0 0.0
      %3402 = vmatprep.subr.mxu0 0.0
      %3403 = vmatpush1.msra.mxu0 0.0
      %3404 = vmatprep.subr.mxu0 0.0
      %3405 = vmatpush1.msra.mxu0 0.0
      %3406 = vmatprep.subr.mxu0 0.0
      %3407 = vmatpush1.msra.mxu0 0.0
      %3408 = vmatprep.subr.mxu0 0.0
      %3409 = vmatpush1.msra.mxu0 0.0
      %3410 = vmatprep.subr.mxu0 0.0
      %3411 = vmatpush1.msra.mxu0 0.0
      %3412 = vmatprep.subr.mxu0 0.0
      %3413 = vmatpush1.msra.mxu0 0.0
      %3414 = vmatprep.subr.mxu0 0.0
      %3415 = vmatpush1.msra.mxu0 0.0
      %3416 = vmatprep.subr.mxu0 0.0
      %3417 = vmatpush1.msra.mxu0 0.0
      %3418 = vmatprep.subr.mxu0 0.0
      %3419 = vmatpush1.msra.mxu0 0.0
      %3420 = vmatprep.subr.mxu0 0.0
      %3421 = vmatpush1.msra.mxu0 0.0
      %3422 = vmatprep.subr.mxu0 0.0
      %3423 = vmatpush1.msra.mxu0 0.0
      %3424 = vmatprep.mubr.f32.mxu0 0.0
      %3425 = vmatmul.mubr.f32.gmra.mrb[0].mxu0 %v3355
      %v3426 = vpop.f32.mrb[0].mxu0
      %v3427 = vadd.f32 0.0, %v3426
      %v3428 = vpop.f32.mrb[0].mxu0
      %3429 = vmatprep.mubr.f32.mxu0 0.0
      %3430 = vmatmul.mubr.f32.gmra.mrb[0].mxu0 %v3358
      %v3431 = vpop.f32.mrb[0].mxu0
      %v3432 = vadd.f32 0.0, %v3431
      %v3433 = vpop.f32.mrb[0].mxu0
      %3434 = vdwg.mxu0
      %v3435 = vmul.f32 %v3427, 0.00390625
      %v3436 = vmul.f32 %v3432, 0.00390625
      %v3437 = vmul.f32 %v3435, %v3435
      %v3438 = vmul.f32 %v3436, %v3436
      %3441 = vrot.lane.b32.xlu0 %v3437, 1
      %v3442 = vpop.permute.xlu0 %3441
      %3443 = vrot.lane.b32.xlu0 %v3438, 1
      %v3444 = vpop.permute.xlu0 %3443
      %v3447 = vsub.f32 %v3435, %v3442
      %v3448 = vsub.f32 %v3436, %v3444
      %v3449 = vmax.f32 %v3447, 0.0
      %v3450 = vmax.f32 %v3448, 0.0
      %3452 = vset.pattern.permute.xlu0 0
      %3453 = vperm.xlu0 %3452, %v3435
      %v3454 = vpop.permute.xlu0 %3453
      %3457 = vset.pattern.permute.xlu0 0
      %3458 = vperm.xlu0 %3457, %v3436
      %v3459 = vpop.permute.xlu0 %3458
      %v3461 = vsub.f32 %v3329, %v3454
      %v3462 = vsub.f32 %v3334, %v3459
      %v3463 = vadd.f32 %v3449, 1e-05
      %v3464 = vadd.f32 %v3450, 1e-05
      %v3465 = vrsqrt.pop %v3463
      %v3466 = vrsqrt.pop %v3464
      %3468 = vset.pattern.permute.xlu0 1
      %3469 = vperm.xlu0 %3468, %v3465
      %v3470 = vpop.permute.xlu0 %3469
      %3473 = vset.pattern.permute.xlu0 1
      %3474 = vperm.xlu0 %3473, %v3466
      %v3475 = vpop.permute.xlu0 %3474
      %v3477 = vmul.f32 %v3461, %v3470
      %v3478 = vmul.f32 %v3462, %v3475
      %3479 = vset.pattern.permute.xlu0 11
      %3480 = vperm.xlu0 %3479, %v373
      %v3481 = vpop.permute.xlu0 %3480
      %3483 = vset.pattern.permute.xlu0 11
      %3484 = vperm.xlu0 %3483, %v374
      %v3485 = vpop.permute.xlu0 %3484
      %v3487 = vmul.f32 %v3477, %v3481
      %v3488 = vmul.f32 %v3478, %v3485
      %3489 = vset.pattern.permute.xlu0 12
      %3490 = vperm.xlu0 %3489, %v373
      %v3491 = vpop.permute.xlu0 %3490
      %3493 = vset.pattern.permute.xlu0 12
      %3494 = vperm.xlu0 %3493, %v374
      %v3495 = vpop.permute.xlu0 %3494
      %v3497 = vadd.f32 %v3487, %v3491
      %v3498 = vadd.f32 %v3488, %v3495
      %vm3499 = vcmp.ge.f32.partialorder %v3497, 0.0
      %vm3500 = vcmp.ge.f32.partialorder %v3498, 0.0
      %v3501 = vrot.slane %v373, 4
      %3502 = vrot.lane.b32.xlu0 %v3501, 114
      %v3503 = vpop.permute.xlu0 %3502
      %s3504 = vtos %v3503
      %v3505 = vstv %s3504
      %v3507 = vmul.f32 %v3505, %v3497
      %v3508 = vmul.f32 %v3505, %v3498
      %v3509 = vsel %vm3499, %v3497, %v3507
      %v3510 = vsel %vm3500, %v3498, %v3508
      %3511 = vst.msk [vmem:[%s372] sm:$0xff] %vm2823, %v3509
      %3512 = vst.msk [vmem:[%s372 + $0x8] sm:$0xff] %vm2823, %v3510
      %p3513 = scmp.lt.s32.totalorder %s22, 1
      %s3514 = scalar_select %p3513, %s22, 1
      %s3515 = smul.addr %s3514, 4
      %s3516 = smul.addr %s3515, 8
      %s3517 = scalar_lea.vmem %s9, %s3516
      %p3518 = scmp.lt.s32.totalorder %s22, 1
      %s3519 = scalar_select %p3518, %s22, 1
      %s3520 = smul.addr %s3519, 2
      %s3521 = smul.addr %s3520, 8
      %s3522 = scalar_lea.vmem %s10, %s3521
      // Predicated region
      $region57: #{encoder_block_forward.1} parent=55 // pred_check
        %p3523 = pneg %p234
      $region58: #{encoder_block_forward.1} parent=55 // pred_check_branch
        %3525 = sbr.rel (%p3523) target = $region60
      $region59: #{encoder_block_forward.1} parent=55 // pred_region
        _
      $region60: #{encoder_block_forward.1} parent=55 // pred_fallthru
        _
      // Predicated region
      $region61: #{encoder_block_forward.1} parent=55 // pred_check
        %p3526 = pneg %p260
      $region62: #{encoder_block_forward.1} parent=55 // pred_check_branch
        %3528 = sbr.rel (%p3526) target = $region64
      $region63: #{encoder_block_forward.1} parent=55 // pred_region
        _
      $region64: #{encoder_block_forward.1} parent=55 // pred_fallthru
        _
    $region56: #{encoder_block_forward.1} parent=5 // pred_fallthru
      _
    %p3529 = scmp.le.s32.totalorder 2, %s17
    // Predicated region
    $region65: #{encoder_block_forward.1} parent=5 // pred_check
      %p3530 = pneg %p3529
    $region66: #{encoder_block_forward.1} parent=5 // pred_check_branch
      %3532 = sbr.rel (%p3530) target = $region68
    $region67: #{encoder_block_forward.1} parent=5 // pred_region
      %s3533 = ssub.s32 %s17, 2
      // Predicated region
      $region69: #{encoder_block_forward.1} parent=67 // pred_check
        %p3534 = pneg %p240
      $region70: #{encoder_block_forward.1} parent=67 // pred_check_branch
        %3536 = sbr.rel (%p3534) target = $region72
      $region71: #{encoder_block_forward.1} parent=67 // pred_region
        %p3537 = scmp.lt.s32.totalorder %s23, 1
        %s3538 = scalar_select %p3537, %s23, 1
        %s3539 = smul.addr %s3538, 4
        %s3540 = smul.addr %s3539, 8
        %s3541 = scalar_lea.vmem %s9, %s3540
      $region72: #{encoder_block_forward.1} parent=67 // pred_fallthru
        _
      // Predicated region
      $region73: #{encoder_block_forward.1} parent=67 // pred_check
        %p3542 = pneg %p266
      $region74: #{encoder_block_forward.1} parent=67 // pred_check_branch
        %3544 = sbr.rel (%p3542) target = $region76
      $region75: #{encoder_block_forward.1} parent=67 // pred_region
        %p3545 = scmp.lt.s32.totalorder %s23, 1
        %s3546 = scalar_select %p3545, %s23, 1
        %s3547 = smul.addr %s3546, 2
        %s3548 = smul.addr %s3547, 8
        %s3549 = scalar_lea.vmem %s10, %s3548
      $region76: #{encoder_block_forward.1} parent=67 // pred_fallthru
        _
    $region68: #{encoder_block_forward.1} parent=5 // pred_fallthru
      _
  $region6: #{encoder_block_forward.1} parent=0 // loop_footer
    %s21 = sadd.s32 1, %s17
  $region7: #{encoder_block_forward.1} parent=0 // loop_footer_branch
    %16 = sbr.rel target = $region3
  $region8: #{encoder_block_forward.1} parent=0 // loop_exit
    _

</llo_original>
